<compile_context>
chip_gen: v5e
topology: v5e:2x2
jax: 0.10.0
libtpu: 0.0.40
codegen_flags: <defaults>
</compile_context>

<pallas_src>
import numpy as np
import jax
import jax.numpy as jnp
from jax import lax
from jax.experimental import pallas as pl
from jax.experimental.pallas import tpu as pltpu

F_OUT = 512  # PointNetfeat output channels (outchannel=512, x=1)


# --------------------------- fused PointNet kernel ----------------------------
def _make_pointnet_kernel(n_valid, tile, needs_mask):
    """Build the fused per-point-MLP + max-pool + head kernel.

    Grid: (B, N_pad // tile); batch axis "parallel", point-tile axis "arbitrary".
    Everything runs channel-major (channels -> sublanes, points -> lanes) so the
    input is consumed directly in PyTorch's (B, C, N) layout and feat_traj is
    written directly in PyTorch's (B, 512, N) layout with lane-dense stores.
    """

    def kernel(
        x_ref,                      # (1, Cin, T)  f32  input tile (pre_bn folded in)
        w1_ref, b1_ref,             # (64, Cin) f32, (64, 1) f32   conv1 (+pre_bn+bn1)
        w2_ref, b2_ref,             # (128, 64) bf16, (128, 1) f32 conv2 (+bn2)
        w3_ref, b3_ref,             # (256, 128) bf16, (256, 1) f32
        w4_ref, b4_ref,             # (512, 256) bf16, (512, 1) f32
        wf1_ref, bf1_ref,           # (256, 512) f32, (256, 1) f32  fc1 (+bn1)
        wf2_ref, bf2_ref,           # (C, 256) f32, (C, 1) f32      fc2 (+bn2)
        wh1_ref, bh1_ref,           # (768, C) f32, (768, 1) f32    fused [ce1|s1|hr1]
        wh2_ref,                    # (8, 768) f32                  fused [ce2|s2|hr2|pad]
        xori_ref,                   # out (1, 512, T) bf16  -> feat_traj
        box_ref,                    # out (1, 8, 1)  f32    -> [centers|sizes|heading|pad]
        feat_ref,                   # out (1, C, 1)  f32
        pooled_scr,                 # scratch (512, 1) f32  running max over point tiles
    ):
        t = pl.program_id(1)

        x = x_ref[0]                                               # (Cin, T) f32

        # layer 1 on the VPU: K = Cin is tiny, rank-1 broadcast-MACs keep the MXU
        # free for layers 2-4 (an MXU matmul would pad K=4 to its full width).
        w1 = w1_ref[...]                                           # (64, Cin)
        h = w1[:, 0:1] * x[0:1, :] + b1_ref[...]                   # (64, T) f32
        for c in range(1, x.shape[0]):
            h = h + w1[:, c:c + 1] * x[c:c + 1, :]
        h = jnp.maximum(h, 0.0).astype(jnp.bfloat16)

        # layers 2-4 on the MXU: bf16 operands, f32 accumulation
        h = jnp.dot(w2_ref[...], h, preferred_element_type=jnp.float32) + b2_ref[...]
        h = jnp.maximum(h, 0.0).astype(jnp.bfloat16)
        h = jnp.dot(w3_ref[...], h, preferred_element_type=jnp.float32) + b3_ref[...]
        h = jnp.maximum(h, 0.0).astype(jnp.bfloat16)
        x_ori = (jnp.dot(w4_ref[...], h, preferred_element_type=jnp.float32)
                 + b4_ref[...])                                    # (512, T) f32

        # feat_traj tile: bf16 store halves the dominant HBM writeback
        xori_ref[0] = x_ori.astype(jnp.bfloat16)

        # global max pool over points (lane reduce) on f32 *before* the bf16 cast;
        # padded lanes (from rounding N up to a multiple of T) are masked to -inf.
        if needs_mask:
            lane = lax.broadcasted_iota(jnp.int32, (1, tile), 1)
            valid = (t * tile + lane) < n_valid                    # (1, T) bool
            x_for_max = jnp.where(valid, x_ori, -jnp.inf)
        else:
            x_for_max = x_ori
        tile_max = jnp.max(x_for_max, axis=1, keepdims=True)       # (512, 1)

        @pl.when(t == 0)
        def _init():
            pooled_scr[...] = tile_max

        @pl.when(t > 0)
        def _accumulate():
            pooled_scr[...] = jnp.maximum(pooled_scr[...], tile_max)

        # fused head epilogue on the last point tile: fc1/fc2 + three regression
        # heads, channel-major (column vectors) so no transposes are needed.
        @pl.when(t == pl.num_programs(1) - 1)
        def _head():
            pooled = pooled_scr[...]                               # (512, 1) f32
            f = jnp.maximum(
                jnp.dot(wf1_ref[...], pooled, preferred_element_type=jnp.float32)
                + bf1_ref[...], 0.0)                               # (256, 1)
            feat = jnp.maximum(
                jnp.dot(wf2_ref[...], f, preferred_element_type=jnp.float32)
                + bf2_ref[...], 0.0)                               # (C, 1)
            feat_ref[0] = feat
            hh = jnp.maximum(
                jnp.dot(wh1_ref[...], feat, preferred_element_type=jnp.float32)
                + bh1_ref[...], 0.0)                               # (768, 1)
            box_ref[0] = jnp.dot(wh2_ref[...], hh,
                                 preferred_element_type=jnp.float32)   # (8, 1)

    return kernel


# ------------------------------- parameter glue --------------------------------
def _fold_bn(w, b, gamma, beta, mean, var, eps=1e-5):
    """Fold eval-mode BatchNorm into linear weight (K_in, K_out) and bias (K_out,)."""
    a = gamma / jnp.sqrt(var + eps)
    w_eff = w * a[None, :]
    b_eff = b * a + (beta - mean * a)
    return w_eff, b_eff[None, :]


def make_params(key, input_dim, channels):
    """Deterministic synthetic parameters (kaiming-ish normals, nontrivial BN stats)."""
    def nrm(k, shape, scale=None):
        fan_in = shape[0]
        s = scale if scale is not None else np.sqrt(2.0 / fan_in)
        return jax.random.normal(k, shape, jnp.float32) * s

    def bn(k, c):
        k1, k2, k3, k4 = jax.random.split(k, 4)
        gamma = 1.0 + 0.1 * jax.random.normal(k1, (c,), jnp.float32)
        beta = 0.05 * jax.random.normal(k2, (c,), jnp.float32)
        mean = 0.1 * jax.random.normal(k3, (c,), jnp.float32)
        var = 1.0 + 0.2 * jnp.abs(jax.random.normal(k4, (c,), jnp.float32))
        return gamma, beta, mean, var

    keys = jax.random.split(key, 32)
    p = {}

    # pre_bn on input channels (folded to scale/shift; later absorbed into conv1)
    g, b_, m, v = bn(keys[0], input_dim)
    a = g / jnp.sqrt(v + 1e-5)
    p["pre_s"] = a[None, :]
    p["pre_b"] = (b_ - m * a)[None, :]

    dims = [(input_dim, 64), (64, 128), (128, 256), (256, 512)]
    for i, (ci, co) in enumerate(dims, start=1):
        w = nrm(keys[i], (ci, co))
        bias = jnp.zeros((co,), jnp.float32)
        gbmv = bn(keys[10 + i], co)
        p[f"w{i}"], p[f"b{i}"] = _fold_bn(w, bias, *gbmv)

    wf1 = nrm(keys[5], (512, 256)); bf1 = jnp.zeros((256,), jnp.float32)
    p["wf1"], p["bf1"] = _fold_bn(wf1, bf1, *bn(keys[15], 256))
    wf2 = nrm(keys[6], (256, channels)); bf2 = jnp.zeros((channels,), jnp.float32)
    p["wf2"], p["bf2"] = _fold_bn(wf2, bf2, *bn(keys[16], channels))

    # heads (bias=0 per init_weights; second layer has no bias)
    p["wce1"] = nrm(keys[7], (channels, 256)); p["bce1"] = jnp.zeros((1, 256), jnp.float32)
    p["wce2"] = nrm(keys[8], (256, 3))
    p["ws1"] = nrm(keys[9], (channels, 256)); p["bs1"] = jnp.zeros((1, 256), jnp.float32)
    p["ws2"] = nrm(keys[20], (256, 3))
    p["whr1"] = nrm(keys[21], (channels, 256)); p["bhr1"] = jnp.zeros((1, 256), jnp.float32)
    p["whr2"] = nrm(keys[22], (256, 1))
    return p


def prepare_kernel_params(p):
    """Rearrange folded params into the channel-major fused layouts the kernel uses."""
    kp = {}
    # fold pre_bn affine into conv1:  (x*s + t) @ W + b == x @ (s[:,None]*W) + (b + t@W)
    s = p["pre_s"][0]
    t = p["pre_b"][0]
    w1 = p["w1"] * s[:, None]
    b1 = p["b1"][0] + t @ p["w1"]
    kp["w1t"] = jnp.transpose(w1)                              # (64, Cin) f32 (VPU layer)
    kp["b1c"] = b1[:, None]                                    # (64, 1)
    for i in (2, 3, 4):
        kp[f"w{i}t"] = jnp.transpose(p[f"w{i}"]).astype(jnp.bfloat16)
        kp[f"b{i}c"] = p[f"b{i}"][0][:, None]                  # (Co, 1) f32

    # head, channel-major: y_col = W^T @ x_col + b_col
    kp["wf1t"] = jnp.transpose(p["wf1"])                       # (256, 512)
    kp["bf1c"] = p["bf1"][0][:, None]                          # (256, 1)
    kp["wf2t"] = jnp.transpose(p["wf2"])                       # (C, 256)
    kp["bf2c"] = p["bf2"][0][:, None]                          # (C, 1)

    wh1 = jnp.concatenate([p["wce1"], p["ws1"], p["whr1"]], axis=1)   # (C, 768)
    bh1 = jnp.concatenate([p["bce1"], p["bs1"], p["bhr1"]], axis=1)   # (1, 768)
    kp["wh1t"] = jnp.transpose(wh1)                            # (768, C)
    kp["bh1c"] = jnp.transpose(bh1)                            # (768, 1)
    wh2 = jnp.zeros((768, 8), jnp.float32)                     # column 7 = padding
    wh2 = wh2.at[0:256, 0:3].set(p["wce2"])
    wh2 = wh2.at[256:512, 3:6].set(p["ws2"])
    wh2 = wh2.at[512:768, 6:7].set(p["whr2"])
    kp["wh2t"] = jnp.transpose(wh2)                            # (8, 768)
    return kp


def _pick_point_tile(n, max_tile=2048):
    """Point-tile T: always a multiple of 128, <= max_tile, minimizing padded length
    (ties broken towards the largest T)."""
    max_tile = max(128, (max_tile // 128) * 128)
    n128 = ((n + 127) // 128) * 128
    if n128 <= max_tile:
        return n128
    best_t, best_pad = 128, None
    for t in range(128, max_tile + 1, 128):
        n_pad = ((n + t - 1) // t) * t
        if best_pad is None or n_pad <= best_pad:
            best_t, best_pad = t, n_pad
    return best_t


# ---------------------------------- forward ------------------------------------
def pointnet_forward(x_ncw, params, channels, max_point_tile=2048):
    """x_ncw: (B, C_in, N) as in the PyTorch module.  Returns (box, feat, feat_traj)."""
    B, Cin, N = x_ncw.shape
    T = _pick_point_tile(N, max_point_tile)
    n_pad = ((N + T - 1) // T) * T
    n_tiles = n_pad // T
    x_in = jnp.pad(x_ncw, ((0, 0), (0, 0), (0, n_pad - N))) if n_pad != N else x_ncw
    kp = prepare_kernel_params(params)

    wmap = lambda b, t: (0, 0)     # resident full-array weight/bias blocks

    in_specs = [
        pl.BlockSpec((1, Cin, T), lambda b, t: (b, 0, t)),
        pl.BlockSpec((64, Cin), wmap), pl.BlockSpec((64, 1), wmap),
        pl.BlockSpec((128, 64), wmap), pl.BlockSpec((128, 1), wmap),
        pl.BlockSpec((256, 128), wmap), pl.BlockSpec((256, 1), wmap),
        pl.BlockSpec((512, 256), wmap), pl.BlockSpec((512, 1), wmap),
        pl.BlockSpec((256, 512), wmap), pl.BlockSpec((256, 1), wmap),
        pl.BlockSpec((channels, 256), wmap), pl.BlockSpec((channels, 1), wmap),
        pl.BlockSpec((768, channels), wmap), pl.BlockSpec((768, 1), wmap),
        pl.BlockSpec((8, 768), wmap),
    ]
    out_specs = (
        pl.BlockSpec((1, F_OUT, T), lambda b, t: (b, 0, t)),        # feat_traj tile
        pl.BlockSpec((1, 8, 1), lambda b, t: (b, 0, 0)),            # box (resident over t)
        pl.BlockSpec((1, channels, 1), lambda b, t: (b, 0, 0)),     # feat (resident over t)
    )
    out_shape = (
        jax.ShapeDtypeStruct((B, F_OUT, n_pad), jnp.bfloat16),      # feat_traj, bf16 store
        jax.ShapeDtypeStruct((B, 8, 1), jnp.float32),
        jax.ShapeDtypeStruct((B, channels, 1), jnp.float32),
    )

    kernel = _make_pointnet_kernel(N, T, n_pad != N)

    xori, box8, feat_col = pl.pallas_call(
        kernel,
        grid=(B, n_tiles),
        in_specs=in_specs,
        out_specs=out_specs,
        out_shape=out_shape,
        scratch_shapes=[pltpu.VMEM((F_OUT, 1), jnp.float32)],       # pooled max accumulator
        compiler_params=pltpu.CompilerParams(
            dimension_semantics=("parallel", "arbitrary"),
            # 48 MiB: clears v5e's 16 MiB default scoped VMEM for T=2048 tiles while
            # leaving headroom under v7x's 64 MiB physical VMEM (v6e default also ok).
            vmem_limit_bytes=48 * 1024 * 1024),
    )(x_in, kp["w1t"], kp["b1c"], kp["w2t"], kp["b2c"], kp["w3t"], kp["b3c"],
      kp["w4t"], kp["b4c"], kp["wf1t"], kp["bf1c"], kp["wf2t"], kp["bf2c"],
      kp["wh1t"], kp["bh1c"], kp["wh2t"])

    box = box8[:, :7, 0]                      # cols 0-2 centers, 3-5 sizes, 6 heading
    feat = feat_col[:, :, 0]                  # (B, C)
    feat_traj = xori[:, :, :N] if n_pad != N else xori   # (B, 512, N), bf16
    return box, feat, feat_traj


# --------------------------------- reference ------------------------------------
def pointnet_reference(x_ncw, p):
    """Pure-JAX reference (unfused params, same bf16 cast points) for verification."""
    B, Cin, N = x_ncw.shape
    bf = jnp.bfloat16
    h = jnp.transpose(x_ncw, (0, 2, 1)).reshape(B * N, Cin)
    h = h * p["pre_s"] + p["pre_b"]
    h = jnp.maximum(h @ p["w1"] + p["b1"], 0.0).astype(bf)
    h = jnp.maximum(jnp.dot(h, p["w2"].astype(bf), preferred_element_type=jnp.float32)
                    + p["b2"], 0.0).astype(bf)
    h = jnp.maximum(jnp.dot(h, p["w3"].astype(bf), preferred_element_type=jnp.float32)
                    + p["b3"], 0.0).astype(bf)
    x_ori = jnp.dot(h, p["w4"].astype(bf), preferred_element_type=jnp.float32) + p["b4"]
    x_ori3 = x_ori.reshape(B, N, 512)
    pooled = jnp.max(x_ori3, axis=1)
    f = jnp.maximum(pooled @ p["wf1"] + p["bf1"], 0.0)
    feat = jnp.maximum(f @ p["wf2"] + p["bf2"], 0.0)
    centers = jnp.maximum(feat @ p["wce1"] + p["bce1"], 0.0) @ p["wce2"]
    sizes = jnp.maximum(feat @ p["ws1"] + p["bs1"], 0.0) @ p["ws2"]
    headings = jnp.maximum(feat @ p["whr1"] + p["bhr1"], 0.0) @ p["whr2"]
    box = jnp.concatenate([centers, sizes, headings], -1)
    return box, feat, jnp.transpose(x_ori3, (0, 2, 1))


if __name__ == "__main__":
    B, Cin, N = 2, 4, 16          # batch, input_dim, num points
    CHANNELS = 32                 # model_cfg.TRANS_INPUT

    key = jax.random.PRNGKey(0)
    kx, kparam = jax.random.split(key)
    x = jax.random.normal(kx, (B, Cin, N), jnp.float32)   # PyTorch Conv1d layout
    params = make_params(kparam, Cin, CHANNELS)

    box, feat, feat_traj = jax.block_until_ready(
        pointnet_forward(x, params, CHANNELS))

    box_r, feat_r, traj_r = pointnet_reference(x, params)
    assert box.shape == (B, 7) and feat.shape == (B, CHANNELS) and feat_traj.shape == (B, 512, N)
    np.testing.assert_allclose(np.asarray(box), np.asarray(box_r), rtol=2e-2, atol=2e-2)
    np.testing.assert_allclose(np.asarray(feat), np.asarray(feat_r), rtol=2e-2, atol=2e-2)
    np.testing.assert_allclose(np.asarray(feat_traj.astype(jnp.float32)),
                               np.asarray(traj_r), rtol=2e-2, atol=2e-2)

    print("KERNEL_OK")
</pallas_src>

<mosaic_0001>
module attributes {stable_mosaic.version = 11 : i64} {
  func.func @kernel(%arg0: i32, %arg1: i32, %arg2: memref<1x4x128xf32, #tpu.memory_space<vmem>>, %arg3: memref<64x4xf32, #tpu.memory_space<vmem>>, %arg4: memref<64x1xf32, #tpu.memory_space<vmem>>, %arg5: memref<128x64xbf16, #tpu.memory_space<vmem>>, %arg6: memref<128x1xf32, #tpu.memory_space<vmem>>, %arg7: memref<256x128xbf16, #tpu.memory_space<vmem>>, %arg8: memref<256x1xf32, #tpu.memory_space<vmem>>, %arg9: memref<512x256xbf16, #tpu.memory_space<vmem>>, %arg10: memref<512x1xf32, #tpu.memory_space<vmem>>, %arg11: memref<256x512xf32, #tpu.memory_space<vmem>>, %arg12: memref<256x1xf32, #tpu.memory_space<vmem>>, %arg13: memref<32x256xf32, #tpu.memory_space<vmem>>, %arg14: memref<32x1xf32, #tpu.memory_space<vmem>>, %arg15: memref<768x32xf32, #tpu.memory_space<vmem>>, %arg16: memref<768x1xf32, #tpu.memory_space<vmem>>, %arg17: memref<8x768xf32, #tpu.memory_space<vmem>>, %arg18: memref<1x512x128xbf16, #tpu.memory_space<vmem>>, %arg19: memref<1x8x1xf32, #tpu.memory_space<vmem>>, %arg20: memref<1x32x1xf32, #tpu.memory_space<vmem>>, %arg21: memref<512x1xf32, #tpu.memory_space<vmem>>) attributes {dimension_semantics = [#tpu.dimension_semantics<parallel>, #tpu.dimension_semantics<arbitrary>], iteration_bounds = array<i64: 2, 1>, scalar_prefetch = 0 : i64, scratch_operands = 1 : i64, tpu.core_type = #tpu.core_type<tc>, window_params = [{transform_indices = @transform_0, window_bounds = array<i64: 1, 4, 128>}, {pipeline_mode = #tpu.pipeline_mode<synchronous>, transform_indices = @transform_1, window_bounds = array<i64: 64, 4>}, {pipeline_mode = #tpu.pipeline_mode<synchronous>, transform_indices = @transform_2, window_bounds = array<i64: 64, 1>}, {pipeline_mode = #tpu.pipeline_mode<synchronous>, transform_indices = @transform_3, window_bounds = array<i64: 128, 64>}, {pipeline_mode = #tpu.pipeline_mode<synchronous>, transform_indices = @transform_4, window_bounds = array<i64: 128, 1>}, {pipeline_mode = #tpu.pipeline_mode<synchronous>, transform_indices = @transform_5, window_bounds = array<i64: 256, 128>}, {pipeline_mode = #tpu.pipeline_mode<synchronous>, transform_indices = @transform_6, window_bounds = array<i64: 256, 1>}, {pipeline_mode = #tpu.pipeline_mode<synchronous>, transform_indices = @transform_7, window_bounds = array<i64: 512, 256>}, {pipeline_mode = #tpu.pipeline_mode<synchronous>, transform_indices = @transform_8, window_bounds = array<i64: 512, 1>}, {pipeline_mode = #tpu.pipeline_mode<synchronous>, transform_indices = @transform_9, window_bounds = array<i64: 256, 512>}, {pipeline_mode = #tpu.pipeline_mode<synchronous>, transform_indices = @transform_10, window_bounds = array<i64: 256, 1>}, {pipeline_mode = #tpu.pipeline_mode<synchronous>, transform_indices = @transform_11, window_bounds = array<i64: 32, 256>}, {pipeline_mode = #tpu.pipeline_mode<synchronous>, transform_indices = @transform_12, window_bounds = array<i64: 32, 1>}, {pipeline_mode = #tpu.pipeline_mode<synchronous>, transform_indices = @transform_13, window_bounds = array<i64: 768, 32>}, {pipeline_mode = #tpu.pipeline_mode<synchronous>, transform_indices = @transform_14, window_bounds = array<i64: 768, 1>}, {pipeline_mode = #tpu.pipeline_mode<synchronous>, transform_indices = @transform_15, window_bounds = array<i64: 8, 768>}, {transform_indices = @transform_16, window_bounds = array<i64: 1, 512, 128>}, {transform_indices = @transform_17, window_bounds = array<i64: 1, 8, 1>}, {transform_indices = @transform_18, window_bounds = array<i64: 1, 32, 1>}]} {
    %c0 = arith.constant 0 : index
    %c0_0 = arith.constant 0 : index
    %c0_1 = arith.constant 0 : index
    %0 = vector.load %arg2[%c0, %c0_0, %c0_1] : memref<1x4x128xf32, #tpu.memory_space<vmem>>, vector<1x4x128xf32>
    %1 = vector.shape_cast %0 : vector<1x4x128xf32> to vector<4x128xf32>
    %c0_2 = arith.constant 0 : index
    %c0_3 = arith.constant 0 : index
    %2 = vector.load %arg3[%c0_2, %c0_3] : memref<64x4xf32, #tpu.memory_space<vmem>>, vector<64x4xf32>
    %3 = vector.extract_strided_slice %2 {offsets = [0, 0], sizes = [64, 1], strides = [1, 1]} : vector<64x4xf32> to vector<64x1xf32>
    %4 = vector.extract_strided_slice %1 {offsets = [0, 0], sizes = [1, 128], strides = [1, 1]} : vector<4x128xf32> to vector<1x128xf32>
    %5 = vector.broadcast %3 : vector<64x1xf32> to vector<64x128xf32>
    %6 = vector.broadcast %4 : vector<1x128xf32> to vector<64x128xf32>
    %7 = arith.mulf %5, %6 : vector<64x128xf32>
    %c0_4 = arith.constant 0 : index
    %c0_5 = arith.constant 0 : index
    %8 = vector.load %arg4[%c0_4, %c0_5] : memref<64x1xf32, #tpu.memory_space<vmem>>, vector<64x1xf32>
    %9 = vector.broadcast %8 : vector<64x1xf32> to vector<64x128xf32>
    %10 = arith.addf %7, %9 : vector<64x128xf32>
    %11 = vector.extract_strided_slice %2 {offsets = [0, 1], sizes = [64, 1], strides = [1, 1]} : vector<64x4xf32> to vector<64x1xf32>
    %12 = vector.extract_strided_slice %1 {offsets = [1, 0], sizes = [1, 128], strides = [1, 1]} : vector<4x128xf32> to vector<1x128xf32>
    %13 = vector.broadcast %11 : vector<64x1xf32> to vector<64x128xf32>
    %14 = vector.broadcast %12 : vector<1x128xf32> to vector<64x128xf32>
    %15 = arith.mulf %13, %14 : vector<64x128xf32>
    %16 = arith.addf %10, %15 : vector<64x128xf32>
    %17 = vector.extract_strided_slice %2 {offsets = [0, 2], sizes = [64, 1], strides = [1, 1]} : vector<64x4xf32> to vector<64x1xf32>
    %18 = vector.extract_strided_slice %1 {offsets = [2, 0], sizes = [1, 128], strides = [1, 1]} : vector<4x128xf32> to vector<1x128xf32>
    %19 = vector.broadcast %17 : vector<64x1xf32> to vector<64x128xf32>
    %20 = vector.broadcast %18 : vector<1x128xf32> to vector<64x128xf32>
    %21 = arith.mulf %19, %20 : vector<64x128xf32>
    %22 = arith.addf %16, %21 : vector<64x128xf32>
    %23 = vector.extract_strided_slice %2 {offsets = [0, 3], sizes = [64, 1], strides = [1, 1]} : vector<64x4xf32> to vector<64x1xf32>
    %24 = vector.extract_strided_slice %1 {offsets = [3, 0], sizes = [1, 128], strides = [1, 1]} : vector<4x128xf32> to vector<1x128xf32>
    %25 = vector.broadcast %23 : vector<64x1xf32> to vector<64x128xf32>
    %26 = vector.broadcast %24 : vector<1x128xf32> to vector<64x128xf32>
    %27 = arith.mulf %25, %26 : vector<64x128xf32>
    %28 = arith.addf %22, %27 : vector<64x128xf32>
    %cst = arith.constant 0.000000e+00 : f32
    %29 = vector.broadcast %cst : f32 to vector<64x128xf32>
    %30 = arith.maximumf %28, %29 : vector<64x128xf32>
    %31 = arith.truncf %30 : vector<64x128xf32> to vector<64x128xbf16>
    %c0_6 = arith.constant 0 : index
    %c0_7 = arith.constant 0 : index
    %32 = vector.load %arg5[%c0_6, %c0_7] : memref<128x64xbf16, #tpu.memory_space<vmem>>, vector<128x64xbf16>
    %cst_8 = arith.constant dense<0.000000e+00> : vector<128x128xf32>
    %33 = tpu.matmul %32, %31, %cst_8 {dimension_numbers = #tpu.dot_dimension_numbers<[1], [0], [0], [1], [0, 0, 1, 1], [], []>} : vector<128x64xbf16>, vector<64x128xbf16>, vector<128x128xf32> -> vector<128x128xf32>
    %c0_9 = arith.constant 0 : index
    %c0_10 = arith.constant 0 : index
    %34 = vector.load %arg6[%c0_9, %c0_10] : memref<128x1xf32, #tpu.memory_space<vmem>>, vector<128x1xf32>
    %35 = vector.broadcast %34 : vector<128x1xf32> to vector<128x128xf32>
    %36 = arith.addf %33, %35 : vector<128x128xf32>
    %cst_11 = arith.constant 0.000000e+00 : f32
    %37 = vector.broadcast %cst_11 : f32 to vector<128x128xf32>
    %38 = arith.maximumf %36, %37 : vector<128x128xf32>
    %39 = arith.truncf %38 : vector<128x128xf32> to vector<128x128xbf16>
    %c0_12 = arith.constant 0 : index
    %c0_13 = arith.constant 0 : index
    %40 = vector.load %arg7[%c0_12, %c0_13] : memref<256x128xbf16, #tpu.memory_space<vmem>>, vector<256x128xbf16>
    %cst_14 = arith.constant dense<0.000000e+00> : vector<256x128xf32>
    %41 = tpu.matmul %40, %39, %cst_14 {dimension_numbers = #tpu.dot_dimension_numbers<[1], [0], [0], [1], [0, 0, 1, 1], [], []>} : vector<256x128xbf16>, vector<128x128xbf16>, vector<256x128xf32> -> vector<256x128xf32>
    %c0_15 = arith.constant 0 : index
    %c0_16 = arith.constant 0 : index
    %42 = vector.load %arg8[%c0_15, %c0_16] : memref<256x1xf32, #tpu.memory_space<vmem>>, vector<256x1xf32>
    %43 = vector.broadcast %42 : vector<256x1xf32> to vector<256x128xf32>
    %44 = arith.addf %41, %43 : vector<256x128xf32>
    %cst_17 = arith.constant 0.000000e+00 : f32
    %45 = vector.broadcast %cst_17 : f32 to vector<256x128xf32>
    %46 = arith.maximumf %44, %45 : vector<256x128xf32>
    %47 = arith.truncf %46 : vector<256x128xf32> to vector<256x128xbf16>
    %c0_18 = arith.constant 0 : index
    %c0_19 = arith.constant 0 : index
    %48 = vector.load %arg9[%c0_18, %c0_19] : memref<512x256xbf16, #tpu.memory_space<vmem>>, vector<512x256xbf16>
    %cst_20 = arith.constant dense<0.000000e+00> : vector<512x128xf32>
    %49 = tpu.matmul %48, %47, %cst_20 {dimension_numbers = #tpu.dot_dimension_numbers<[1], [0], [0], [1], [0, 0, 1, 1], [], []>} : vector<512x256xbf16>, vector<256x128xbf16>, vector<512x128xf32> -> vector<512x128xf32>
    %c0_21 = arith.constant 0 : index
    %c0_22 = arith.constant 0 : index
    %50 = vector.load %arg10[%c0_21, %c0_22] : memref<512x1xf32, #tpu.memory_space<vmem>>, vector<512x1xf32>
    %51 = vector.broadcast %50 : vector<512x1xf32> to vector<512x128xf32>
    %52 = arith.addf %49, %51 : vector<512x128xf32>
    %53 = arith.truncf %52 : vector<512x128xf32> to vector<512x128xbf16>
    %c0_23 = arith.constant 0 : index
    %c0_24 = arith.constant 0 : index
    %c0_25 = arith.constant 0 : index
    %54 = vector.load %arg18[%c0_23, %c0_24, %c0_25] : memref<1x512x128xbf16, #tpu.memory_space<vmem>>, vector<1x512x128xbf16>
    %55 = vector.shape_cast %54 : vector<1x512x128xbf16> to vector<512x128xbf16>
    %56 = vector.shape_cast %53 : vector<512x128xbf16> to vector<1x512x128xbf16>
    tpu.vector_store %arg18[%c0_23, %c0_24, %c0_25], %56 {strides = array<i32>} : memref<1x512x128xbf16, #tpu.memory_space<vmem>>, vector<1x512x128xbf16>,
    %57 = tpu.iota {dimensions = array<i32: 1>} : vector<1x128xi32>
    %c128_i32 = arith.constant 128 : i32
    %58 = arith.muli %arg1, %c128_i32 : i32
    %59 = vector.broadcast %58 : i32 to vector<1x128xi32>
    %60 = arith.addi %59, %57 : vector<1x128xi32>
    %c16_i32 = arith.constant 16 : i32
    %61 = vector.broadcast %c16_i32 : i32 to vector<1x128xi32>
    %62 = arith.cmpi slt, %60, %61 : vector<1x128xi32>
    %cst_26 = arith.constant 0xFF800000 : f32
    %63 = vector.shape_cast %62 : vector<1x128xi1> to vector<1x128xi1>
    %64 = vector.broadcast %63 : vector<1x128xi1> to vector<512x128xi1>
    %65 = vector.broadcast %cst_26 : f32 to vector<512x128xf32>
    %66 = arith.select %64, %52, %65 : vector<512x128xi1>, vector<512x128xf32>
    %cst_27 = arith.constant dense<0xFF800000> : vector<512xf32>
    %67 = vector.multi_reduction <maximumf>, %66, %cst_27 [1] : vector<512x128xf32> to vector<512xf32>
    %68 = vector.shape_cast %67 : vector<512xf32> to vector<512x1xf32>
    %c0_i32 = arith.constant 0 : i32
    %69 = arith.cmpi eq, %arg1, %c0_i32 : i32
    %70 = arith.extui %69 : i1 to i32
    %c0_i32_28 = arith.constant 0 : i32
    %71 = arith.cmpi ne, %70, %c0_i32_28 : i32
    scf.if %71 {
      %c0_33 = arith.constant 0 : index
      %c0_34 = arith.constant 0 : index
      %78 = vector.load %arg21[%c0_33, %c0_34] : memref<512x1xf32, #tpu.memory_space<vmem>>, vector<512x1xf32>
      tpu.vector_store %arg21[%c0_33, %c0_34], %68 {strides = array<i32>} : memref<512x1xf32, #tpu.memory_space<vmem>>, vector<512x1xf32>,
    } else {
    }
    %c0_i32_29 = arith.constant 0 : i32
    %72 = arith.cmpi sgt, %arg1, %c0_i32_29 : i32
    %73 = arith.extui %72 : i1 to i32
    %c0_i32_30 = arith.constant 0 : i32
    %74 = arith.cmpi ne, %73, %c0_i32_30 : i32
    scf.if %74 {
      %c0_33 = arith.constant 0 : index
      %c0_34 = arith.constant 0 : index
      %78 = vector.load %arg21[%c0_33, %c0_34] : memref<512x1xf32, #tpu.memory_space<vmem>>, vector<512x1xf32>
      %79 = arith.maximumf %78, %68 : vector<512x1xf32>
      %c0_35 = arith.constant 0 : index
      %c0_36 = arith.constant 0 : index
      %80 = vector.load %arg21[%c0_35, %c0_36] : memref<512x1xf32, #tpu.memory_space<vmem>>, vector<512x1xf32>
      tpu.vector_store %arg21[%c0_35, %c0_36], %79 {strides = array<i32>} : memref<512x1xf32, #tpu.memory_space<vmem>>, vector<512x1xf32>,
    } else {
    }
    %c0_i32_31 = arith.constant 0 : i32
    %75 = arith.cmpi eq, %arg1, %c0_i32_31 : i32
    %76 = arith.extui %75 : i1 to i32
    %c0_i32_32 = arith.constant 0 : i32
    %77 = arith.cmpi ne, %76, %c0_i32_32 : i32
    scf.if %77 {
      %c0_33 = arith.constant 0 : index
      %c0_34 = arith.constant 0 : index
      %78 = vector.load %arg21[%c0_33, %c0_34] : memref<512x1xf32, #tpu.memory_space<vmem>>, vector<512x1xf32>
      %c0_35 = arith.constant 0 : index
      %c0_36 = arith.constant 0 : index
      %79 = vector.load %arg11[%c0_35, %c0_36] : memref<256x512xf32, #tpu.memory_space<vmem>>, vector<256x512xf32>
      %cst_37 = arith.constant dense<0.000000e+00> : vector<256x1xf32>
      %80 = tpu.matmul %79, %78, %cst_37 {dimension_numbers = #tpu.dot_dimension_numbers<[1], [0], [0], [1], [0, 0, 1, 1], [], []>} : vector<256x512xf32>, vector<512x1xf32>, vector<256x1xf32> -> vector<256x1xf32>
      %c0_38 = arith.constant 0 : index
      %c0_39 = arith.constant 0 : index
      %81 = vector.load %arg12[%c0_38, %c0_39] : memref<256x1xf32, #tpu.memory_space<vmem>>, vector<256x1xf32>
      %82 = arith.addf %80, %81 : vector<256x1xf32>
      %cst_40 = arith.constant 0.000000e+00 : f32
      %83 = vector.broadcast %cst_40 : f32 to vector<256x1xf32>
      %84 = arith.maximumf %82, %83 : vector<256x1xf32>
      %c0_41 = arith.constant 0 : index
      %c0_42 = arith.constant 0 : index
      %85 = vector.load %arg13[%c0_41, %c0_42] : memref<32x256xf32, #tpu.memory_space<vmem>>, vector<32x256xf32>
      %cst_43 = arith.constant dense<0.000000e+00> : vector<32x1xf32>
      %86 = tpu.matmul %85, %84, %cst_43 {dimension_numbers = #tpu.dot_dimension_numbers<[1], [0], [0], [1], [0, 0, 1, 1], [], []>} : vector<32x256xf32>, vector<256x1xf32>, vector<32x1xf32> -> vector<32x1xf32>
      %c0_44 = arith.constant 0 : index
      %c0_45 = arith.constant 0 : index
      %87 = vector.load %arg14[%c0_44, %c0_45] : memref<32x1xf32, #tpu.memory_space<vmem>>, vector<32x1xf32>
      %88 = arith.addf %86, %87 : vector<32x1xf32>
      %cst_46 = arith.constant 0.000000e+00 : f32
      %89 = vector.broadcast %cst_46 : f32 to vector<32x1xf32>
      %90 = arith.maximumf %88, %89 : vector<32x1xf32>
      %c0_47 = arith.constant 0 : index
      %c0_48 = arith.constant 0 : index
      %c0_49 = arith.constant 0 : index
      %91 = vector.load %arg20[%c0_47, %c0_48, %c0_49] : memref<1x32x1xf32, #tpu.memory_space<vmem>>, vector<1x32x1xf32>
      %92 = vector.shape_cast %91 : vector<1x32x1xf32> to vector<32x1xf32>
      %93 = vector.shape_cast %90 : vector<32x1xf32> to vector<1x32x1xf32>
      tpu.vector_store %arg20[%c0_47, %c0_48, %c0_49], %93 {strides = array<i32>} : memref<1x32x1xf32, #tpu.memory_space<vmem>>, vector<1x32x1xf32>,
      %c0_50 = arith.constant 0 : index
      %c0_51 = arith.constant 0 : index
      %94 = vector.load %arg15[%c0_50, %c0_51] : memref<768x32xf32, #tpu.memory_space<vmem>>, vector<768x32xf32>
      %cst_52 = arith.constant dense<0.000000e+00> : vector<768x1xf32>
      %95 = tpu.matmul %94, %90, %cst_52 {dimension_numbers = #tpu.dot_dimension_numbers<[1], [0], [0], [1], [0, 0, 1, 1], [], []>} : vector<768x32xf32>, vector<32x1xf32>, vector<768x1xf32> -> vector<768x1xf32>
      %c0_53 = arith.constant 0 : index
      %c0_54 = arith.constant 0 : index
      %96 = vector.load %arg16[%c0_53, %c0_54] : memref<768x1xf32, #tpu.memory_space<vmem>>, vector<768x1xf32>
      %97 = arith.addf %95, %96 : vector<768x1xf32>
      %cst_55 = arith.constant 0.000000e+00 : f32
      %98 = vector.broadcast %cst_55 : f32 to vector<768x1xf32>
      %99 = arith.maximumf %97, %98 : vector<768x1xf32>
      %c0_56 = arith.constant 0 : index
      %c0_57 = arith.constant 0 : index
      %100 = vector.load %arg17[%c0_56, %c0_57] : memref<8x768xf32, #tpu.memory_space<vmem>>, vector<8x768xf32>
      %cst_58 = arith.constant dense<0.000000e+00> : vector<8x1xf32>
      %101 = tpu.matmul %100, %99, %cst_58 {dimension_numbers = #tpu.dot_dimension_numbers<[1], [0], [0], [1], [0, 0, 1, 1], [], []>} : vector<8x768xf32>, vector<768x1xf32>, vector<8x1xf32> -> vector<8x1xf32>
      %c0_59 = arith.constant 0 : index
      %c0_60 = arith.constant 0 : index
      %c0_61 = arith.constant 0 : index
      %102 = vector.load %arg19[%c0_59, %c0_60, %c0_61] : memref<1x8x1xf32, #tpu.memory_space<vmem>>, vector<1x8x1xf32>
      %103 = vector.shape_cast %102 : vector<1x8x1xf32> to vector<8x1xf32>
      %104 = vector.shape_cast %101 : vector<8x1xf32> to vector<1x8x1xf32>
      tpu.vector_store %arg19[%c0_59, %c0_60, %c0_61], %104 {strides = array<i32>} : memref<1x8x1xf32, #tpu.memory_space<vmem>>, vector<1x8x1xf32>,
    } else {
    }
    return
  }
  func.func @transform_0(%arg0: i32, %arg1: i32) -> (i32, i32, i32) {
    %c0_i32 = arith.constant 0 : i32
    %c0_i32_0 = arith.constant 0 : i32
    return %arg0, %c0_i32, %arg1 : i32, i32, i32
  }
  func.func @transform_1(%arg0: i32, %arg1: i32) -> (i32, i32) {
    %c0_i32 = arith.constant 0 : i32
    %c0_i32_0 = arith.constant 0 : i32
    %c0_i32_1 = arith.constant 0 : i32
    return %c0_i32, %c0_i32_0 : i32, i32
  }
  func.func @transform_2(%arg0: i32, %arg1: i32) -> (i32, i32) {
    %c0_i32 = arith.constant 0 : i32
    %c0_i32_0 = arith.constant 0 : i32
    %c0_i32_1 = arith.constant 0 : i32
    return %c0_i32, %c0_i32_0 : i32, i32
  }
  func.func @transform_3(%arg0: i32, %arg1: i32) -> (i32, i32) {
    %c0_i32 = arith.constant 0 : i32
    %c0_i32_0 = arith.constant 0 : i32
    %c0_i32_1 = arith.constant 0 : i32
    return %c0_i32, %c0_i32_0 : i32, i32
  }
  func.func @transform_4(%arg0: i32, %arg1: i32) -> (i32, i32) {
    %c0_i32 = arith.constant 0 : i32
    %c0_i32_0 = arith.constant 0 : i32
    %c0_i32_1 = arith.constant 0 : i32
    return %c0_i32, %c0_i32_0 : i32, i32
  }
  func.func @transform_5(%arg0: i32, %arg1: i32) -> (i32, i32) {
    %c0_i32 = arith.constant 0 : i32
    %c0_i32_0 = arith.constant 0 : i32
    %c0_i32_1 = arith.constant 0 : i32
    return %c0_i32, %c0_i32_0 : i32, i32
  }
  func.func @transform_6(%arg0: i32, %arg1: i32) -> (i32, i32) {
    %c0_i32 = arith.constant 0 : i32
    %c0_i32_0 = arith.constant 0 : i32
    %c0_i32_1 = arith.constant 0 : i32
    return %c0_i32, %c0_i32_0 : i32, i32
  }
  func.func @transform_7(%arg0: i32, %arg1: i32) -> (i32, i32) {
    %c0_i32 = arith.constant 0 : i32
    %c0_i32_0 = arith.constant 0 : i32
    %c0_i32_1 = arith.constant 0 : i32
    return %c0_i32, %c0_i32_0 : i32, i32
  }
  func.func @transform_8(%arg0: i32, %arg1: i32) -> (i32, i32) {
    %c0_i32 = arith.constant 0 : i32
    %c0_i32_0 = arith.constant 0 : i32
    %c0_i32_1 = arith.constant 0 : i32
    return %c0_i32, %c0_i32_0 : i32, i32
  }
  func.func @transform_9(%arg0: i32, %arg1: i32) -> (i32, i32) {
    %c0_i32 = arith.constant 0 : i32
    %c0_i32_0 = arith.constant 0 : i32
    %c0_i32_1 = arith.constant 0 : i32
    return %c0_i32, %c0_i32_0 : i32, i32
  }
  func.func @transform_10(%arg0: i32, %arg1: i32) -> (i32, i32) {
    %c0_i32 = arith.constant 0 : i32
    %c0_i32_0 = arith.constant 0 : i32
    %c0_i32_1 = arith.constant 0 : i32
    return %c0_i32, %c0_i32_0 : i32, i32
  }
  func.func @transform_11(%arg0: i32, %arg1: i32) -> (i32, i32) {
    %c0_i32 = arith.constant 0 : i32
    %c0_i32_0 = arith.constant 0 : i32
    %c0_i32_1 = arith.constant 0 : i32
    return %c0_i32, %c0_i32_0 : i32, i32
  }
  func.func @transform_12(%arg0: i32, %arg1: i32) -> (i32, i32) {
    %c0_i32 = arith.constant 0 : i32
    %c0_i32_0 = arith.constant 0 : i32
    %c0_i32_1 = arith.constant 0 : i32
    return %c0_i32, %c0_i32_0 : i32, i32
  }
  func.func @transform_13(%arg0: i32, %arg1: i32) -> (i32, i32) {
    %c0_i32 = arith.constant 0 : i32
    %c0_i32_0 = arith.constant 0 : i32
    %c0_i32_1 = arith.constant 0 : i32
    return %c0_i32, %c0_i32_0 : i32, i32
  }
  func.func @transform_14(%arg0: i32, %arg1: i32) -> (i32, i32) {
    %c0_i32 = arith.constant 0 : i32
    %c0_i32_0 = arith.constant 0 : i32
    %c0_i32_1 = arith.constant 0 : i32
    return %c0_i32, %c0_i32_0 : i32, i32
  }
  func.func @transform_15(%arg0: i32, %arg1: i32) -> (i32, i32) {
    %c0_i32 = arith.constant 0 : i32
    %c0_i32_0 = arith.constant 0 : i32
    %c0_i32_1 = arith.constant 0 : i32
    return %c0_i32, %c0_i32_0 : i32, i32
  }
  func.func @transform_16(%arg0: i32, %arg1: i32) -> (i32, i32, i32) {
    %c0_i32 = arith.constant 0 : i32
    %c0_i32_0 = arith.constant 0 : i32
    return %arg0, %c0_i32, %arg1 : i32, i32, i32
  }
  func.func @transform_17(%arg0: i32, %arg1: i32) -> (i32, i32, i32) {
    %c0_i32 = arith.constant 0 : i32
    %c0_i32_0 = arith.constant 0 : i32
    %c0_i32_1 = arith.constant 0 : i32
    return %arg0, %c0_i32, %c0_i32_0 : i32, i32, i32
  }
  func.func @transform_18(%arg0: i32, %arg1: i32) -> (i32, i32, i32) {
    %c0_i32 = arith.constant 0 : i32
    %c0_i32_0 = arith.constant 0 : i32
    %c0_i32_1 = arith.constant 0 : i32
    return %arg0, %c0_i32, %c0_i32_0 : i32, i32, i32
  }
}

</mosaic_0001>

<llo_original>
// kernel: tpu_custom_call.1
$region0: #{tpu_custom_call.1}
  #allocation0 [shape = 'u32[]', space=smem, size = 0x4, offset = 0x4, fixed_abs, tag = 'smem constant byte address 0x4 - core index']
  #allocation1 [shape = 'u32[72,128]{1,0:T(1,128)}', space=vmem, size = 0x9000, scoped, tag = 'internal scratch']
  #allocation2 [shape = 'f32[512,1]{1,0:T(8,128)}', space=vmem, size = 0x40000, scoped, tag = 'scratch operand']
  %s0 = inlined_call_operand.vmem [shape: f32[2,4,128], index: 0, kind: input, shape index: {}]
  %s1 = inlined_call_operand.vmem [shape: f32[64,4], index: 1, kind: input, shape index: {}]
  %s2 = inlined_call_operand.vmem [shape: f32[64,1], index: 2, kind: input, shape index: {}]
  %s3 = inlined_call_operand.vmem [shape: bf16[128,64], index: 3, kind: input, shape index: {}]
  %s4 = inlined_call_operand.vmem [shape: f32[128,1], index: 4, kind: input, shape index: {}]
  %s5 = inlined_call_operand.vmem [shape: bf16[256,128], index: 5, kind: input, shape index: {}]
  %s6 = inlined_call_operand.vmem [shape: f32[256,1], index: 6, kind: input, shape index: {}]
  %s7 = inlined_call_operand.vmem [shape: bf16[512,256], index: 7, kind: input, shape index: {}]
  %s8 = inlined_call_operand.vmem [shape: f32[512,1], index: 8, kind: input, shape index: {}]
  %s9 = inlined_call_operand.vmem [shape: f32[256,512], index: 9, kind: input, shape index: {}]
  %s10 = inlined_call_operand.vmem [shape: f32[256,1], index: 10, kind: input, shape index: {}]
  %s11 = inlined_call_operand.vmem [shape: f32[32,256], index: 11, kind: input, shape index: {}]
  %s12 = inlined_call_operand.vmem [shape: f32[32,1], index: 12, kind: input, shape index: {}]
  %s13 = inlined_call_operand.vmem [shape: f32[768,32], index: 13, kind: input, shape index: {}]
  %s14 = inlined_call_operand.vmem [shape: f32[768,1], index: 14, kind: input, shape index: {}]
  %s15 = inlined_call_operand.vmem [shape: f32[8,768], index: 15, kind: input, shape index: {}]
  %s16 = inlined_call_operand.hbm [shape: bf16[2,512,128], index: 16, kind: output, shape index: {0}]
  %s17 = inlined_call_operand.vmem [shape: f32[2,8,1], index: 17, kind: output, shape index: {1}]
  %s18 = inlined_call_operand.vmem [shape: f32[2,32,1], index: 18, kind: output, shape index: {2}]
  %19 = xla_tuple %s16, %s17, %s18
  %s20 = sld [smem:[#allocation0]]
  $region125: #{tpu_custom_call.1} parent=0
    _
  %s22 = ssub.s32 1, %s20
  %s23 = scalar_select 0, %s22, %s20
  $region1: #{tpu_custom_call.1} parent=0
    #allocation3 [shape = 'u8[262144]{0}', space=vmem, size = 0x40000, scoped, tag = 'output window, operand 0']
    #allocation4 [shape = 's32[2]{0}', space=sflag, size = 0x8, scoped, tag = 'scoped memory for tpu_custom_call.1']
    %24 = vsyncpa [#allocation4], 0
    %s25 = scalar_lea.sflag [#allocation4], 1
    %26 = vsyncpa %s25, 0
    loop: start=0, step=1, limit=4
    $region2: #{tpu_custom_call.1} parent=1 // loop_pre_header
      _
    $region3: #{tpu_custom_call.1} parent=1 // loop_header
      %s28 = sphi 0, %s32
      %p29 = scmp.ge.s32.totalorder %s28, 4
      %s35 = sphi 0, %s47
      %s36 = sphi 0, %s43
      %s37 = sphi 0, %s35
      %s38 = sphi 0, %s36
      %s39 = sphi 0, %s37
      %s40 = sphi 0, %s38
      %s52 = sphi 0, %s54
      %s55 = sphi 0, %s52
      %s56 = sphi 0, %s55
      %s72 = sphi 0, %s56
      %s76 = sphi 0, %s76
      %s78 = sphi 0, %s76
      %s79 = sphi 0, %s78
      %s93 = sphi 0, %s79
      %s97 = sphi 0, %s97
      %s99 = sphi 0, %s97
      %s100 = sphi 0, %s99
      %s114 = sphi 0, %s100
      %s118 = sphi 0, %s118
      %s120 = sphi 0, %s118
      %s121 = sphi 0, %s120
      %s135 = sphi 0, %s121
      %s139 = sphi 0, %s139
      %s141 = sphi 0, %s139
      %s142 = sphi 0, %s141
      %s156 = sphi 0, %s142
      %s160 = sphi 0, %s160
      %s162 = sphi 0, %s160
      %s163 = sphi 0, %s162
      %s177 = sphi 0, %s163
      %s181 = sphi 0, %s181
      %s183 = sphi 0, %s181
      %s184 = sphi 0, %s183
      %s198 = sphi 0, %s184
      %s202 = sphi 0, %s202
      %s204 = sphi 0, %s202
      %s205 = sphi 0, %s204
      %s219 = sphi 0, %s205
      %s223 = sphi 0, %s223
      %s225 = sphi 0, %s223
      %s226 = sphi 0, %s225
      %s240 = sphi 0, %s226
      %s244 = sphi 0, %s244
      %s246 = sphi 0, %s244
      %s247 = sphi 0, %s246
      %s261 = sphi 0, %s247
      %s265 = sphi 0, %s265
      %s267 = sphi 0, %s265
      %s268 = sphi 0, %s267
      %s282 = sphi 0, %s268
      %s286 = sphi 0, %s286
      %s288 = sphi 0, %s286
      %s289 = sphi 0, %s288
      %s303 = sphi 0, %s289
      %s307 = sphi 0, %s307
      %s309 = sphi 0, %s307
      %s310 = sphi 0, %s309
      %s324 = sphi 0, %s310
      %s328 = sphi 0, %s328
      %s330 = sphi 0, %s328
      %s331 = sphi 0, %s330
      %s345 = sphi 0, %s331
      %s349 = sphi 0, %s349
      %s351 = sphi 0, %s349
      %s352 = sphi 0, %s351
      %s366 = sphi 0, %s352
      %s370 = sphi 0, %s370
      %s372 = sphi 0, %s370
      %s373 = sphi 0, %s372
      %s387 = sphi 0, %s373
      %s395 = sphi 0, %s397
      %s398 = sphi 0, %s395
      %s399 = sphi 0, %s398
      %s415 = sphi 0, %s399
      %s421 = sphi 0, %s423
      %s424 = sphi 0, %s421
      %s425 = sphi 0, %s424
      %s441 = sphi 0, %s425
      %s447 = sphi 0, %s449
      %s450 = sphi 0, %s447
      %s451 = sphi 0, %s450
      %s467 = sphi 0, %s451
    $region4: #{tpu_custom_call.1} parent=1 // loop_header_branch
      %31 = sbr.rel (%p29) target = $region8
    $region5: #{tpu_custom_call.1} parent=1 // loop_body
      %s33 = ssub.s32 %s28, 1
      %s34 = ssub.s32 %s28, 2
      %s41 = sadd.s32 1, %s36
      %p42 = scmp.ge.s32.totalorder %s41, 1
      %s43 = scalar_select %p42, 0, %s41
      %s44 = sadd.s32 1, %s35
      %s45 = scalar_select %p42, %s44, %s35
      %p46 = scmp.ge.s32.totalorder %s45, 2
      %s47 = scalar_select %p46, 0, %s45
      %s48 = ssub.s32 %s35, %s47
      %s49 = ssub.s32 %s36, %s43
      %s50 = sor.u32 %s48, %s49
      %p51 = scmp.eq.s32.totalorder %s50, 0
      %s53 = sadd.s32 %s52, 1
      %s54 = scalar_select %p51, %s52, %s53
      %p57 = pneg %p51
      %p58 = scmp.eq.s32.totalorder %s28, 1
      %p59 = por %p57, %p58
      %p60 = scmp.ne.s32.totalorder %s52, %s55
      %p61 = scmp.eq.s32.totalorder %s28, 0
      %p62 = por %p60, %p61
      %p63 = scmp.ne.s32.totalorder %s52, %s55
      %p64 = scmp.eq.s32.totalorder %s33, 1
      %p65 = por %p63, %p64
      %p66 = scmp.ne.s32.totalorder %s55, %s56
      %p67 = scmp.eq.s32.totalorder %s33, 0
      %p68 = por %p66, %p67
      %p69 = scmp.ne.s32.totalorder %s55, %s56
      %p70 = scmp.eq.s32.totalorder %s34, 1
      %p71 = por %p69, %p70
      %p73 = scmp.ne.s32.totalorder %s56, %s72
      %p74 = scmp.eq.s32.totalorder %s34, 0
      %p75 = por %p73, %p74
      %s77 = sadd.s32 %s76, 1
      %p80 = scmp.eq.s32.totalorder %s28, 1
      %p81 = scmp.ne.s32.totalorder %s76, %s78
      %p82 = scmp.eq.s32.totalorder %s28, 0
      %p83 = por %p81, %p82
      %p84 = scmp.ne.s32.totalorder %s76, %s78
      %p85 = scmp.eq.s32.totalorder %s33, 1
      %p86 = por %p84, %p85
      %p87 = scmp.ne.s32.totalorder %s78, %s79
      %p88 = scmp.eq.s32.totalorder %s33, 0
      %p89 = por %p87, %p88
      %p90 = scmp.ne.s32.totalorder %s78, %s79
      %p91 = scmp.eq.s32.totalorder %s34, 1
      %p92 = por %p90, %p91
      %p94 = scmp.ne.s32.totalorder %s79, %s93
      %p95 = scmp.eq.s32.totalorder %s34, 0
      %p96 = por %p94, %p95
      %s98 = sadd.s32 %s97, 1
      %p101 = scmp.eq.s32.totalorder %s28, 1
      %p102 = scmp.ne.s32.totalorder %s97, %s99
      %p103 = scmp.eq.s32.totalorder %s28, 0
      %p104 = por %p102, %p103
      %p105 = scmp.ne.s32.totalorder %s97, %s99
      %p106 = scmp.eq.s32.totalorder %s33, 1
      %p107 = por %p105, %p106
      %p108 = scmp.ne.s32.totalorder %s99, %s100
      %p109 = scmp.eq.s32.totalorder %s33, 0
      %p110 = por %p108, %p109
      %p111 = scmp.ne.s32.totalorder %s99, %s100
      %p112 = scmp.eq.s32.totalorder %s34, 1
      %p113 = por %p111, %p112
      %p115 = scmp.ne.s32.totalorder %s100, %s114
      %p116 = scmp.eq.s32.totalorder %s34, 0
      %p117 = por %p115, %p116
      %s119 = sadd.s32 %s118, 1
      %p122 = scmp.eq.s32.totalorder %s28, 1
      %p123 = scmp.ne.s32.totalorder %s118, %s120
      %p124 = scmp.eq.s32.totalorder %s28, 0
      %p125 = por %p123, %p124
      %p126 = scmp.ne.s32.totalorder %s118, %s120
      %p127 = scmp.eq.s32.totalorder %s33, 1
      %p128 = por %p126, %p127
      %p129 = scmp.ne.s32.totalorder %s120, %s121
      %p130 = scmp.eq.s32.totalorder %s33, 0
      %p131 = por %p129, %p130
      %p132 = scmp.ne.s32.totalorder %s120, %s121
      %p133 = scmp.eq.s32.totalorder %s34, 1
      %p134 = por %p132, %p133
      %p136 = scmp.ne.s32.totalorder %s121, %s135
      %p137 = scmp.eq.s32.totalorder %s34, 0
      %p138 = por %p136, %p137
      %s140 = sadd.s32 %s139, 1
      %p143 = scmp.eq.s32.totalorder %s28, 1
      %p144 = scmp.ne.s32.totalorder %s139, %s141
      %p145 = scmp.eq.s32.totalorder %s28, 0
      %p146 = por %p144, %p145
      %p147 = scmp.ne.s32.totalorder %s139, %s141
      %p148 = scmp.eq.s32.totalorder %s33, 1
      %p149 = por %p147, %p148
      %p150 = scmp.ne.s32.totalorder %s141, %s142
      %p151 = scmp.eq.s32.totalorder %s33, 0
      %p152 = por %p150, %p151
      %p153 = scmp.ne.s32.totalorder %s141, %s142
      %p154 = scmp.eq.s32.totalorder %s34, 1
      %p155 = por %p153, %p154
      %p157 = scmp.ne.s32.totalorder %s142, %s156
      %p158 = scmp.eq.s32.totalorder %s34, 0
      %p159 = por %p157, %p158
      %s161 = sadd.s32 %s160, 1
      %p164 = scmp.eq.s32.totalorder %s28, 1
      %p165 = scmp.ne.s32.totalorder %s160, %s162
      %p166 = scmp.eq.s32.totalorder %s28, 0
      %p167 = por %p165, %p166
      %p168 = scmp.ne.s32.totalorder %s160, %s162
      %p169 = scmp.eq.s32.totalorder %s33, 1
      %p170 = por %p168, %p169
      %p171 = scmp.ne.s32.totalorder %s162, %s163
      %p172 = scmp.eq.s32.totalorder %s33, 0
      %p173 = por %p171, %p172
      %p174 = scmp.ne.s32.totalorder %s162, %s163
      %p175 = scmp.eq.s32.totalorder %s34, 1
      %p176 = por %p174, %p175
      %p178 = scmp.ne.s32.totalorder %s163, %s177
      %p179 = scmp.eq.s32.totalorder %s34, 0
      %p180 = por %p178, %p179
      %s182 = sadd.s32 %s181, 1
      %p185 = scmp.eq.s32.totalorder %s28, 1
      %p186 = scmp.ne.s32.totalorder %s181, %s183
      %p187 = scmp.eq.s32.totalorder %s28, 0
      %p188 = por %p186, %p187
      %p189 = scmp.ne.s32.totalorder %s181, %s183
      %p190 = scmp.eq.s32.totalorder %s33, 1
      %p191 = por %p189, %p190
      %p192 = scmp.ne.s32.totalorder %s183, %s184
      %p193 = scmp.eq.s32.totalorder %s33, 0
      %p194 = por %p192, %p193
      %p195 = scmp.ne.s32.totalorder %s183, %s184
      %p196 = scmp.eq.s32.totalorder %s34, 1
      %p197 = por %p195, %p196
      %p199 = scmp.ne.s32.totalorder %s184, %s198
      %p200 = scmp.eq.s32.totalorder %s34, 0
      %p201 = por %p199, %p200
      %s203 = sadd.s32 %s202, 1
      %p206 = scmp.eq.s32.totalorder %s28, 1
      %p207 = scmp.ne.s32.totalorder %s202, %s204
      %p208 = scmp.eq.s32.totalorder %s28, 0
      %p209 = por %p207, %p208
      %p210 = scmp.ne.s32.totalorder %s202, %s204
      %p211 = scmp.eq.s32.totalorder %s33, 1
      %p212 = por %p210, %p211
      %p213 = scmp.ne.s32.totalorder %s204, %s205
      %p214 = scmp.eq.s32.totalorder %s33, 0
      %p215 = por %p213, %p214
      %p216 = scmp.ne.s32.totalorder %s204, %s205
      %p217 = scmp.eq.s32.totalorder %s34, 1
      %p218 = por %p216, %p217
      %p220 = scmp.ne.s32.totalorder %s205, %s219
      %p221 = scmp.eq.s32.totalorder %s34, 0
      %p222 = por %p220, %p221
      %s224 = sadd.s32 %s223, 1
      %p227 = scmp.eq.s32.totalorder %s28, 1
      %p228 = scmp.ne.s32.totalorder %s223, %s225
      %p229 = scmp.eq.s32.totalorder %s28, 0
      %p230 = por %p228, %p229
      %p231 = scmp.ne.s32.totalorder %s223, %s225
      %p232 = scmp.eq.s32.totalorder %s33, 1
      %p233 = por %p231, %p232
      %p234 = scmp.ne.s32.totalorder %s225, %s226
      %p235 = scmp.eq.s32.totalorder %s33, 0
      %p236 = por %p234, %p235
      %p237 = scmp.ne.s32.totalorder %s225, %s226
      %p238 = scmp.eq.s32.totalorder %s34, 1
      %p239 = por %p237, %p238
      %p241 = scmp.ne.s32.totalorder %s226, %s240
      %p242 = scmp.eq.s32.totalorder %s34, 0
      %p243 = por %p241, %p242
      %s245 = sadd.s32 %s244, 1
      %p248 = scmp.eq.s32.totalorder %s28, 1
      %p249 = scmp.ne.s32.totalorder %s244, %s246
      %p250 = scmp.eq.s32.totalorder %s28, 0
      %p251 = por %p249, %p250
      %p252 = scmp.ne.s32.totalorder %s244, %s246
      %p253 = scmp.eq.s32.totalorder %s33, 1
      %p254 = por %p252, %p253
      %p255 = scmp.ne.s32.totalorder %s246, %s247
      %p256 = scmp.eq.s32.totalorder %s33, 0
      %p257 = por %p255, %p256
      %p258 = scmp.ne.s32.totalorder %s246, %s247
      %p259 = scmp.eq.s32.totalorder %s34, 1
      %p260 = por %p258, %p259
      %p262 = scmp.ne.s32.totalorder %s247, %s261
      %p263 = scmp.eq.s32.totalorder %s34, 0
      %p264 = por %p262, %p263
      %s266 = sadd.s32 %s265, 1
      %p269 = scmp.eq.s32.totalorder %s28, 1
      %p270 = scmp.ne.s32.totalorder %s265, %s267
      %p271 = scmp.eq.s32.totalorder %s28, 0
      %p272 = por %p270, %p271
      %p273 = scmp.ne.s32.totalorder %s265, %s267
      %p274 = scmp.eq.s32.totalorder %s33, 1
      %p275 = por %p273, %p274
      %p276 = scmp.ne.s32.totalorder %s267, %s268
      %p277 = scmp.eq.s32.totalorder %s33, 0
      %p278 = por %p276, %p277
      %p279 = scmp.ne.s32.totalorder %s267, %s268
      %p280 = scmp.eq.s32.totalorder %s34, 1
      %p281 = por %p279, %p280
      %p283 = scmp.ne.s32.totalorder %s268, %s282
      %p284 = scmp.eq.s32.totalorder %s34, 0
      %p285 = por %p283, %p284
      %s287 = sadd.s32 %s286, 1
      %p290 = scmp.eq.s32.totalorder %s28, 1
      %p291 = scmp.ne.s32.totalorder %s286, %s288
      %p292 = scmp.eq.s32.totalorder %s28, 0
      %p293 = por %p291, %p292
      %p294 = scmp.ne.s32.totalorder %s286, %s288
      %p295 = scmp.eq.s32.totalorder %s33, 1
      %p296 = por %p294, %p295
      %p297 = scmp.ne.s32.totalorder %s288, %s289
      %p298 = scmp.eq.s32.totalorder %s33, 0
      %p299 = por %p297, %p298
      %p300 = scmp.ne.s32.totalorder %s288, %s289
      %p301 = scmp.eq.s32.totalorder %s34, 1
      %p302 = por %p300, %p301
      %p304 = scmp.ne.s32.totalorder %s289, %s303
      %p305 = scmp.eq.s32.totalorder %s34, 0
      %p306 = por %p304, %p305
      %s308 = sadd.s32 %s307, 1
      %p311 = scmp.eq.s32.totalorder %s28, 1
      %p312 = scmp.ne.s32.totalorder %s307, %s309
      %p313 = scmp.eq.s32.totalorder %s28, 0
      %p314 = por %p312, %p313
      %p315 = scmp.ne.s32.totalorder %s307, %s309
      %p316 = scmp.eq.s32.totalorder %s33, 1
      %p317 = por %p315, %p316
      %p318 = scmp.ne.s32.totalorder %s309, %s310
      %p319 = scmp.eq.s32.totalorder %s33, 0
      %p320 = por %p318, %p319
      %p321 = scmp.ne.s32.totalorder %s309, %s310
      %p322 = scmp.eq.s32.totalorder %s34, 1
      %p323 = por %p321, %p322
      %p325 = scmp.ne.s32.totalorder %s310, %s324
      %p326 = scmp.eq.s32.totalorder %s34, 0
      %p327 = por %p325, %p326
      %s329 = sadd.s32 %s328, 1
      %p332 = scmp.eq.s32.totalorder %s28, 1
      %p333 = scmp.ne.s32.totalorder %s328, %s330
      %p334 = scmp.eq.s32.totalorder %s28, 0
      %p335 = por %p333, %p334
      %p336 = scmp.ne.s32.totalorder %s328, %s330
      %p337 = scmp.eq.s32.totalorder %s33, 1
      %p338 = por %p336, %p337
      %p339 = scmp.ne.s32.totalorder %s330, %s331
      %p340 = scmp.eq.s32.totalorder %s33, 0
      %p341 = por %p339, %p340
      %p342 = scmp.ne.s32.totalorder %s330, %s331
      %p343 = scmp.eq.s32.totalorder %s34, 1
      %p344 = por %p342, %p343
      %p346 = scmp.ne.s32.totalorder %s331, %s345
      %p347 = scmp.eq.s32.totalorder %s34, 0
      %p348 = por %p346, %p347
      %s350 = sadd.s32 %s349, 1
      %p353 = scmp.eq.s32.totalorder %s28, 1
      %p354 = scmp.ne.s32.totalorder %s349, %s351
      %p355 = scmp.eq.s32.totalorder %s28, 0
      %p356 = por %p354, %p355
      %p357 = scmp.ne.s32.totalorder %s349, %s351
      %p358 = scmp.eq.s32.totalorder %s33, 1
      %p359 = por %p357, %p358
      %p360 = scmp.ne.s32.totalorder %s351, %s352
      %p361 = scmp.eq.s32.totalorder %s33, 0
      %p362 = por %p360, %p361
      %p363 = scmp.ne.s32.totalorder %s351, %s352
      %p364 = scmp.eq.s32.totalorder %s34, 1
      %p365 = por %p363, %p364
      %p367 = scmp.ne.s32.totalorder %s352, %s366
      %p368 = scmp.eq.s32.totalorder %s34, 0
      %p369 = por %p367, %p368
      %s371 = sadd.s32 %s370, 1
      %p374 = scmp.eq.s32.totalorder %s28, 1
      %p375 = scmp.ne.s32.totalorder %s370, %s372
      %p376 = scmp.eq.s32.totalorder %s28, 0
      %p377 = por %p375, %p376
      %p378 = scmp.ne.s32.totalorder %s370, %s372
      %p379 = scmp.eq.s32.totalorder %s33, 1
      %p380 = por %p378, %p379
      %p381 = scmp.ne.s32.totalorder %s372, %s373
      %p382 = scmp.eq.s32.totalorder %s33, 0
      %p383 = por %p381, %p382
      %p384 = scmp.ne.s32.totalorder %s372, %s373
      %p385 = scmp.eq.s32.totalorder %s34, 1
      %p386 = por %p384, %p385
      %p388 = scmp.ne.s32.totalorder %s373, %s387
      %p389 = scmp.eq.s32.totalorder %s34, 0
      %p390 = por %p388, %p389
      %s391 = ssub.s32 %s35, %s47
      %s392 = ssub.s32 %s36, %s43
      %s393 = sor.u32 %s391, %s392
      %p394 = scmp.eq.s32.totalorder %s393, 0
      %s396 = sadd.s32 %s395, 1
      %s397 = scalar_select %p394, %s395, %s396
      %p400 = pneg %p394
      %p401 = scmp.eq.s32.totalorder %s28, 1
      %p402 = por %p400, %p401
      %p403 = scmp.ne.s32.totalorder %s395, %s398
      %p404 = scmp.eq.s32.totalorder %s28, 0
      %p405 = por %p403, %p404
      %p406 = scmp.ne.s32.totalorder %s395, %s398
      %p407 = scmp.eq.s32.totalorder %s33, 1
      %p408 = por %p406, %p407
      %p409 = scmp.ne.s32.totalorder %s398, %s399
      %p410 = scmp.eq.s32.totalorder %s33, 0
      %p411 = por %p409, %p410
      %p412 = scmp.ne.s32.totalorder %s398, %s399
      %p413 = scmp.eq.s32.totalorder %s34, 1
      %p414 = por %p412, %p413
      %p416 = scmp.ne.s32.totalorder %s399, %s415
      %p417 = scmp.eq.s32.totalorder %s34, 0
      %p418 = por %p416, %p417
      %s419 = ssub.s32 %s35, %s47
      %p420 = scmp.eq.s32.totalorder %s419, 0
      %s422 = sadd.s32 %s421, 1
      %s423 = scalar_select %p420, %s421, %s422
      %p426 = pneg %p420
      %p427 = scmp.eq.s32.totalorder %s28, 1
      %p428 = por %p426, %p427
      %p429 = scmp.ne.s32.totalorder %s421, %s424
      %p430 = scmp.eq.s32.totalorder %s28, 0
      %p431 = por %p429, %p430
      %p432 = scmp.ne.s32.totalorder %s421, %s424
      %p433 = scmp.eq.s32.totalorder %s33, 1
      %p434 = por %p432, %p433
      %p435 = scmp.ne.s32.totalorder %s424, %s425
      %p436 = scmp.eq.s32.totalorder %s33, 0
      %p437 = por %p435, %p436
      %p438 = scmp.ne.s32.totalorder %s424, %s425
      %p439 = scmp.eq.s32.totalorder %s34, 1
      %p440 = por %p438, %p439
      %p442 = scmp.ne.s32.totalorder %s425, %s441
      %p443 = scmp.eq.s32.totalorder %s34, 0
      %p444 = por %p442, %p443
      %s445 = ssub.s32 %s35, %s47
      %p446 = scmp.eq.s32.totalorder %s445, 0
      %s448 = sadd.s32 %s447, 1
      %s449 = scalar_select %p446, %s447, %s448
      %p452 = pneg %p446
      %p453 = scmp.eq.s32.totalorder %s28, 1
      %p454 = por %p452, %p453
      %p455 = scmp.ne.s32.totalorder %s447, %s450
      %p456 = scmp.eq.s32.totalorder %s28, 0
      %p457 = por %p455, %p456
      %p458 = scmp.ne.s32.totalorder %s447, %s450
      %p459 = scmp.eq.s32.totalorder %s33, 1
      %p460 = por %p458, %p459
      %p461 = scmp.ne.s32.totalorder %s450, %s451
      %p462 = scmp.eq.s32.totalorder %s33, 0
      %p463 = por %p461, %p462
      %p464 = scmp.ne.s32.totalorder %s450, %s451
      %p465 = scmp.eq.s32.totalorder %s34, 1
      %p466 = por %p464, %p465
      %p468 = scmp.ne.s32.totalorder %s451, %s467
      %p469 = scmp.eq.s32.totalorder %s34, 0
      %p470 = por %p468, %p469
      %p471 = scmp.le.s32.totalorder 1, %s28
      %p472 = scmp.lt.s32.totalorder %s28, 3
      %p473 = pnand %p471, %p472
      %p474 = pneg %p473
      // Predicated region
      $region9: #{tpu_custom_call.1} parent=5 // pred_check
        _
      $region10: #{tpu_custom_call.1} parent=5 // pred_check_branch
        %476 = sbr.rel (%p473) target = $region12
      $region11: #{tpu_custom_call.1} parent=5 // pred_region
        %s477 = ssub.s32 %s28, 1
        // Predicated region
        $region13: #{tpu_custom_call.1} parent=11 // pred_check
          %p478 = pneg %p89
        $region14: #{tpu_custom_call.1} parent=11 // pred_check_branch
          %480 = sbr.rel (%p478) target = $region16
        $region15: #{tpu_custom_call.1} parent=11 // pred_region
          _
        $region16: #{tpu_custom_call.1} parent=11 // pred_fallthru
          _
        // Predicated region
        $region17: #{tpu_custom_call.1} parent=11 // pred_check
          %p481 = pneg %p110
        $region18: #{tpu_custom_call.1} parent=11 // pred_check_branch
          %483 = sbr.rel (%p481) target = $region20
        $region19: #{tpu_custom_call.1} parent=11 // pred_region
          _
        $region20: #{tpu_custom_call.1} parent=11 // pred_fallthru
          _
        // Predicated region
        $region21: #{tpu_custom_call.1} parent=11 // pred_check
          %p484 = pneg %p131
        $region22: #{tpu_custom_call.1} parent=11 // pred_check_branch
          %486 = sbr.rel (%p484) target = $region24
        $region23: #{tpu_custom_call.1} parent=11 // pred_region
          _
        $region24: #{tpu_custom_call.1} parent=11 // pred_fallthru
          _
        // Predicated region
        $region25: #{tpu_custom_call.1} parent=11 // pred_check
          %p487 = pneg %p152
        $region26: #{tpu_custom_call.1} parent=11 // pred_check_branch
          %489 = sbr.rel (%p487) target = $region28
        $region27: #{tpu_custom_call.1} parent=11 // pred_region
          _
        $region28: #{tpu_custom_call.1} parent=11 // pred_fallthru
          _
        // Predicated region
        $region29: #{tpu_custom_call.1} parent=11 // pred_check
          %p490 = pneg %p173
        $region30: #{tpu_custom_call.1} parent=11 // pred_check_branch
          %492 = sbr.rel (%p490) target = $region32
        $region31: #{tpu_custom_call.1} parent=11 // pred_region
          _
        $region32: #{tpu_custom_call.1} parent=11 // pred_fallthru
          _
        // Predicated region
        $region33: #{tpu_custom_call.1} parent=11 // pred_check
          %p493 = pneg %p194
        $region34: #{tpu_custom_call.1} parent=11 // pred_check_branch
          %495 = sbr.rel (%p493) target = $region36
        $region35: #{tpu_custom_call.1} parent=11 // pred_region
          _
        $region36: #{tpu_custom_call.1} parent=11 // pred_fallthru
          _
        // Predicated region
        $region37: #{tpu_custom_call.1} parent=11 // pred_check
          %p496 = pneg %p215
        $region38: #{tpu_custom_call.1} parent=11 // pred_check_branch
          %498 = sbr.rel (%p496) target = $region40
        $region39: #{tpu_custom_call.1} parent=11 // pred_region
          _
        $region40: #{tpu_custom_call.1} parent=11 // pred_fallthru
          _
        // Predicated region
        $region41: #{tpu_custom_call.1} parent=11 // pred_check
          %p499 = pneg %p236
        $region42: #{tpu_custom_call.1} parent=11 // pred_check_branch
          %501 = sbr.rel (%p499) target = $region44
        $region43: #{tpu_custom_call.1} parent=11 // pred_region
          _
        $region44: #{tpu_custom_call.1} parent=11 // pred_fallthru
          _
        // Predicated region
        $region45: #{tpu_custom_call.1} parent=11 // pred_check
          %p502 = pneg %p257
        $region46: #{tpu_custom_call.1} parent=11 // pred_check_branch
          %504 = sbr.rel (%p502) target = $region48
        $region47: #{tpu_custom_call.1} parent=11 // pred_region
          _
        $region48: #{tpu_custom_call.1} parent=11 // pred_fallthru
          _
        // Predicated region
        $region49: #{tpu_custom_call.1} parent=11 // pred_check
          %p505 = pneg %p278
        $region50: #{tpu_custom_call.1} parent=11 // pred_check_branch
          %507 = sbr.rel (%p505) target = $region52
        $region51: #{tpu_custom_call.1} parent=11 // pred_region
          _
        $region52: #{tpu_custom_call.1} parent=11 // pred_fallthru
          _
        // Predicated region
        $region53: #{tpu_custom_call.1} parent=11 // pred_check
          %p508 = pneg %p299
        $region54: #{tpu_custom_call.1} parent=11 // pred_check_branch
          %510 = sbr.rel (%p508) target = $region56
        $region55: #{tpu_custom_call.1} parent=11 // pred_region
          _
        $region56: #{tpu_custom_call.1} parent=11 // pred_fallthru
          _
        // Predicated region
        $region57: #{tpu_custom_call.1} parent=11 // pred_check
          %p511 = pneg %p320
        $region58: #{tpu_custom_call.1} parent=11 // pred_check_branch
          %513 = sbr.rel (%p511) target = $region60
        $region59: #{tpu_custom_call.1} parent=11 // pred_region
          _
        $region60: #{tpu_custom_call.1} parent=11 // pred_fallthru
          _
        // Predicated region
        $region61: #{tpu_custom_call.1} parent=11 // pred_check
          %p514 = pneg %p341
        $region62: #{tpu_custom_call.1} parent=11 // pred_check_branch
          %516 = sbr.rel (%p514) target = $region64
        $region63: #{tpu_custom_call.1} parent=11 // pred_region
          _
        $region64: #{tpu_custom_call.1} parent=11 // pred_fallthru
          _
        // Predicated region
        $region65: #{tpu_custom_call.1} parent=11 // pred_check
          %p517 = pneg %p362
        $region66: #{tpu_custom_call.1} parent=11 // pred_check_branch
          %519 = sbr.rel (%p517) target = $region68
        $region67: #{tpu_custom_call.1} parent=11 // pred_region
          _
        $region68: #{tpu_custom_call.1} parent=11 // pred_fallthru
          _
        // Predicated region
        $region69: #{tpu_custom_call.1} parent=11 // pred_check
          %p520 = pneg %p383
        $region70: #{tpu_custom_call.1} parent=11 // pred_check_branch
          %522 = sbr.rel (%p520) target = $region72
        $region71: #{tpu_custom_call.1} parent=11 // pred_region
          _
        $region72: #{tpu_custom_call.1} parent=11 // pred_fallthru
          _
      $region12: #{tpu_custom_call.1} parent=5 // pred_fallthru
        _
      %p523 = scmp.lt.s32.totalorder %s28, 2
      // Predicated region
      $region73: #{tpu_custom_call.1} parent=5 // pred_check
        %p524 = pneg %p523
      $region74: #{tpu_custom_call.1} parent=5 // pred_check_branch
        %526 = sbr.rel (%p524) target = $region76
      $region75: #{tpu_custom_call.1} parent=5 // pred_region
        // Predicated region
        $region77: #{tpu_custom_call.1} parent=75 // pred_check
          %p527 = pneg %p62
        $region78: #{tpu_custom_call.1} parent=75 // pred_check_branch
          %529 = sbr.rel (%p527) target = $region80
        $region79: #{tpu_custom_call.1} parent=75 // pred_region
          %p530 = scmp.lt.s32.totalorder %s35, 1
          %s531 = scalar_select %p530, %s35, 1
          %p532 = scmp.lt.s32.totalorder %s36, 0
          %s533 = scalar_select %p532, %s36, 0
          %s534 = sadd.s32 %s533, %s531
          %s535 = smul.addr %s534, 4
          %s536 = scalar_lea.vmem %s0, %s535
        $region80: #{tpu_custom_call.1} parent=75 // pred_fallthru
          _
      $region76: #{tpu_custom_call.1} parent=5 // pred_fallthru
        _
      %p537 = scmp.le.s32.totalorder 1, %s28
      %p538 = scmp.lt.s32.totalorder %s28, 3
      %p539 = pnand %p537, %p538
      %p540 = pneg %p539
      // Predicated region
      $region81: #{tpu_custom_call.1} parent=5 // pred_check
        _
      $region82: #{tpu_custom_call.1} parent=5 // pred_check_branch
        %542 = sbr.rel (%p539) target = $region84
      $region83: #{tpu_custom_call.1} parent=5 // pred_region
        %s543 = ssub.s32 %s28, 1
        %p544 = scmp.lt.s32.totalorder %s37, 1
        %s545 = scalar_select %p544, %s37, 1
        %p546 = scmp.lt.s32.totalorder %s38, 0
        %s547 = scalar_select %p546, %s38, 0
        %s548 = sadd.s32 %s547, %s545
        %s549 = smul.addr %s548, 4
        %s550 = scalar_lea.vmem %s0, %s549
        %p551 = pneg %p68
        %p552 = pneg %p65
        %p553 = pneg %p89
        %p554 = pneg %p86
        %p555 = pneg %p110
        %p556 = pneg %p107
        %p557 = pneg %p131
        %p558 = pneg %p128
        %p559 = pneg %p152
        %p560 = pneg %p149
        %p561 = pneg %p173
        %p562 = pneg %p170
        %p563 = pneg %p194
        %p564 = pneg %p191
        %p565 = pneg %p215
        %p566 = pneg %p212
        %p567 = pneg %p236
        %p568 = pneg %p233
        %p569 = pneg %p257
        %p570 = pneg %p254
        %p571 = pneg %p278
        %p572 = pneg %p275
        %p573 = pneg %p299
        %p574 = pneg %p296
        %p575 = pneg %p320
        %p576 = pneg %p317
        %p577 = pneg %p341
        %p578 = pneg %p338
        %p579 = pneg %p362
        %p580 = pneg %p359
        %p581 = pneg %p383
        %p582 = pneg %p380
        %p583 = pneg %p411
        %p584 = pneg %p408
        %s585 = sand.u32 %s398, 1
        %s586 = scalar_lea.sflag [#allocation4], %s585
        %s587 = sand.u32 %s398, 1
        %s588 = smul.addr %s587, 256
        %s589 = scalar_lea.vmem [#allocation3], %s588
        %p590 = pneg %p437
        %p591 = pneg %p434
        %p592 = scmp.lt.s32.totalorder %s37, 1
        %s593 = scalar_select %p592, %s37, 1
        %s594 = smul.addr %s593, 8
        %s595 = scalar_lea.vmem %s17, %s594
        %p596 = pneg %p463
        %p597 = pneg %p460
        %p598 = scmp.lt.s32.totalorder %s37, 1
        %s599 = scalar_select %p598, %s37, 1
        %s600 = smul.addr %s599, 4
        %s601 = smul.addr %s600, 8
        %s602 = scalar_lea.vmem %s18, %s601
        %p603 = scmp.lt.s32.totalorder %s37, 1
        %s604 = scalar_select %p603, %s37, 1
        %p605 = scmp.lt.s32.totalorder %s38, 0
        %s606 = scalar_select %p605, %s38, 0
        %s607 = sadd.s32 %s606, %s604
        %s608 = smul.addr %s607, 4
        %s609 = scalar_lea.vmem %s0, %s608
        %p610 = scmp.lt.s32.totalorder %s37, 1
        %s611 = scalar_select %p610, %s37, 1
        %s612 = smul.addr %s611, 8
        %s613 = scalar_lea.vmem %s17, %s612
        %p614 = scmp.lt.s32.totalorder %s37, 1
        %s615 = scalar_select %p614, %s37, 1
        %s616 = smul.addr %s615, 4
        %s617 = smul.addr %s616, 8
        %s618 = scalar_lea.vmem %s18, %s617
        %v620 = vld [vmem:[%s609] sm:$0xf]
        %v621 = vld [vmem:[%s1] sm:$0xff]
        %v622 = vld [vmem:[%s1 + $0x8] sm:$0xff]
        %v623 = vld [vmem:[%s1 + $0x10] sm:$0xff]
        %v624 = vld [vmem:[%s1 + $0x18] sm:$0xff]
        %v625 = vld [vmem:[%s1 + $0x20] sm:$0xff]
        %v626 = vld [vmem:[%s1 + $0x28] sm:$0xff]
        %v627 = vld [vmem:[%s1 + $0x30] sm:$0xff]
        %v628 = vld [vmem:[%s1 + $0x38] sm:$0xff]
        %630 = vset.pattern.permute.xlu0 0
        %631 = vperm.xlu0 %630, %v621
        %v632 = vpop.permute.xlu0 %631
        %635 = vset.pattern.permute.xlu0 0
        %636 = vperm.xlu0 %635, %v622
        %v637 = vpop.permute.xlu0 %636
        %640 = vset.pattern.permute.xlu0 0
        %641 = vperm.xlu0 %640, %v623
        %v642 = vpop.permute.xlu0 %641
        %645 = vset.pattern.permute.xlu0 0
        %646 = vperm.xlu0 %645, %v624
        %v647 = vpop.permute.xlu0 %646
        %650 = vset.pattern.permute.xlu0 0
        %651 = vperm.xlu0 %650, %v625
        %v652 = vpop.permute.xlu0 %651
        %655 = vset.pattern.permute.xlu0 0
        %656 = vperm.xlu0 %655, %v626
        %v657 = vpop.permute.xlu0 %656
        %660 = vset.pattern.permute.xlu0 0
        %661 = vperm.xlu0 %660, %v627
        %v662 = vpop.permute.xlu0 %661
        %665 = vset.pattern.permute.xlu0 0
        %666 = vperm.xlu0 %665, %v628
        %v667 = vpop.permute.xlu0 %666
        %v669 = vperm.slane %v620, 0
        %v670 = vmul.f32 %v632, %v669
        %v671 = vmul.f32 %v637, %v669
        %v672 = vmul.f32 %v642, %v669
        %v673 = vmul.f32 %v647, %v669
        %v674 = vmul.f32 %v652, %v669
        %v675 = vmul.f32 %v657, %v669
        %v676 = vmul.f32 %v662, %v669
        %v677 = vmul.f32 %v667, %v669
        %v678 = vld [vmem:[%s2] sm:$0xff]
        %v679 = vld [vmem:[%s2 + $0x8] sm:$0xff]
        %v680 = vld [vmem:[%s2 + $0x10] sm:$0xff]
        %v681 = vld [vmem:[%s2 + $0x18] sm:$0xff]
        %v682 = vld [vmem:[%s2 + $0x20] sm:$0xff]
        %v683 = vld [vmem:[%s2 + $0x28] sm:$0xff]
        %v684 = vld [vmem:[%s2 + $0x30] sm:$0xff]
        %v685 = vld [vmem:[%s2 + $0x38] sm:$0xff]
        %687 = vset.pattern.permute.xlu0 0
        %688 = vperm.xlu0 %687, %v678
        %v689 = vpop.permute.xlu0 %688
        %692 = vset.pattern.permute.xlu0 0
        %693 = vperm.xlu0 %692, %v679
        %v694 = vpop.permute.xlu0 %693
        %697 = vset.pattern.permute.xlu0 0
        %698 = vperm.xlu0 %697, %v680
        %v699 = vpop.permute.xlu0 %698
        %702 = vset.pattern.permute.xlu0 0
        %703 = vperm.xlu0 %702, %v681
        %v704 = vpop.permute.xlu0 %703
        %707 = vset.pattern.permute.xlu0 0
        %708 = vperm.xlu0 %707, %v682
        %v709 = vpop.permute.xlu0 %708
        %712 = vset.pattern.permute.xlu0 0
        %713 = vperm.xlu0 %712, %v683
        %v714 = vpop.permute.xlu0 %713
        %717 = vset.pattern.permute.xlu0 0
        %718 = vperm.xlu0 %717, %v684
        %v719 = vpop.permute.xlu0 %718
        %722 = vset.pattern.permute.xlu0 0
        %723 = vperm.xlu0 %722, %v685
        %v724 = vpop.permute.xlu0 %723
        %v726 = vadd.f32 %v670, %v689
        %v727 = vadd.f32 %v671, %v694
        %v728 = vadd.f32 %v672, %v699
        %v729 = vadd.f32 %v673, %v704
        %v730 = vadd.f32 %v674, %v709
        %v731 = vadd.f32 %v675, %v714
        %v732 = vadd.f32 %v676, %v719
        %v733 = vadd.f32 %v677, %v724
        %734 = vset.pattern.permute.xlu0 1
        %735 = vperm.xlu0 %734, %v621
        %v736 = vpop.permute.xlu0 %735
        %738 = vset.pattern.permute.xlu0 1
        %739 = vperm.xlu0 %738, %v622
        %v740 = vpop.permute.xlu0 %739
        %742 = vset.pattern.permute.xlu0 1
        %743 = vperm.xlu0 %742, %v623
        %v744 = vpop.permute.xlu0 %743
        %746 = vset.pattern.permute.xlu0 1
        %747 = vperm.xlu0 %746, %v624
        %v748 = vpop.permute.xlu0 %747
        %750 = vset.pattern.permute.xlu0 1
        %751 = vperm.xlu0 %750, %v625
        %v752 = vpop.permute.xlu0 %751
        %754 = vset.pattern.permute.xlu0 1
        %755 = vperm.xlu0 %754, %v626
        %v756 = vpop.permute.xlu0 %755
        %758 = vset.pattern.permute.xlu0 1
        %759 = vperm.xlu0 %758, %v627
        %v760 = vpop.permute.xlu0 %759
        %762 = vset.pattern.permute.xlu0 1
        %763 = vperm.xlu0 %762, %v628
        %v764 = vpop.permute.xlu0 %763
        %v766 = vperm.slane %v620, 1
        %v767 = vmul.f32 %v736, %v766
        %v768 = vmul.f32 %v740, %v766
        %v769 = vmul.f32 %v744, %v766
        %v770 = vmul.f32 %v748, %v766
        %v771 = vmul.f32 %v752, %v766
        %v772 = vmul.f32 %v756, %v766
        %v773 = vmul.f32 %v760, %v766
        %v774 = vmul.f32 %v764, %v766
        %v775 = vadd.f32 %v726, %v767
        %v776 = vadd.f32 %v727, %v768
        %v777 = vadd.f32 %v728, %v769
        %v778 = vadd.f32 %v729, %v770
        %v779 = vadd.f32 %v730, %v771
        %v780 = vadd.f32 %v731, %v772
        %v781 = vadd.f32 %v732, %v773
        %v782 = vadd.f32 %v733, %v774
        %783 = vset.pattern.permute.xlu0 2
        %784 = vperm.xlu0 %783, %v621
        %v785 = vpop.permute.xlu0 %784
        %787 = vset.pattern.permute.xlu0 2
        %788 = vperm.xlu0 %787, %v622
        %v789 = vpop.permute.xlu0 %788
        %791 = vset.pattern.permute.xlu0 2
        %792 = vperm.xlu0 %791, %v623
        %v793 = vpop.permute.xlu0 %792
        %795 = vset.pattern.permute.xlu0 2
        %796 = vperm.xlu0 %795, %v624
        %v797 = vpop.permute.xlu0 %796
        %799 = vset.pattern.permute.xlu0 2
        %800 = vperm.xlu0 %799, %v625
        %v801 = vpop.permute.xlu0 %800
        %803 = vset.pattern.permute.xlu0 2
        %804 = vperm.xlu0 %803, %v626
        %v805 = vpop.permute.xlu0 %804
        %807 = vset.pattern.permute.xlu0 2
        %808 = vperm.xlu0 %807, %v627
        %v809 = vpop.permute.xlu0 %808
        %811 = vset.pattern.permute.xlu0 2
        %812 = vperm.xlu0 %811, %v628
        %v813 = vpop.permute.xlu0 %812
        %v815 = vperm.slane %v620, 2
        %v816 = vmul.f32 %v785, %v815
        %v817 = vmul.f32 %v789, %v815
        %v818 = vmul.f32 %v793, %v815
        %v819 = vmul.f32 %v797, %v815
        %v820 = vmul.f32 %v801, %v815
        %v821 = vmul.f32 %v805, %v815
        %v822 = vmul.f32 %v809, %v815
        %v823 = vmul.f32 %v813, %v815
        %v824 = vadd.f32 %v775, %v816
        %v825 = vadd.f32 %v776, %v817
        %v826 = vadd.f32 %v777, %v818
        %v827 = vadd.f32 %v778, %v819
        %v828 = vadd.f32 %v779, %v820
        %v829 = vadd.f32 %v780, %v821
        %v830 = vadd.f32 %v781, %v822
        %v831 = vadd.f32 %v782, %v823
        %832 = vset.pattern.permute.xlu0 3
        %833 = vperm.xlu0 %832, %v621
        %v834 = vpop.permute.xlu0 %833
        %836 = vset.pattern.permute.xlu0 3
        %837 = vperm.xlu0 %836, %v622
        %v838 = vpop.permute.xlu0 %837
        %840 = vset.pattern.permute.xlu0 3
        %841 = vperm.xlu0 %840, %v623
        %v842 = vpop.permute.xlu0 %841
        %844 = vset.pattern.permute.xlu0 3
        %845 = vperm.xlu0 %844, %v624
        %v846 = vpop.permute.xlu0 %845
        %848 = vset.pattern.permute.xlu0 3
        %849 = vperm.xlu0 %848, %v625
        %v850 = vpop.permute.xlu0 %849
        %852 = vset.pattern.permute.xlu0 3
        %853 = vperm.xlu0 %852, %v626
        %v854 = vpop.permute.xlu0 %853
        %856 = vset.pattern.permute.xlu0 3
        %857 = vperm.xlu0 %856, %v627
        %v858 = vpop.permute.xlu0 %857
        %860 = vset.pattern.permute.xlu0 3
        %861 = vperm.xlu0 %860, %v628
        %v862 = vpop.permute.xlu0 %861
        %v864 = vperm.slane %v620, 3
        %v865 = vmul.f32 %v834, %v864
        %v866 = vmul.f32 %v838, %v864
        %v867 = vmul.f32 %v842, %v864
        %v868 = vmul.f32 %v846, %v864
        %v869 = vmul.f32 %v850, %v864
        %v870 = vmul.f32 %v854, %v864
        %v871 = vmul.f32 %v858, %v864
        %v872 = vmul.f32 %v862, %v864
        %v873 = vadd.f32 %v824, %v865
        %v874 = vadd.f32 %v825, %v866
        %v875 = vadd.f32 %v826, %v867
        %v876 = vadd.f32 %v827, %v868
        %v877 = vadd.f32 %v828, %v869
        %v878 = vadd.f32 %v829, %v870
        %v879 = vadd.f32 %v830, %v871
        %v880 = vadd.f32 %v831, %v872
        %v881 = vmax.f32 %v873, 0.0
        %v882 = vmax.f32 %v874, 0.0
        %v883 = vmax.f32 %v875, 0.0
        %v884 = vmax.f32 %v876, 0.0
        %v885 = vmax.f32 %v877, 0.0
        %v886 = vmax.f32 %v878, 0.0
        %v887 = vmax.f32 %v879, 0.0
        %v888 = vmax.f32 %v880, 0.0
        %v889 = vpack.c.bf16 %v882, %v881
        %v890 = vpack.c.bf16 %v884, %v883
        %v891 = vpack.c.bf16 %v886, %v885
        %v892 = vpack.c.bf16 %v888, %v887
        %v893 = vld [vmem:[%s3] sm:$0xf]
        %v894 = vld [vmem:[%s3 + $0x4] sm:$0xf]
        %v895 = vld [vmem:[%s3 + $0x8] sm:$0xf]
        %v896 = vld [vmem:[%s3 + $0xc] sm:$0xf]
        %v897 = vld [vmem:[%s3 + $0x10] sm:$0xf]
        %v898 = vld [vmem:[%s3 + $0x14] sm:$0xf]
        %v899 = vld [vmem:[%s3 + $0x18] sm:$0xf]
        %v900 = vld [vmem:[%s3 + $0x1c] sm:$0xf]
        %v901 = vld [vmem:[%s3 + $0x20] sm:$0xf]
        %v902 = vld [vmem:[%s3 + $0x24] sm:$0xf]
        %v903 = vld [vmem:[%s3 + $0x28] sm:$0xf]
        %v904 = vld [vmem:[%s3 + $0x2c] sm:$0xf]
        %v905 = vld [vmem:[%s3 + $0x30] sm:$0xf]
        %v906 = vld [vmem:[%s3 + $0x34] sm:$0xf]
        %v907 = vld [vmem:[%s3 + $0x38] sm:$0xf]
        %v908 = vld [vmem:[%s3 + $0x3c] sm:$0xf]
        %v909 = vld [vmem:[%s4] sm:$0xff]
        %v910 = vld [vmem:[%s4 + $0x8] sm:$0xff]
        %v911 = vld [vmem:[%s4 + $0x10] sm:$0xff]
        %v912 = vld [vmem:[%s4 + $0x18] sm:$0xff]
        %v913 = vld [vmem:[%s4 + $0x20] sm:$0xff]
        %v914 = vld [vmem:[%s4 + $0x28] sm:$0xff]
        %v915 = vld [vmem:[%s4 + $0x30] sm:$0xff]
        %v916 = vld [vmem:[%s4 + $0x38] sm:$0xff]
        %v917 = vld [vmem:[%s4 + $0x40] sm:$0xff]
        %v918 = vld [vmem:[%s4 + $0x48] sm:$0xff]
        %v919 = vld [vmem:[%s4 + $0x50] sm:$0xff]
        %v920 = vld [vmem:[%s4 + $0x58] sm:$0xff]
        %v921 = vld [vmem:[%s4 + $0x60] sm:$0xff]
        %v922 = vld [vmem:[%s4 + $0x68] sm:$0xff]
        %v923 = vld [vmem:[%s4 + $0x70] sm:$0xff]
        %v924 = vld [vmem:[%s4 + $0x78] sm:$0xff]
        %926 = vset.pattern.permute.xlu0 0
        %927 = vperm.xlu0 %926, %v909
        %v928 = vpop.permute.xlu0 %927
        %931 = vset.pattern.permute.xlu0 0
        %932 = vperm.xlu0 %931, %v910
        %v933 = vpop.permute.xlu0 %932
        %936 = vset.pattern.permute.xlu0 0
        %937 = vperm.xlu0 %936, %v911
        %v938 = vpop.permute.xlu0 %937
        %941 = vset.pattern.permute.xlu0 0
        %942 = vperm.xlu0 %941, %v912
        %v943 = vpop.permute.xlu0 %942
        %946 = vset.pattern.permute.xlu0 0
        %947 = vperm.xlu0 %946, %v913
        %v948 = vpop.permute.xlu0 %947
        %951 = vset.pattern.permute.xlu0 0
        %952 = vperm.xlu0 %951, %v914
        %v953 = vpop.permute.xlu0 %952
        %956 = vset.pattern.permute.xlu0 0
        %957 = vperm.xlu0 %956, %v915
        %v958 = vpop.permute.xlu0 %957
        %961 = vset.pattern.permute.xlu0 0
        %962 = vperm.xlu0 %961, %v916
        %v963 = vpop.permute.xlu0 %962
        %966 = vset.pattern.permute.xlu0 0
        %967 = vperm.xlu0 %966, %v917
        %v968 = vpop.permute.xlu0 %967
        %971 = vset.pattern.permute.xlu0 0
        %972 = vperm.xlu0 %971, %v918
        %v973 = vpop.permute.xlu0 %972
        %976 = vset.pattern.permute.xlu0 0
        %977 = vperm.xlu0 %976, %v919
        %v978 = vpop.permute.xlu0 %977
        %981 = vset.pattern.permute.xlu0 0
        %982 = vperm.xlu0 %981, %v920
        %v983 = vpop.permute.xlu0 %982
        %986 = vset.pattern.permute.xlu0 0
        %987 = vperm.xlu0 %986, %v921
        %v988 = vpop.permute.xlu0 %987
        %991 = vset.pattern.permute.xlu0 0
        %992 = vperm.xlu0 %991, %v922
        %v993 = vpop.permute.xlu0 %992
        %996 = vset.pattern.permute.xlu0 0
        %997 = vperm.xlu0 %996, %v923
        %v998 = vpop.permute.xlu0 %997
        %1001 = vset.pattern.permute.xlu0 0
        %1002 = vperm.xlu0 %1001, %v924
        %v1003 = vpop.permute.xlu0 %1002
        %v1021 = vunpack.c.l.b16 %v893
        %v1022 = vunpack.c.l.b16 %v894
        %v1023 = vunpack.c.l.b16 %v895
        %v1024 = vunpack.c.l.b16 %v896
        %v1025 = vunpack.c.l.b16 %v897
        %v1026 = vunpack.c.l.b16 %v898
        %v1027 = vunpack.c.l.b16 %v899
        %v1028 = vunpack.c.l.b16 %v900
        %v1029 = vunpack.c.l.b16 %v901
        %v1030 = vunpack.c.l.b16 %v902
        %v1031 = vunpack.c.l.b16 %v903
        %v1032 = vunpack.c.l.b16 %v904
        %v1033 = vunpack.c.l.b16 %v905
        %v1034 = vunpack.c.l.b16 %v906
        %v1035 = vunpack.c.l.b16 %v907
        %v1036 = vunpack.c.l.b16 %v908
        %v1037 = vpack.c.b16 %v1022, %v1021
        %v1038 = vpack.c.b16 %v1024, %v1023
        %v1039 = vpack.c.b16 %v1026, %v1025
        %v1040 = vpack.c.b16 %v1028, %v1027
        %v1041 = vpack.c.b16 %v1030, %v1029
        %v1042 = vpack.c.b16 %v1032, %v1031
        %v1043 = vpack.c.b16 %v1034, %v1033
        %v1044 = vpack.c.b16 %v1036, %v1035
        %vm1045 = vcmask 523264
        %v1047 = vsel %vm1045, %v1037, 0
        %v1050 = vsel %vm1045, %v1038, 0
        %v1053 = vsel %vm1045, %v1039, 0
        %v1056 = vsel %vm1045, %v1040, 0
        %v1059 = vsel %vm1045, %v1041, 0
        %v1062 = vsel %vm1045, %v1042, 0
        %v1065 = vsel %vm1045, %v1043, 0
        %v1068 = vsel %vm1045, %v1044, 0
        %1070 = vmatpush.bf16.msra.mxu0 0
        %1071 = vmatpush.bf16.msra.mxu0 0
        %1072 = vmatpush.bf16.msra.mxu0 0
        %1073 = vmatpush.bf16.msra.mxu0 0
        %1074 = vmatpush.bf16.msra.mxu0 %v892
        %1075 = vmatpush.bf16.msra.mxu0 %v891
        %1076 = vmatpush.bf16.msra.mxu0 %v890
        %1077 = vmatpush.bf16.msra.mxu0 %v889
        %1078 = vmatmul.bf16.gmra.mxu0 %v1047
        %v1079 = vpop.f32.mrf.mxu0
        %v1080 = vadd.f32 %v928, %v1079
        %v1081 = vpop.f32.mrf.mxu0
        %v1082 = vadd.f32 %v933, %v1081
        %1083 = vmatmul.bf16.gmra.mxu0 %v1050
        %v1084 = vpop.f32.mrf.mxu0
        %v1085 = vadd.f32 %v938, %v1084
        %v1086 = vpop.f32.mrf.mxu0
        %v1087 = vadd.f32 %v943, %v1086
        %1088 = vmatmul.bf16.gmra.mxu0 %v1053
        %v1089 = vpop.f32.mrf.mxu0
        %v1090 = vadd.f32 %v948, %v1089
        %v1091 = vpop.f32.mrf.mxu0
        %v1092 = vadd.f32 %v953, %v1091
        %1093 = vmatmul.bf16.gmra.mxu0 %v1056
        %v1094 = vpop.f32.mrf.mxu0
        %v1095 = vadd.f32 %v958, %v1094
        %v1096 = vpop.f32.mrf.mxu0
        %v1097 = vadd.f32 %v963, %v1096
        %1098 = vmatmul.bf16.gmra.mxu0 %v1059
        %v1099 = vpop.f32.mrf.mxu0
        %v1100 = vadd.f32 %v968, %v1099
        %v1101 = vpop.f32.mrf.mxu0
        %v1102 = vadd.f32 %v973, %v1101
        %1103 = vmatmul.bf16.gmra.mxu0 %v1062
        %v1104 = vpop.f32.mrf.mxu0
        %v1105 = vadd.f32 %v978, %v1104
        %v1106 = vpop.f32.mrf.mxu0
        %v1107 = vadd.f32 %v983, %v1106
        %1108 = vmatmul.bf16.gmra.mxu0 %v1065
        %v1109 = vpop.f32.mrf.mxu0
        %v1110 = vadd.f32 %v988, %v1109
        %v1111 = vpop.f32.mrf.mxu0
        %v1112 = vadd.f32 %v993, %v1111
        %1113 = vmatmul.bf16.gmra.mxu0 %v1068
        %v1114 = vpop.f32.mrf.mxu0
        %v1115 = vadd.f32 %v998, %v1114
        %v1116 = vpop.f32.mrf.mxu0
        %v1117 = vadd.f32 %v1003, %v1116
        %1118 = vdwg.mxu0
        %v1119 = vmax.f32 %v1080, 0.0
        %v1120 = vmax.f32 %v1082, 0.0
        %v1121 = vmax.f32 %v1085, 0.0
        %v1122 = vmax.f32 %v1087, 0.0
        %v1123 = vmax.f32 %v1090, 0.0
        %v1124 = vmax.f32 %v1092, 0.0
        %v1125 = vmax.f32 %v1095, 0.0
        %v1126 = vmax.f32 %v1097, 0.0
        %v1127 = vmax.f32 %v1100, 0.0
        %v1128 = vmax.f32 %v1102, 0.0
        %v1129 = vmax.f32 %v1105, 0.0
        %v1130 = vmax.f32 %v1107, 0.0
        %v1131 = vmax.f32 %v1110, 0.0
        %v1132 = vmax.f32 %v1112, 0.0
        %v1133 = vmax.f32 %v1115, 0.0
        %v1134 = vmax.f32 %v1117, 0.0
        %v1135 = vpack.c.bf16 %v1120, %v1119
        %v1136 = vpack.c.bf16 %v1122, %v1121
        %v1137 = vpack.c.bf16 %v1124, %v1123
        %v1138 = vpack.c.bf16 %v1126, %v1125
        %v1139 = vpack.c.bf16 %v1128, %v1127
        %v1140 = vpack.c.bf16 %v1130, %v1129
        %v1141 = vpack.c.bf16 %v1132, %v1131
        %v1142 = vpack.c.bf16 %v1134, %v1133
        %v1143 = vld [vmem:[%s5] sm:$0xf]
        %v1144 = vld [vmem:[%s5 + $0x4] sm:$0xf]
        %v1145 = vld [vmem:[%s5 + $0x8] sm:$0xf]
        %v1146 = vld [vmem:[%s5 + $0xc] sm:$0xf]
        %v1147 = vld [vmem:[%s5 + $0x10] sm:$0xf]
        %v1148 = vld [vmem:[%s5 + $0x14] sm:$0xf]
        %v1149 = vld [vmem:[%s5 + $0x18] sm:$0xf]
        %v1150 = vld [vmem:[%s5 + $0x1c] sm:$0xf]
        %v1151 = vld [vmem:[%s5 + $0x20] sm:$0xf]
        %v1152 = vld [vmem:[%s5 + $0x24] sm:$0xf]
        %v1153 = vld [vmem:[%s5 + $0x28] sm:$0xf]
        %v1154 = vld [vmem:[%s5 + $0x2c] sm:$0xf]
        %v1155 = vld [vmem:[%s5 + $0x30] sm:$0xf]
        %v1156 = vld [vmem:[%s5 + $0x34] sm:$0xf]
        %v1157 = vld [vmem:[%s5 + $0x38] sm:$0xf]
        %v1158 = vld [vmem:[%s5 + $0x3c] sm:$0xf]
        %v1159 = vld [vmem:[%s5 + $0x40] sm:$0xf]
        %v1160 = vld [vmem:[%s5 + $0x44] sm:$0xf]
        %v1161 = vld [vmem:[%s5 + $0x48] sm:$0xf]
        %v1162 = vld [vmem:[%s5 + $0x4c] sm:$0xf]
        %v1163 = vld [vmem:[%s5 + $0x50] sm:$0xf]
        %v1164 = vld [vmem:[%s5 + $0x54] sm:$0xf]
        %v1165 = vld [vmem:[%s5 + $0x58] sm:$0xf]
        %v1166 = vld [vmem:[%s5 + $0x5c] sm:$0xf]
        %v1167 = vld [vmem:[%s5 + $0x60] sm:$0xf]
        %v1168 = vld [vmem:[%s5 + $0x64] sm:$0xf]
        %v1169 = vld [vmem:[%s5 + $0x68] sm:$0xf]
        %v1170 = vld [vmem:[%s5 + $0x6c] sm:$0xf]
        %v1171 = vld [vmem:[%s5 + $0x70] sm:$0xf]
        %v1172 = vld [vmem:[%s5 + $0x74] sm:$0xf]
        %v1173 = vld [vmem:[%s5 + $0x78] sm:$0xf]
        %v1174 = vld [vmem:[%s5 + $0x7c] sm:$0xf]
        %v1175 = vld [vmem:[%s6] sm:$0xff]
        %v1176 = vld [vmem:[%s6 + $0x8] sm:$0xff]
        %v1177 = vld [vmem:[%s6 + $0x10] sm:$0xff]
        %v1178 = vld [vmem:[%s6 + $0x18] sm:$0xff]
        %v1179 = vld [vmem:[%s6 + $0x20] sm:$0xff]
        %v1180 = vld [vmem:[%s6 + $0x28] sm:$0xff]
        %v1181 = vld [vmem:[%s6 + $0x30] sm:$0xff]
        %v1182 = vld [vmem:[%s6 + $0x38] sm:$0xff]
        %v1183 = vld [vmem:[%s6 + $0x40] sm:$0xff]
        %v1184 = vld [vmem:[%s6 + $0x48] sm:$0xff]
        %v1185 = vld [vmem:[%s6 + $0x50] sm:$0xff]
        %v1186 = vld [vmem:[%s6 + $0x58] sm:$0xff]
        %v1187 = vld [vmem:[%s6 + $0x60] sm:$0xff]
        %v1188 = vld [vmem:[%s6 + $0x68] sm:$0xff]
        %v1189 = vld [vmem:[%s6 + $0x70] sm:$0xff]
        %v1190 = vld [vmem:[%s6 + $0x78] sm:$0xff]
        %v1191 = vld [vmem:[%s6 + $0x80] sm:$0xff]
        %v1192 = vld [vmem:[%s6 + $0x88] sm:$0xff]
        %v1193 = vld [vmem:[%s6 + $0x90] sm:$0xff]
        %v1194 = vld [vmem:[%s6 + $0x98] sm:$0xff]
        %v1195 = vld [vmem:[%s6 + $0xa0] sm:$0xff]
        %v1196 = vld [vmem:[%s6 + $0xa8] sm:$0xff]
        %v1197 = vld [vmem:[%s6 + $0xb0] sm:$0xff]
        %v1198 = vld [vmem:[%s6 + $0xb8] sm:$0xff]
        %v1199 = vld [vmem:[%s6 + $0xc0] sm:$0xff]
        %v1200 = vld [vmem:[%s6 + $0xc8] sm:$0xff]
        %v1201 = vld [vmem:[%s6 + $0xd0] sm:$0xff]
        %v1202 = vld [vmem:[%s6 + $0xd8] sm:$0xff]
        %v1203 = vld [vmem:[%s6 + $0xe0] sm:$0xff]
        %v1204 = vld [vmem:[%s6 + $0xe8] sm:$0xff]
        %v1205 = vld [vmem:[%s6 + $0xf0] sm:$0xff]
        %v1206 = vld [vmem:[%s6 + $0xf8] sm:$0xff]
        %1208 = vset.pattern.permute.xlu0 0
        %1209 = vperm.xlu0 %1208, %v1175
        %v1210 = vpop.permute.xlu0 %1209
        %1213 = vset.pattern.permute.xlu0 0
        %1214 = vperm.xlu0 %1213, %v1176
        %v1215 = vpop.permute.xlu0 %1214
        %1218 = vset.pattern.permute.xlu0 0
        %1219 = vperm.xlu0 %1218, %v1177
        %v1220 = vpop.permute.xlu0 %1219
        %1223 = vset.pattern.permute.xlu0 0
        %1224 = vperm.xlu0 %1223, %v1178
        %v1225 = vpop.permute.xlu0 %1224
        %1228 = vset.pattern.permute.xlu0 0
        %1229 = vperm.xlu0 %1228, %v1179
        %v1230 = vpop.permute.xlu0 %1229
        %1233 = vset.pattern.permute.xlu0 0
        %1234 = vperm.xlu0 %1233, %v1180
        %v1235 = vpop.permute.xlu0 %1234
        %1238 = vset.pattern.permute.xlu0 0
        %1239 = vperm.xlu0 %1238, %v1181
        %v1240 = vpop.permute.xlu0 %1239
        %1243 = vset.pattern.permute.xlu0 0
        %1244 = vperm.xlu0 %1243, %v1182
        %v1245 = vpop.permute.xlu0 %1244
        %1248 = vset.pattern.permute.xlu0 0
        %1249 = vperm.xlu0 %1248, %v1183
        %v1250 = vpop.permute.xlu0 %1249
        %1253 = vset.pattern.permute.xlu0 0
        %1254 = vperm.xlu0 %1253, %v1184
        %v1255 = vpop.permute.xlu0 %1254
        %1258 = vset.pattern.permute.xlu0 0
        %1259 = vperm.xlu0 %1258, %v1185
        %v1260 = vpop.permute.xlu0 %1259
        %1263 = vset.pattern.permute.xlu0 0
        %1264 = vperm.xlu0 %1263, %v1186
        %v1265 = vpop.permute.xlu0 %1264
        %1268 = vset.pattern.permute.xlu0 0
        %1269 = vperm.xlu0 %1268, %v1187
        %v1270 = vpop.permute.xlu0 %1269
        %1273 = vset.pattern.permute.xlu0 0
        %1274 = vperm.xlu0 %1273, %v1188
        %v1275 = vpop.permute.xlu0 %1274
        %1278 = vset.pattern.permute.xlu0 0
        %1279 = vperm.xlu0 %1278, %v1189
        %v1280 = vpop.permute.xlu0 %1279
        %1283 = vset.pattern.permute.xlu0 0
        %1284 = vperm.xlu0 %1283, %v1190
        %v1285 = vpop.permute.xlu0 %1284
        %1288 = vset.pattern.permute.xlu0 0
        %1289 = vperm.xlu0 %1288, %v1191
        %v1290 = vpop.permute.xlu0 %1289
        %1293 = vset.pattern.permute.xlu0 0
        %1294 = vperm.xlu0 %1293, %v1192
        %v1295 = vpop.permute.xlu0 %1294
        %1298 = vset.pattern.permute.xlu0 0
        %1299 = vperm.xlu0 %1298, %v1193
        %v1300 = vpop.permute.xlu0 %1299
        %1303 = vset.pattern.permute.xlu0 0
        %1304 = vperm.xlu0 %1303, %v1194
        %v1305 = vpop.permute.xlu0 %1304
        %1308 = vset.pattern.permute.xlu0 0
        %1309 = vperm.xlu0 %1308, %v1195
        %v1310 = vpop.permute.xlu0 %1309
        %1313 = vset.pattern.permute.xlu0 0
        %1314 = vperm.xlu0 %1313, %v1196
        %v1315 = vpop.permute.xlu0 %1314
        %1318 = vset.pattern.permute.xlu0 0
        %1319 = vperm.xlu0 %1318, %v1197
        %v1320 = vpop.permute.xlu0 %1319
        %1323 = vset.pattern.permute.xlu0 0
        %1324 = vperm.xlu0 %1323, %v1198
        %v1325 = vpop.permute.xlu0 %1324
        %1328 = vset.pattern.permute.xlu0 0
        %1329 = vperm.xlu0 %1328, %v1199
        %v1330 = vpop.permute.xlu0 %1329
        %1333 = vset.pattern.permute.xlu0 0
        %1334 = vperm.xlu0 %1333, %v1200
        %v1335 = vpop.permute.xlu0 %1334
        %1338 = vset.pattern.permute.xlu0 0
        %1339 = vperm.xlu0 %1338, %v1201
        %v1340 = vpop.permute.xlu0 %1339
        %1343 = vset.pattern.permute.xlu0 0
        %1344 = vperm.xlu0 %1343, %v1202
        %v1345 = vpop.permute.xlu0 %1344
        %1348 = vset.pattern.permute.xlu0 0
        %1349 = vperm.xlu0 %1348, %v1203
        %v1350 = vpop.permute.xlu0 %1349
        %1353 = vset.pattern.permute.xlu0 0
        %1354 = vperm.xlu0 %1353, %v1204
        %v1355 = vpop.permute.xlu0 %1354
        %1358 = vset.pattern.permute.xlu0 0
        %1359 = vperm.xlu0 %1358, %v1205
        %v1360 = vpop.permute.xlu0 %1359
        %1363 = vset.pattern.permute.xlu0 0
        %1364 = vperm.xlu0 %1363, %v1206
        %v1365 = vpop.permute.xlu0 %1364
        %v1399 = vunpack.c.l.b16 %v1143
        %v1400 = vunpack.c.l.b16 %v1144
        %v1401 = vunpack.c.l.b16 %v1145
        %v1402 = vunpack.c.l.b16 %v1146
        %v1403 = vunpack.c.l.b16 %v1147
        %v1404 = vunpack.c.l.b16 %v1148
        %v1405 = vunpack.c.l.b16 %v1149
        %v1406 = vunpack.c.l.b16 %v1150
        %v1407 = vunpack.c.l.b16 %v1151
        %v1408 = vunpack.c.l.b16 %v1152
        %v1409 = vunpack.c.l.b16 %v1153
        %v1410 = vunpack.c.l.b16 %v1154
        %v1411 = vunpack.c.l.b16 %v1155
        %v1412 = vunpack.c.l.b16 %v1156
        %v1413 = vunpack.c.l.b16 %v1157
        %v1414 = vunpack.c.l.b16 %v1158
        %v1415 = vunpack.c.l.b16 %v1159
        %v1416 = vunpack.c.l.b16 %v1160
        %v1417 = vunpack.c.l.b16 %v1161
        %v1418 = vunpack.c.l.b16 %v1162
        %v1419 = vunpack.c.l.b16 %v1163
        %v1420 = vunpack.c.l.b16 %v1164
        %v1421 = vunpack.c.l.b16 %v1165
        %v1422 = vunpack.c.l.b16 %v1166
        %v1423 = vunpack.c.l.b16 %v1167
        %v1424 = vunpack.c.l.b16 %v1168
        %v1425 = vunpack.c.l.b16 %v1169
        %v1426 = vunpack.c.l.b16 %v1170
        %v1427 = vunpack.c.l.b16 %v1171
        %v1428 = vunpack.c.l.b16 %v1172
        %v1429 = vunpack.c.l.b16 %v1173
        %v1430 = vunpack.c.l.b16 %v1174
        %v1431 = vpack.c.b16 %v1400, %v1399
        %v1432 = vpack.c.b16 %v1402, %v1401
        %v1433 = vpack.c.b16 %v1404, %v1403
        %v1434 = vpack.c.b16 %v1406, %v1405
        %v1435 = vpack.c.b16 %v1408, %v1407
        %v1436 = vpack.c.b16 %v1410, %v1409
        %v1437 = vpack.c.b16 %v1412, %v1411
        %v1438 = vpack.c.b16 %v1414, %v1413
        %v1439 = vpack.c.b16 %v1416, %v1415
        %v1440 = vpack.c.b16 %v1418, %v1417
        %v1441 = vpack.c.b16 %v1420, %v1419
        %v1442 = vpack.c.b16 %v1422, %v1421
        %v1443 = vpack.c.b16 %v1424, %v1423
        %v1444 = vpack.c.b16 %v1426, %v1425
        %v1445 = vpack.c.b16 %v1428, %v1427
        %v1446 = vpack.c.b16 %v1430, %v1429
        %1463 = vmatpush.bf16.msra.mxu0 %v1142
        %1464 = vmatpush.bf16.msra.mxu0 %v1141
        %1465 = vmatpush.bf16.msra.mxu0 %v1140
        %1466 = vmatpush.bf16.msra.mxu0 %v1139
        %1467 = vmatpush.bf16.msra.mxu0 %v1138
        %1468 = vmatpush.bf16.msra.mxu0 %v1137
        %1469 = vmatpush.bf16.msra.mxu0 %v1136
        %1470 = vmatpush.bf16.msra.mxu0 %v1135
        %1471 = vmatmul.bf16.gmra.mxu0 %v1431
        %v1472 = vpop.f32.mrf.mxu0
        %v1473 = vadd.f32 %v1210, %v1472
        %v1474 = vpop.f32.mrf.mxu0
        %v1475 = vadd.f32 %v1215, %v1474
        %1476 = vmatmul.bf16.gmra.mxu0 %v1432
        %v1477 = vpop.f32.mrf.mxu0
        %v1478 = vadd.f32 %v1220, %v1477
        %v1479 = vpop.f32.mrf.mxu0
        %v1480 = vadd.f32 %v1225, %v1479
        %1481 = vmatmul.bf16.gmra.mxu0 %v1433
        %v1482 = vpop.f32.mrf.mxu0
        %v1483 = vadd.f32 %v1230, %v1482
        %v1484 = vpop.f32.mrf.mxu0
        %v1485 = vadd.f32 %v1235, %v1484
        %1486 = vmatmul.bf16.gmra.mxu0 %v1434
        %v1487 = vpop.f32.mrf.mxu0
        %v1488 = vadd.f32 %v1240, %v1487
        %v1489 = vpop.f32.mrf.mxu0
        %v1490 = vadd.f32 %v1245, %v1489
        %1491 = vmatmul.bf16.gmra.mxu0 %v1435
        %v1492 = vpop.f32.mrf.mxu0
        %v1493 = vadd.f32 %v1250, %v1492
        %v1494 = vpop.f32.mrf.mxu0
        %v1495 = vadd.f32 %v1255, %v1494
        %1496 = vmatmul.bf16.gmra.mxu0 %v1436
        %v1497 = vpop.f32.mrf.mxu0
        %v1498 = vadd.f32 %v1260, %v1497
        %v1499 = vpop.f32.mrf.mxu0
        %v1500 = vadd.f32 %v1265, %v1499
        %1501 = vmatmul.bf16.gmra.mxu0 %v1437
        %v1502 = vpop.f32.mrf.mxu0
        %v1503 = vadd.f32 %v1270, %v1502
        %v1504 = vpop.f32.mrf.mxu0
        %v1505 = vadd.f32 %v1275, %v1504
        %1506 = vmatmul.bf16.gmra.mxu0 %v1438
        %v1507 = vpop.f32.mrf.mxu0
        %v1508 = vadd.f32 %v1280, %v1507
        %v1509 = vpop.f32.mrf.mxu0
        %v1510 = vadd.f32 %v1285, %v1509
        %1511 = vmatmul.bf16.gmra.mxu0 %v1439
        %v1512 = vpop.f32.mrf.mxu0
        %v1513 = vadd.f32 %v1290, %v1512
        %v1514 = vpop.f32.mrf.mxu0
        %v1515 = vadd.f32 %v1295, %v1514
        %1516 = vmatmul.bf16.gmra.mxu0 %v1440
        %v1517 = vpop.f32.mrf.mxu0
        %v1518 = vadd.f32 %v1300, %v1517
        %v1519 = vpop.f32.mrf.mxu0
        %v1520 = vadd.f32 %v1305, %v1519
        %1521 = vmatmul.bf16.gmra.mxu0 %v1441
        %v1522 = vpop.f32.mrf.mxu0
        %v1523 = vadd.f32 %v1310, %v1522
        %v1524 = vpop.f32.mrf.mxu0
        %v1525 = vadd.f32 %v1315, %v1524
        %1526 = vmatmul.bf16.gmra.mxu0 %v1442
        %v1527 = vpop.f32.mrf.mxu0
        %v1528 = vadd.f32 %v1320, %v1527
        %v1529 = vpop.f32.mrf.mxu0
        %v1530 = vadd.f32 %v1325, %v1529
        %1531 = vmatmul.bf16.gmra.mxu0 %v1443
        %v1532 = vpop.f32.mrf.mxu0
        %v1533 = vadd.f32 %v1330, %v1532
        %v1534 = vpop.f32.mrf.mxu0
        %v1535 = vadd.f32 %v1335, %v1534
        %1536 = vmatmul.bf16.gmra.mxu0 %v1444
        %v1537 = vpop.f32.mrf.mxu0
        %v1538 = vadd.f32 %v1340, %v1537
        %v1539 = vpop.f32.mrf.mxu0
        %v1540 = vadd.f32 %v1345, %v1539
        %1541 = vmatmul.bf16.gmra.mxu0 %v1445
        %v1542 = vpop.f32.mrf.mxu0
        %v1543 = vadd.f32 %v1350, %v1542
        %v1544 = vpop.f32.mrf.mxu0
        %v1545 = vadd.f32 %v1355, %v1544
        %1546 = vmatmul.bf16.gmra.mxu0 %v1446
        %v1547 = vpop.f32.mrf.mxu0
        %v1548 = vadd.f32 %v1360, %v1547
        %v1549 = vpop.f32.mrf.mxu0
        %v1550 = vadd.f32 %v1365, %v1549
        %1551 = vdwg.mxu0
        %v1552 = vmax.f32 %v1473, 0.0
        %v1553 = vmax.f32 %v1475, 0.0
        %v1554 = vmax.f32 %v1478, 0.0
        %v1555 = vmax.f32 %v1480, 0.0
        %v1556 = vmax.f32 %v1483, 0.0
        %v1557 = vmax.f32 %v1485, 0.0
        %v1558 = vmax.f32 %v1488, 0.0
        %v1559 = vmax.f32 %v1490, 0.0
        %v1560 = vmax.f32 %v1493, 0.0
        %v1561 = vmax.f32 %v1495, 0.0
        %v1562 = vmax.f32 %v1498, 0.0
        %v1563 = vmax.f32 %v1500, 0.0
        %v1564 = vmax.f32 %v1503, 0.0
        %v1565 = vmax.f32 %v1505, 0.0
        %v1566 = vmax.f32 %v1508, 0.0
        %v1567 = vmax.f32 %v1510, 0.0
        %v1568 = vmax.f32 %v1513, 0.0
        %v1569 = vmax.f32 %v1515, 0.0
        %v1570 = vmax.f32 %v1518, 0.0
        %v1571 = vmax.f32 %v1520, 0.0
        %v1572 = vmax.f32 %v1523, 0.0
        %v1573 = vmax.f32 %v1525, 0.0
        %v1574 = vmax.f32 %v1528, 0.0
        %v1575 = vmax.f32 %v1530, 0.0
        %v1576 = vmax.f32 %v1533, 0.0
        %v1577 = vmax.f32 %v1535, 0.0
        %v1578 = vmax.f32 %v1538, 0.0
        %v1579 = vmax.f32 %v1540, 0.0
        %v1580 = vmax.f32 %v1543, 0.0
        %v1581 = vmax.f32 %v1545, 0.0
        %v1582 = vmax.f32 %v1548, 0.0
        %v1583 = vmax.f32 %v1550, 0.0
        %v1584 = vpack.c.bf16 %v1553, %v1552
        %v1585 = vpack.c.bf16 %v1555, %v1554
        %v1586 = vpack.c.bf16 %v1557, %v1556
        %v1587 = vpack.c.bf16 %v1559, %v1558
        %v1588 = vpack.c.bf16 %v1561, %v1560
        %v1589 = vpack.c.bf16 %v1563, %v1562
        %v1590 = vpack.c.bf16 %v1565, %v1564
        %v1591 = vpack.c.bf16 %v1567, %v1566
        %v1592 = vpack.c.bf16 %v1569, %v1568
        %v1593 = vpack.c.bf16 %v1571, %v1570
        %v1594 = vpack.c.bf16 %v1573, %v1572
        %v1595 = vpack.c.bf16 %v1575, %v1574
        %v1596 = vpack.c.bf16 %v1577, %v1576
        %v1597 = vpack.c.bf16 %v1579, %v1578
        %v1598 = vpack.c.bf16 %v1581, %v1580
        %v1599 = vpack.c.bf16 %v1583, %v1582
        %v1600 = vld [vmem:[%s7] sm:$0xff]
        %v1601 = vld [vmem:[%s7 + $0x8] sm:$0xff]
        %v1602 = vld [vmem:[%s7 + $0x10] sm:$0xff]
        %v1603 = vld [vmem:[%s7 + $0x18] sm:$0xff]
        %v1604 = vld [vmem:[%s7 + $0x20] sm:$0xff]
        %v1605 = vld [vmem:[%s7 + $0x28] sm:$0xff]
        %v1606 = vld [vmem:[%s7 + $0x30] sm:$0xff]
        %v1607 = vld [vmem:[%s7 + $0x38] sm:$0xff]
        %v1608 = vld [vmem:[%s7 + $0x40] sm:$0xff]
        %v1609 = vld [vmem:[%s7 + $0x48] sm:$0xff]
        %v1610 = vld [vmem:[%s7 + $0x50] sm:$0xff]
        %v1611 = vld [vmem:[%s7 + $0x58] sm:$0xff]
        %v1612 = vld [vmem:[%s7 + $0x60] sm:$0xff]
        %v1613 = vld [vmem:[%s7 + $0x68] sm:$0xff]
        %v1614 = vld [vmem:[%s7 + $0x70] sm:$0xff]
        %v1615 = vld [vmem:[%s7 + $0x78] sm:$0xff]
        %v1616 = vld [vmem:[%s7 + $0x80] sm:$0xff]
        %v1617 = vld [vmem:[%s7 + $0x88] sm:$0xff]
        %v1618 = vld [vmem:[%s7 + $0x90] sm:$0xff]
        %v1619 = vld [vmem:[%s7 + $0x98] sm:$0xff]
        %v1620 = vld [vmem:[%s7 + $0xa0] sm:$0xff]
        %v1621 = vld [vmem:[%s7 + $0xa8] sm:$0xff]
        %v1622 = vld [vmem:[%s7 + $0xb0] sm:$0xff]
        %v1623 = vld [vmem:[%s7 + $0xb8] sm:$0xff]
        %v1624 = vld [vmem:[%s7 + $0xc0] sm:$0xff]
        %v1625 = vld [vmem:[%s7 + $0xc8] sm:$0xff]
        %v1626 = vld [vmem:[%s7 + $0xd0] sm:$0xff]
        %v1627 = vld [vmem:[%s7 + $0xd8] sm:$0xff]
        %v1628 = vld [vmem:[%s7 + $0xe0] sm:$0xff]
        %v1629 = vld [vmem:[%s7 + $0xe8] sm:$0xff]
        %v1630 = vld [vmem:[%s7 + $0xf0] sm:$0xff]
        %v1631 = vld [vmem:[%s7 + $0xf8] sm:$0xff]
        %v1632 = vld [vmem:[%s7 + $0x100] sm:$0xff]
        %v1633 = vld [vmem:[%s7 + $0x108] sm:$0xff]
        %v1634 = vld [vmem:[%s7 + $0x110] sm:$0xff]
        %v1635 = vld [vmem:[%s7 + $0x118] sm:$0xff]
        %v1636 = vld [vmem:[%s7 + $0x120] sm:$0xff]
        %v1637 = vld [vmem:[%s7 + $0x128] sm:$0xff]
        %v1638 = vld [vmem:[%s7 + $0x130] sm:$0xff]
        %v1639 = vld [vmem:[%s7 + $0x138] sm:$0xff]
        %v1640 = vld [vmem:[%s7 + $0x140] sm:$0xff]
        %v1641 = vld [vmem:[%s7 + $0x148] sm:$0xff]
        %v1642 = vld [vmem:[%s7 + $0x150] sm:$0xff]
        %v1643 = vld [vmem:[%s7 + $0x158] sm:$0xff]
        %v1644 = vld [vmem:[%s7 + $0x160] sm:$0xff]
        %v1645 = vld [vmem:[%s7 + $0x168] sm:$0xff]
        %v1646 = vld [vmem:[%s7 + $0x170] sm:$0xff]
        %v1647 = vld [vmem:[%s7 + $0x178] sm:$0xff]
        %v1648 = vld [vmem:[%s7 + $0x180] sm:$0xff]
        %v1649 = vld [vmem:[%s7 + $0x188] sm:$0xff]
        %v1650 = vld [vmem:[%s7 + $0x190] sm:$0xff]
        %v1651 = vld [vmem:[%s7 + $0x198] sm:$0xff]
        %v1652 = vld [vmem:[%s7 + $0x1a0] sm:$0xff]
        %v1653 = vld [vmem:[%s7 + $0x1a8] sm:$0xff]
        %v1654 = vld [vmem:[%s7 + $0x1b0] sm:$0xff]
        %v1655 = vld [vmem:[%s7 + $0x1b8] sm:$0xff]
        %v1656 = vld [vmem:[%s7 + $0x1c0] sm:$0xff]
        %v1657 = vld [vmem:[%s7 + $0x1c8] sm:$0xff]
        %v1658 = vld [vmem:[%s7 + $0x1d0] sm:$0xff]
        %v1659 = vld [vmem:[%s7 + $0x1d8] sm:$0xff]
        %v1660 = vld [vmem:[%s7 + $0x1e0] sm:$0xff]
        %v1661 = vld [vmem:[%s7 + $0x1e8] sm:$0xff]
        %v1662 = vld [vmem:[%s7 + $0x1f0] sm:$0xff]
        %v1663 = vld [vmem:[%s7 + $0x1f8] sm:$0xff]
        %v1664 = vld [vmem:[%s8] sm:$0xff]
        %v1665 = vld [vmem:[%s8 + $0x8] sm:$0xff]
        %v1666 = vld [vmem:[%s8 + $0x10] sm:$0xff]
        %v1667 = vld [vmem:[%s8 + $0x18] sm:$0xff]
        %v1668 = vld [vmem:[%s8 + $0x20] sm:$0xff]
        %v1669 = vld [vmem:[%s8 + $0x28] sm:$0xff]
        %v1670 = vld [vmem:[%s8 + $0x30] sm:$0xff]
        %v1671 = vld [vmem:[%s8 + $0x38] sm:$0xff]
        %v1672 = vld [vmem:[%s8 + $0x40] sm:$0xff]
        %v1673 = vld [vmem:[%s8 + $0x48] sm:$0xff]
        %v1674 = vld [vmem:[%s8 + $0x50] sm:$0xff]
        %v1675 = vld [vmem:[%s8 + $0x58] sm:$0xff]
        %v1676 = vld [vmem:[%s8 + $0x60] sm:$0xff]
        %v1677 = vld [vmem:[%s8 + $0x68] sm:$0xff]
        %v1678 = vld [vmem:[%s8 + $0x70] sm:$0xff]
        %v1679 = vld [vmem:[%s8 + $0x78] sm:$0xff]
        %v1680 = vld [vmem:[%s8 + $0x80] sm:$0xff]
        %v1681 = vld [vmem:[%s8 + $0x88] sm:$0xff]
        %v1682 = vld [vmem:[%s8 + $0x90] sm:$0xff]
        %v1683 = vld [vmem:[%s8 + $0x98] sm:$0xff]
        %v1684 = vld [vmem:[%s8 + $0xa0] sm:$0xff]
        %v1685 = vld [vmem:[%s8 + $0xa8] sm:$0xff]
        %v1686 = vld [vmem:[%s8 + $0xb0] sm:$0xff]
        %v1687 = vld [vmem:[%s8 + $0xb8] sm:$0xff]
        %v1688 = vld [vmem:[%s8 + $0xc0] sm:$0xff]
        %v1689 = vld [vmem:[%s8 + $0xc8] sm:$0xff]
        %v1690 = vld [vmem:[%s8 + $0xd0] sm:$0xff]
        %v1691 = vld [vmem:[%s8 + $0xd8] sm:$0xff]
        %v1692 = vld [vmem:[%s8 + $0xe0] sm:$0xff]
        %v1693 = vld [vmem:[%s8 + $0xe8] sm:$0xff]
        %v1694 = vld [vmem:[%s8 + $0xf0] sm:$0xff]
        %v1695 = vld [vmem:[%s8 + $0xf8] sm:$0xff]
        %v1696 = vld [vmem:[%s8 + $0x100] sm:$0xff]
        %v1697 = vld [vmem:[%s8 + $0x108] sm:$0xff]
        %v1698 = vld [vmem:[%s8 + $0x110] sm:$0xff]
        %v1699 = vld [vmem:[%s8 + $0x118] sm:$0xff]
        %v1700 = vld [vmem:[%s8 + $0x120] sm:$0xff]
        %v1701 = vld [vmem:[%s8 + $0x128] sm:$0xff]
        %v1702 = vld [vmem:[%s8 + $0x130] sm:$0xff]
        %v1703 = vld [vmem:[%s8 + $0x138] sm:$0xff]
        %v1704 = vld [vmem:[%s8 + $0x140] sm:$0xff]
        %v1705 = vld [vmem:[%s8 + $0x148] sm:$0xff]
        %v1706 = vld [vmem:[%s8 + $0x150] sm:$0xff]
        %v1707 = vld [vmem:[%s8 + $0x158] sm:$0xff]
        %v1708 = vld [vmem:[%s8 + $0x160] sm:$0xff]
        %v1709 = vld [vmem:[%s8 + $0x168] sm:$0xff]
        %v1710 = vld [vmem:[%s8 + $0x170] sm:$0xff]
        %v1711 = vld [vmem:[%s8 + $0x178] sm:$0xff]
        %v1712 = vld [vmem:[%s8 + $0x180] sm:$0xff]
        %v1713 = vld [vmem:[%s8 + $0x188] sm:$0xff]
        %v1714 = vld [vmem:[%s8 + $0x190] sm:$0xff]
        %v1715 = vld [vmem:[%s8 + $0x198] sm:$0xff]
        %v1716 = vld [vmem:[%s8 + $0x1a0] sm:$0xff]
        %v1717 = vld [vmem:[%s8 + $0x1a8] sm:$0xff]
        %v1718 = vld [vmem:[%s8 + $0x1b0] sm:$0xff]
        %v1719 = vld [vmem:[%s8 + $0x1b8] sm:$0xff]
        %v1720 = vld [vmem:[%s8 + $0x1c0] sm:$0xff]
        %v1721 = vld [vmem:[%s8 + $0x1c8] sm:$0xff]
        %v1722 = vld [vmem:[%s8 + $0x1d0] sm:$0xff]
        %v1723 = vld [vmem:[%s8 + $0x1d8] sm:$0xff]
        %v1724 = vld [vmem:[%s8 + $0x1e0] sm:$0xff]
        %v1725 = vld [vmem:[%s8 + $0x1e8] sm:$0xff]
        %v1726 = vld [vmem:[%s8 + $0x1f0] sm:$0xff]
        %v1727 = vld [vmem:[%s8 + $0x1f8] sm:$0xff]
        %1729 = vset.pattern.permute.xlu0 0
        %1730 = vperm.xlu0 %1729, %v1664
        %v1731 = vpop.permute.xlu0 %1730
        %1734 = vset.pattern.permute.xlu0 0
        %1735 = vperm.xlu0 %1734, %v1665
        %v1736 = vpop.permute.xlu0 %1735
        %1739 = vset.pattern.permute.xlu0 0
        %1740 = vperm.xlu0 %1739, %v1666
        %v1741 = vpop.permute.xlu0 %1740
        %1744 = vset.pattern.permute.xlu0 0
        %1745 = vperm.xlu0 %1744, %v1667
        %v1746 = vpop.permute.xlu0 %1745
        %1749 = vset.pattern.permute.xlu0 0
        %1750 = vperm.xlu0 %1749, %v1668
        %v1751 = vpop.permute.xlu0 %1750
        %1754 = vset.pattern.permute.xlu0 0
        %1755 = vperm.xlu0 %1754, %v1669
        %v1756 = vpop.permute.xlu0 %1755
        %1759 = vset.pattern.permute.xlu0 0
        %1760 = vperm.xlu0 %1759, %v1670
        %v1761 = vpop.permute.xlu0 %1760
        %1764 = vset.pattern.permute.xlu0 0
        %1765 = vperm.xlu0 %1764, %v1671
        %v1766 = vpop.permute.xlu0 %1765
        %1769 = vset.pattern.permute.xlu0 0
        %1770 = vperm.xlu0 %1769, %v1672
        %v1771 = vpop.permute.xlu0 %1770
        %1774 = vset.pattern.permute.xlu0 0
        %1775 = vperm.xlu0 %1774, %v1673
        %v1776 = vpop.permute.xlu0 %1775
        %1779 = vset.pattern.permute.xlu0 0
        %1780 = vperm.xlu0 %1779, %v1674
        %v1781 = vpop.permute.xlu0 %1780
        %1784 = vset.pattern.permute.xlu0 0
        %1785 = vperm.xlu0 %1784, %v1675
        %v1786 = vpop.permute.xlu0 %1785
        %1789 = vset.pattern.permute.xlu0 0
        %1790 = vperm.xlu0 %1789, %v1676
        %v1791 = vpop.permute.xlu0 %1790
        %1794 = vset.pattern.permute.xlu0 0
        %1795 = vperm.xlu0 %1794, %v1677
        %v1796 = vpop.permute.xlu0 %1795
        %1799 = vset.pattern.permute.xlu0 0
        %1800 = vperm.xlu0 %1799, %v1678
        %v1801 = vpop.permute.xlu0 %1800
        %1804 = vset.pattern.permute.xlu0 0
        %1805 = vperm.xlu0 %1804, %v1679
        %v1806 = vpop.permute.xlu0 %1805
        %1809 = vset.pattern.permute.xlu0 0
        %1810 = vperm.xlu0 %1809, %v1680
        %v1811 = vpop.permute.xlu0 %1810
        %1814 = vset.pattern.permute.xlu0 0
        %1815 = vperm.xlu0 %1814, %v1681
        %v1816 = vpop.permute.xlu0 %1815
        %1819 = vset.pattern.permute.xlu0 0
        %1820 = vperm.xlu0 %1819, %v1682
        %v1821 = vpop.permute.xlu0 %1820
        %1824 = vset.pattern.permute.xlu0 0
        %1825 = vperm.xlu0 %1824, %v1683
        %v1826 = vpop.permute.xlu0 %1825
        %1829 = vset.pattern.permute.xlu0 0
        %1830 = vperm.xlu0 %1829, %v1684
        %v1831 = vpop.permute.xlu0 %1830
        %1834 = vset.pattern.permute.xlu0 0
        %1835 = vperm.xlu0 %1834, %v1685
        %v1836 = vpop.permute.xlu0 %1835
        %1839 = vset.pattern.permute.xlu0 0
        %1840 = vperm.xlu0 %1839, %v1686
        %v1841 = vpop.permute.xlu0 %1840
        %1844 = vset.pattern.permute.xlu0 0
        %1845 = vperm.xlu0 %1844, %v1687
        %v1846 = vpop.permute.xlu0 %1845
        %1849 = vset.pattern.permute.xlu0 0
        %1850 = vperm.xlu0 %1849, %v1688
        %v1851 = vpop.permute.xlu0 %1850
        %1854 = vset.pattern.permute.xlu0 0
        %1855 = vperm.xlu0 %1854, %v1689
        %v1856 = vpop.permute.xlu0 %1855
        %1859 = vset.pattern.permute.xlu0 0
        %1860 = vperm.xlu0 %1859, %v1690
        %v1861 = vpop.permute.xlu0 %1860
        %1864 = vset.pattern.permute.xlu0 0
        %1865 = vperm.xlu0 %1864, %v1691
        %v1866 = vpop.permute.xlu0 %1865
        %1869 = vset.pattern.permute.xlu0 0
        %1870 = vperm.xlu0 %1869, %v1692
        %v1871 = vpop.permute.xlu0 %1870
        %1874 = vset.pattern.permute.xlu0 0
        %1875 = vperm.xlu0 %1874, %v1693
        %v1876 = vpop.permute.xlu0 %1875
        %1879 = vset.pattern.permute.xlu0 0
        %1880 = vperm.xlu0 %1879, %v1694
        %v1881 = vpop.permute.xlu0 %1880
        %1884 = vset.pattern.permute.xlu0 0
        %1885 = vperm.xlu0 %1884, %v1695
        %v1886 = vpop.permute.xlu0 %1885
        %1889 = vset.pattern.permute.xlu0 0
        %1890 = vperm.xlu0 %1889, %v1696
        %v1891 = vpop.permute.xlu0 %1890
        %1894 = vset.pattern.permute.xlu0 0
        %1895 = vperm.xlu0 %1894, %v1697
        %v1896 = vpop.permute.xlu0 %1895
        %1899 = vset.pattern.permute.xlu0 0
        %1900 = vperm.xlu0 %1899, %v1698
        %v1901 = vpop.permute.xlu0 %1900
        %1904 = vset.pattern.permute.xlu0 0
        %1905 = vperm.xlu0 %1904, %v1699
        %v1906 = vpop.permute.xlu0 %1905
        %1909 = vset.pattern.permute.xlu0 0
        %1910 = vperm.xlu0 %1909, %v1700
        %v1911 = vpop.permute.xlu0 %1910
        %1914 = vset.pattern.permute.xlu0 0
        %1915 = vperm.xlu0 %1914, %v1701
        %v1916 = vpop.permute.xlu0 %1915
        %1919 = vset.pattern.permute.xlu0 0
        %1920 = vperm.xlu0 %1919, %v1702
        %v1921 = vpop.permute.xlu0 %1920
        %1924 = vset.pattern.permute.xlu0 0
        %1925 = vperm.xlu0 %1924, %v1703
        %v1926 = vpop.permute.xlu0 %1925
        %1929 = vset.pattern.permute.xlu0 0
        %1930 = vperm.xlu0 %1929, %v1704
        %v1931 = vpop.permute.xlu0 %1930
        %1934 = vset.pattern.permute.xlu0 0
        %1935 = vperm.xlu0 %1934, %v1705
        %v1936 = vpop.permute.xlu0 %1935
        %1939 = vset.pattern.permute.xlu0 0
        %1940 = vperm.xlu0 %1939, %v1706
        %v1941 = vpop.permute.xlu0 %1940
        %1944 = vset.pattern.permute.xlu0 0
        %1945 = vperm.xlu0 %1944, %v1707
        %v1946 = vpop.permute.xlu0 %1945
        %1949 = vset.pattern.permute.xlu0 0
        %1950 = vperm.xlu0 %1949, %v1708
        %v1951 = vpop.permute.xlu0 %1950
        %1954 = vset.pattern.permute.xlu0 0
        %1955 = vperm.xlu0 %1954, %v1709
        %v1956 = vpop.permute.xlu0 %1955
        %1959 = vset.pattern.permute.xlu0 0
        %1960 = vperm.xlu0 %1959, %v1710
        %v1961 = vpop.permute.xlu0 %1960
        %1964 = vset.pattern.permute.xlu0 0
        %1965 = vperm.xlu0 %1964, %v1711
        %v1966 = vpop.permute.xlu0 %1965
        %1969 = vset.pattern.permute.xlu0 0
        %1970 = vperm.xlu0 %1969, %v1712
        %v1971 = vpop.permute.xlu0 %1970
        %1974 = vset.pattern.permute.xlu0 0
        %1975 = vperm.xlu0 %1974, %v1713
        %v1976 = vpop.permute.xlu0 %1975
        %1979 = vset.pattern.permute.xlu0 0
        %1980 = vperm.xlu0 %1979, %v1714
        %v1981 = vpop.permute.xlu0 %1980
        %1984 = vset.pattern.permute.xlu0 0
        %1985 = vperm.xlu0 %1984, %v1715
        %v1986 = vpop.permute.xlu0 %1985
        %1989 = vset.pattern.permute.xlu0 0
        %1990 = vperm.xlu0 %1989, %v1716
        %v1991 = vpop.permute.xlu0 %1990
        %1994 = vset.pattern.permute.xlu0 0
        %1995 = vperm.xlu0 %1994, %v1717
        %v1996 = vpop.permute.xlu0 %1995
        %1999 = vset.pattern.permute.xlu0 0
        %2000 = vperm.xlu0 %1999, %v1718
        %v2001 = vpop.permute.xlu0 %2000
        %2004 = vset.pattern.permute.xlu0 0
        %2005 = vperm.xlu0 %2004, %v1719
        %v2006 = vpop.permute.xlu0 %2005
        %2009 = vset.pattern.permute.xlu0 0
        %2010 = vperm.xlu0 %2009, %v1720
        %v2011 = vpop.permute.xlu0 %2010
        %2014 = vset.pattern.permute.xlu0 0
        %2015 = vperm.xlu0 %2014, %v1721
        %v2016 = vpop.permute.xlu0 %2015
        %2019 = vset.pattern.permute.xlu0 0
        %2020 = vperm.xlu0 %2019, %v1722
        %v2021 = vpop.permute.xlu0 %2020
        %2024 = vset.pattern.permute.xlu0 0
        %2025 = vperm.xlu0 %2024, %v1723
        %v2026 = vpop.permute.xlu0 %2025
        %2029 = vset.pattern.permute.xlu0 0
        %2030 = vperm.xlu0 %2029, %v1724
        %v2031 = vpop.permute.xlu0 %2030
        %2034 = vset.pattern.permute.xlu0 0
        %2035 = vperm.xlu0 %2034, %v1725
        %v2036 = vpop.permute.xlu0 %2035
        %2039 = vset.pattern.permute.xlu0 0
        %2040 = vperm.xlu0 %2039, %v1726
        %v2041 = vpop.permute.xlu0 %2040
        %2044 = vset.pattern.permute.xlu0 0
        %2045 = vperm.xlu0 %2044, %v1727
        %v2046 = vpop.permute.xlu0 %2045
        %v2112 = vunpack.c.l.b16 %v1600
        %v2113 = vunpack.c.h.b16 %v1600
        %v2114 = vunpack.c.l.b16 %v1601
        %v2115 = vunpack.c.h.b16 %v1601
        %v2116 = vunpack.c.l.b16 %v1602
        %v2117 = vunpack.c.h.b16 %v1602
        %v2118 = vunpack.c.l.b16 %v1603
        %v2119 = vunpack.c.h.b16 %v1603
        %v2120 = vunpack.c.l.b16 %v1604
        %v2121 = vunpack.c.h.b16 %v1604
        %v2122 = vunpack.c.l.b16 %v1605
        %v2123 = vunpack.c.h.b16 %v1605
        %v2124 = vunpack.c.l.b16 %v1606
        %v2125 = vunpack.c.h.b16 %v1606
        %v2126 = vunpack.c.l.b16 %v1607
        %v2127 = vunpack.c.h.b16 %v1607
        %v2128 = vunpack.c.l.b16 %v1608
        %v2129 = vunpack.c.h.b16 %v1608
        %v2130 = vunpack.c.l.b16 %v1609
        %v2131 = vunpack.c.h.b16 %v1609
        %v2132 = vunpack.c.l.b16 %v1610
        %v2133 = vunpack.c.h.b16 %v1610
        %v2134 = vunpack.c.l.b16 %v1611
        %v2135 = vunpack.c.h.b16 %v1611
        %v2136 = vunpack.c.l.b16 %v1612
        %v2137 = vunpack.c.h.b16 %v1612
        %v2138 = vunpack.c.l.b16 %v1613
        %v2139 = vunpack.c.h.b16 %v1613
        %v2140 = vunpack.c.l.b16 %v1614
        %v2141 = vunpack.c.h.b16 %v1614
        %v2142 = vunpack.c.l.b16 %v1615
        %v2143 = vunpack.c.h.b16 %v1615
        %v2144 = vunpack.c.l.b16 %v1616
        %v2145 = vunpack.c.h.b16 %v1616
        %v2146 = vunpack.c.l.b16 %v1617
        %v2147 = vunpack.c.h.b16 %v1617
        %v2148 = vunpack.c.l.b16 %v1618
        %v2149 = vunpack.c.h.b16 %v1618
        %v2150 = vunpack.c.l.b16 %v1619
        %v2151 = vunpack.c.h.b16 %v1619
        %v2152 = vunpack.c.l.b16 %v1620
        %v2153 = vunpack.c.h.b16 %v1620
        %v2154 = vunpack.c.l.b16 %v1621
        %v2155 = vunpack.c.h.b16 %v1621
        %v2156 = vunpack.c.l.b16 %v1622
        %v2157 = vunpack.c.h.b16 %v1622
        %v2158 = vunpack.c.l.b16 %v1623
        %v2159 = vunpack.c.h.b16 %v1623
        %v2160 = vunpack.c.l.b16 %v1624
        %v2161 = vunpack.c.h.b16 %v1624
        %v2162 = vunpack.c.l.b16 %v1625
        %v2163 = vunpack.c.h.b16 %v1625
        %v2164 = vunpack.c.l.b16 %v1626
        %v2165 = vunpack.c.h.b16 %v1626
        %v2166 = vunpack.c.l.b16 %v1627
        %v2167 = vunpack.c.h.b16 %v1627
        %v2168 = vunpack.c.l.b16 %v1628
        %v2169 = vunpack.c.h.b16 %v1628
        %v2170 = vunpack.c.l.b16 %v1629
        %v2171 = vunpack.c.h.b16 %v1629
        %v2172 = vunpack.c.l.b16 %v1630
        %v2173 = vunpack.c.h.b16 %v1630
        %v2174 = vunpack.c.l.b16 %v1631
        %v2175 = vunpack.c.h.b16 %v1631
        %v2176 = vunpack.c.l.b16 %v1632
        %v2177 = vunpack.c.h.b16 %v1632
        %v2178 = vunpack.c.l.b16 %v1633
        %v2179 = vunpack.c.h.b16 %v1633
        %v2180 = vunpack.c.l.b16 %v1634
        %v2181 = vunpack.c.h.b16 %v1634
        %v2182 = vunpack.c.l.b16 %v1635
        %v2183 = vunpack.c.h.b16 %v1635
        %v2184 = vunpack.c.l.b16 %v1636
        %v2185 = vunpack.c.h.b16 %v1636
        %v2186 = vunpack.c.l.b16 %v1637
        %v2187 = vunpack.c.h.b16 %v1637
        %v2188 = vunpack.c.l.b16 %v1638
        %v2189 = vunpack.c.h.b16 %v1638
        %v2190 = vunpack.c.l.b16 %v1639
        %v2191 = vunpack.c.h.b16 %v1639
        %v2192 = vunpack.c.l.b16 %v1640
        %v2193 = vunpack.c.h.b16 %v1640
        %v2194 = vunpack.c.l.b16 %v1641
        %v2195 = vunpack.c.h.b16 %v1641
        %v2196 = vunpack.c.l.b16 %v1642
        %v2197 = vunpack.c.h.b16 %v1642
        %v2198 = vunpack.c.l.b16 %v1643
        %v2199 = vunpack.c.h.b16 %v1643
        %v2200 = vunpack.c.l.b16 %v1644
        %v2201 = vunpack.c.h.b16 %v1644
        %v2202 = vunpack.c.l.b16 %v1645
        %v2203 = vunpack.c.h.b16 %v1645
        %v2204 = vunpack.c.l.b16 %v1646
        %v2205 = vunpack.c.h.b16 %v1646
        %v2206 = vunpack.c.l.b16 %v1647
        %v2207 = vunpack.c.h.b16 %v1647
        %v2208 = vunpack.c.l.b16 %v1648
        %v2209 = vunpack.c.h.b16 %v1648
        %v2210 = vunpack.c.l.b16 %v1649
        %v2211 = vunpack.c.h.b16 %v1649
        %v2212 = vunpack.c.l.b16 %v1650
        %v2213 = vunpack.c.h.b16 %v1650
        %v2214 = vunpack.c.l.b16 %v1651
        %v2215 = vunpack.c.h.b16 %v1651
        %v2216 = vunpack.c.l.b16 %v1652
        %v2217 = vunpack.c.h.b16 %v1652
        %v2218 = vunpack.c.l.b16 %v1653
        %v2219 = vunpack.c.h.b16 %v1653
        %v2220 = vunpack.c.l.b16 %v1654
        %v2221 = vunpack.c.h.b16 %v1654
        %v2222 = vunpack.c.l.b16 %v1655
        %v2223 = vunpack.c.h.b16 %v1655
        %v2224 = vunpack.c.l.b16 %v1656
        %v2225 = vunpack.c.h.b16 %v1656
        %v2226 = vunpack.c.l.b16 %v1657
        %v2227 = vunpack.c.h.b16 %v1657
        %v2228 = vunpack.c.l.b16 %v1658
        %v2229 = vunpack.c.h.b16 %v1658
        %v2230 = vunpack.c.l.b16 %v1659
        %v2231 = vunpack.c.h.b16 %v1659
        %v2232 = vunpack.c.l.b16 %v1660
        %v2233 = vunpack.c.h.b16 %v1660
        %v2234 = vunpack.c.l.b16 %v1661
        %v2235 = vunpack.c.h.b16 %v1661
        %v2236 = vunpack.c.l.b16 %v1662
        %v2237 = vunpack.c.h.b16 %v1662
        %v2238 = vunpack.c.l.b16 %v1663
        %v2239 = vunpack.c.h.b16 %v1663
        %v2240 = vpack.c.b16 %v2114, %v2112
        %v2241 = vpack.c.b16 %v2115, %v2113
        %v2242 = vpack.c.b16 %v2118, %v2116
        %v2243 = vpack.c.b16 %v2119, %v2117
        %v2244 = vpack.c.b16 %v2122, %v2120
        %v2245 = vpack.c.b16 %v2123, %v2121
        %v2246 = vpack.c.b16 %v2126, %v2124
        %v2247 = vpack.c.b16 %v2127, %v2125
        %v2248 = vpack.c.b16 %v2130, %v2128
        %v2249 = vpack.c.b16 %v2131, %v2129
        %v2250 = vpack.c.b16 %v2134, %v2132
        %v2251 = vpack.c.b16 %v2135, %v2133
        %v2252 = vpack.c.b16 %v2138, %v2136
        %v2253 = vpack.c.b16 %v2139, %v2137
        %v2254 = vpack.c.b16 %v2142, %v2140
        %v2255 = vpack.c.b16 %v2143, %v2141
        %v2256 = vpack.c.b16 %v2146, %v2144
        %v2257 = vpack.c.b16 %v2147, %v2145
        %v2258 = vpack.c.b16 %v2150, %v2148
        %v2259 = vpack.c.b16 %v2151, %v2149
        %v2260 = vpack.c.b16 %v2154, %v2152
        %v2261 = vpack.c.b16 %v2155, %v2153
        %v2262 = vpack.c.b16 %v2158, %v2156
        %v2263 = vpack.c.b16 %v2159, %v2157
        %v2264 = vpack.c.b16 %v2162, %v2160
        %v2265 = vpack.c.b16 %v2163, %v2161
        %v2266 = vpack.c.b16 %v2166, %v2164
        %v2267 = vpack.c.b16 %v2167, %v2165
        %v2268 = vpack.c.b16 %v2170, %v2168
        %v2269 = vpack.c.b16 %v2171, %v2169
        %v2270 = vpack.c.b16 %v2174, %v2172
        %v2271 = vpack.c.b16 %v2175, %v2173
        %v2272 = vpack.c.b16 %v2178, %v2176
        %v2273 = vpack.c.b16 %v2179, %v2177
        %v2274 = vpack.c.b16 %v2182, %v2180
        %v2275 = vpack.c.b16 %v2183, %v2181
        %v2276 = vpack.c.b16 %v2186, %v2184
        %v2277 = vpack.c.b16 %v2187, %v2185
        %v2278 = vpack.c.b16 %v2190, %v2188
        %v2279 = vpack.c.b16 %v2191, %v2189
        %v2280 = vpack.c.b16 %v2194, %v2192
        %v2281 = vpack.c.b16 %v2195, %v2193
        %v2282 = vpack.c.b16 %v2198, %v2196
        %v2283 = vpack.c.b16 %v2199, %v2197
        %v2284 = vpack.c.b16 %v2202, %v2200
        %v2285 = vpack.c.b16 %v2203, %v2201
        %v2286 = vpack.c.b16 %v2206, %v2204
        %v2287 = vpack.c.b16 %v2207, %v2205
        %v2288 = vpack.c.b16 %v2210, %v2208
        %v2289 = vpack.c.b16 %v2211, %v2209
        %v2290 = vpack.c.b16 %v2214, %v2212
        %v2291 = vpack.c.b16 %v2215, %v2213
        %v2292 = vpack.c.b16 %v2218, %v2216
        %v2293 = vpack.c.b16 %v2219, %v2217
        %v2294 = vpack.c.b16 %v2222, %v2220
        %v2295 = vpack.c.b16 %v2223, %v2221
        %v2296 = vpack.c.b16 %v2226, %v2224
        %v2297 = vpack.c.b16 %v2227, %v2225
        %v2298 = vpack.c.b16 %v2230, %v2228
        %v2299 = vpack.c.b16 %v2231, %v2229
        %v2300 = vpack.c.b16 %v2234, %v2232
        %v2301 = vpack.c.b16 %v2235, %v2233
        %v2302 = vpack.c.b16 %v2238, %v2236
        %v2303 = vpack.c.b16 %v2239, %v2237
        %2368 = vmatpush.bf16.msra.mxu0 %v1591
        %2369 = vmatpush.bf16.msra.mxu0 %v1590
        %2370 = vmatpush.bf16.msra.mxu0 %v1589
        %2371 = vmatpush.bf16.msra.mxu0 %v1588
        %2372 = vmatpush.bf16.msra.mxu0 %v1587
        %2373 = vmatpush.bf16.msra.mxu0 %v1586
        %2374 = vmatpush.bf16.msra.mxu0 %v1585
        %2375 = vmatpush.bf16.msra.mxu0 %v1584
        %2376 = vmatmul.bf16.gmra.mxu0 %v2240
        %v2377 = vpop.f32.mrf.mxu0
        %v2378 = vadd.f32 %v1731, %v2377
        %v2379 = vpop.f32.mrf.mxu0
        %v2380 = vadd.f32 %v1736, %v2379
        %2381 = vmatmul.bf16.gmra.mxu0 %v2242
        %v2382 = vpop.f32.mrf.mxu0
        %v2383 = vadd.f32 %v1741, %v2382
        %v2384 = vpop.f32.mrf.mxu0
        %v2385 = vadd.f32 %v1746, %v2384
        %2386 = vmatmul.bf16.gmra.mxu0 %v2244
        %v2387 = vpop.f32.mrf.mxu0
        %v2388 = vadd.f32 %v1751, %v2387
        %v2389 = vpop.f32.mrf.mxu0
        %v2390 = vadd.f32 %v1756, %v2389
        %2391 = vmatmul.bf16.gmra.mxu0 %v2246
        %v2392 = vpop.f32.mrf.mxu0
        %v2393 = vadd.f32 %v1761, %v2392
        %v2394 = vpop.f32.mrf.mxu0
        %v2395 = vadd.f32 %v1766, %v2394
        %2396 = vmatmul.bf16.gmra.mxu0 %v2248
        %v2397 = vpop.f32.mrf.mxu0
        %v2398 = vadd.f32 %v1771, %v2397
        %v2399 = vpop.f32.mrf.mxu0
        %v2400 = vadd.f32 %v1776, %v2399
        %2401 = vmatmul.bf16.gmra.mxu0 %v2250
        %v2402 = vpop.f32.mrf.mxu0
        %v2403 = vadd.f32 %v1781, %v2402
        %v2404 = vpop.f32.mrf.mxu0
        %v2405 = vadd.f32 %v1786, %v2404
        %2406 = vmatmul.bf16.gmra.mxu0 %v2252
        %v2407 = vpop.f32.mrf.mxu0
        %v2408 = vadd.f32 %v1791, %v2407
        %v2409 = vpop.f32.mrf.mxu0
        %v2410 = vadd.f32 %v1796, %v2409
        %2411 = vmatmul.bf16.gmra.mxu0 %v2254
        %v2412 = vpop.f32.mrf.mxu0
        %v2413 = vadd.f32 %v1801, %v2412
        %v2414 = vpop.f32.mrf.mxu0
        %v2415 = vadd.f32 %v1806, %v2414
        %2416 = vmatmul.bf16.gmra.mxu0 %v2256
        %v2417 = vpop.f32.mrf.mxu0
        %v2418 = vadd.f32 %v1811, %v2417
        %v2419 = vpop.f32.mrf.mxu0
        %v2420 = vadd.f32 %v1816, %v2419
        %2421 = vmatmul.bf16.gmra.mxu0 %v2258
        %v2422 = vpop.f32.mrf.mxu0
        %v2423 = vadd.f32 %v1821, %v2422
        %v2424 = vpop.f32.mrf.mxu0
        %v2425 = vadd.f32 %v1826, %v2424
        %2426 = vmatmul.bf16.gmra.mxu0 %v2260
        %v2427 = vpop.f32.mrf.mxu0
        %v2428 = vadd.f32 %v1831, %v2427
        %v2429 = vpop.f32.mrf.mxu0
        %v2430 = vadd.f32 %v1836, %v2429
        %2431 = vmatmul.bf16.gmra.mxu0 %v2262
        %v2432 = vpop.f32.mrf.mxu0
        %v2433 = vadd.f32 %v1841, %v2432
        %v2434 = vpop.f32.mrf.mxu0
        %v2435 = vadd.f32 %v1846, %v2434
        %2436 = vmatmul.bf16.gmra.mxu0 %v2264
        %v2437 = vpop.f32.mrf.mxu0
        %v2438 = vadd.f32 %v1851, %v2437
        %v2439 = vpop.f32.mrf.mxu0
        %v2440 = vadd.f32 %v1856, %v2439
        %2441 = vmatmul.bf16.gmra.mxu0 %v2266
        %v2442 = vpop.f32.mrf.mxu0
        %v2443 = vadd.f32 %v1861, %v2442
        %v2444 = vpop.f32.mrf.mxu0
        %v2445 = vadd.f32 %v1866, %v2444
        %2446 = vmatmul.bf16.gmra.mxu0 %v2268
        %v2447 = vpop.f32.mrf.mxu0
        %v2448 = vadd.f32 %v1871, %v2447
        %v2449 = vpop.f32.mrf.mxu0
        %v2450 = vadd.f32 %v1876, %v2449
        %2451 = vmatmul.bf16.gmra.mxu0 %v2270
        %v2452 = vpop.f32.mrf.mxu0
        %v2453 = vadd.f32 %v1881, %v2452
        %v2454 = vpop.f32.mrf.mxu0
        %v2455 = vadd.f32 %v1886, %v2454
        %2456 = vmatmul.bf16.gmra.mxu0 %v2272
        %v2457 = vpop.f32.mrf.mxu0
        %v2458 = vadd.f32 %v1891, %v2457
        %v2459 = vpop.f32.mrf.mxu0
        %v2460 = vadd.f32 %v1896, %v2459
        %2461 = vmatmul.bf16.gmra.mxu0 %v2274
        %v2462 = vpop.f32.mrf.mxu0
        %v2463 = vadd.f32 %v1901, %v2462
        %v2464 = vpop.f32.mrf.mxu0
        %v2465 = vadd.f32 %v1906, %v2464
        %2466 = vmatmul.bf16.gmra.mxu0 %v2276
        %v2467 = vpop.f32.mrf.mxu0
        %v2468 = vadd.f32 %v1911, %v2467
        %v2469 = vpop.f32.mrf.mxu0
        %v2470 = vadd.f32 %v1916, %v2469
        %2471 = vmatmul.bf16.gmra.mxu0 %v2278
        %v2472 = vpop.f32.mrf.mxu0
        %v2473 = vadd.f32 %v1921, %v2472
        %v2474 = vpop.f32.mrf.mxu0
        %v2475 = vadd.f32 %v1926, %v2474
        %2476 = vmatmul.bf16.gmra.mxu0 %v2280
        %v2477 = vpop.f32.mrf.mxu0
        %v2478 = vadd.f32 %v1931, %v2477
        %v2479 = vpop.f32.mrf.mxu0
        %v2480 = vadd.f32 %v1936, %v2479
        %2481 = vmatmul.bf16.gmra.mxu0 %v2282
        %v2482 = vpop.f32.mrf.mxu0
        %v2483 = vadd.f32 %v1941, %v2482
        %v2484 = vpop.f32.mrf.mxu0
        %v2485 = vadd.f32 %v1946, %v2484
        %2486 = vmatmul.bf16.gmra.mxu0 %v2284
        %v2487 = vpop.f32.mrf.mxu0
        %v2488 = vadd.f32 %v1951, %v2487
        %v2489 = vpop.f32.mrf.mxu0
        %v2490 = vadd.f32 %v1956, %v2489
        %2491 = vmatmul.bf16.gmra.mxu0 %v2286
        %v2492 = vpop.f32.mrf.mxu0
        %v2493 = vadd.f32 %v1961, %v2492
        %v2494 = vpop.f32.mrf.mxu0
        %v2495 = vadd.f32 %v1966, %v2494
        %2496 = vmatmul.bf16.gmra.mxu0 %v2288
        %v2497 = vpop.f32.mrf.mxu0
        %v2498 = vadd.f32 %v1971, %v2497
        %v2499 = vpop.f32.mrf.mxu0
        %v2500 = vadd.f32 %v1976, %v2499
        %2501 = vmatmul.bf16.gmra.mxu0 %v2290
        %v2502 = vpop.f32.mrf.mxu0
        %v2503 = vadd.f32 %v1981, %v2502
        %v2504 = vpop.f32.mrf.mxu0
        %v2505 = vadd.f32 %v1986, %v2504
        %2506 = vmatmul.bf16.gmra.mxu0 %v2292
        %v2507 = vpop.f32.mrf.mxu0
        %v2508 = vadd.f32 %v1991, %v2507
        %v2509 = vpop.f32.mrf.mxu0
        %v2510 = vadd.f32 %v1996, %v2509
        %2511 = vmatmul.bf16.gmra.mxu0 %v2294
        %v2512 = vpop.f32.mrf.mxu0
        %v2513 = vadd.f32 %v2001, %v2512
        %v2514 = vpop.f32.mrf.mxu0
        %v2515 = vadd.f32 %v2006, %v2514
        %2516 = vmatmul.bf16.gmra.mxu0 %v2296
        %v2517 = vpop.f32.mrf.mxu0
        %v2518 = vadd.f32 %v2011, %v2517
        %v2519 = vpop.f32.mrf.mxu0
        %v2520 = vadd.f32 %v2016, %v2519
        %2521 = vmatmul.bf16.gmra.mxu0 %v2298
        %v2522 = vpop.f32.mrf.mxu0
        %v2523 = vadd.f32 %v2021, %v2522
        %v2524 = vpop.f32.mrf.mxu0
        %v2525 = vadd.f32 %v2026, %v2524
        %2526 = vmatmul.bf16.gmra.mxu0 %v2300
        %v2527 = vpop.f32.mrf.mxu0
        %v2528 = vadd.f32 %v2031, %v2527
        %v2529 = vpop.f32.mrf.mxu0
        %v2530 = vadd.f32 %v2036, %v2529
        %2531 = vmatmul.bf16.gmra.mxu0 %v2302
        %v2532 = vpop.f32.mrf.mxu0
        %v2533 = vadd.f32 %v2041, %v2532
        %v2534 = vpop.f32.mrf.mxu0
        %v2535 = vadd.f32 %v2046, %v2534
        %2536 = vdwg.mxu0
        %2537 = vmatpush.bf16.msra.mxu0 %v1599
        %2538 = vmatpush.bf16.msra.mxu0 %v1598
        %2539 = vmatpush.bf16.msra.mxu0 %v1597
        %2540 = vmatpush.bf16.msra.mxu0 %v1596
        %2541 = vmatpush.bf16.msra.mxu0 %v1595
        %2542 = vmatpush.bf16.msra.mxu0 %v1594
        %2543 = vmatpush.bf16.msra.mxu0 %v1593
        %2544 = vmatpush.bf16.msra.mxu0 %v1592
        %2545 = vmatmul.bf16.gmra.mxu0 %v2241
        %v2546 = vpop.f32.mrf.mxu0
        %v2547 = vadd.f32 %v2378, %v2546
        %v2548 = vpop.f32.mrf.mxu0
        %v2549 = vadd.f32 %v2380, %v2548
        %2550 = vmatmul.bf16.gmra.mxu0 %v2243
        %v2551 = vpop.f32.mrf.mxu0
        %v2552 = vadd.f32 %v2383, %v2551
        %v2553 = vpop.f32.mrf.mxu0
        %v2554 = vadd.f32 %v2385, %v2553
        %2555 = vmatmul.bf16.gmra.mxu0 %v2245
        %v2556 = vpop.f32.mrf.mxu0
        %v2557 = vadd.f32 %v2388, %v2556
        %v2558 = vpop.f32.mrf.mxu0
        %v2559 = vadd.f32 %v2390, %v2558
        %2560 = vmatmul.bf16.gmra.mxu0 %v2247
        %v2561 = vpop.f32.mrf.mxu0
        %v2562 = vadd.f32 %v2393, %v2561
        %v2563 = vpop.f32.mrf.mxu0
        %v2564 = vadd.f32 %v2395, %v2563
        %2565 = vmatmul.bf16.gmra.mxu0 %v2249
        %v2566 = vpop.f32.mrf.mxu0
        %v2567 = vadd.f32 %v2398, %v2566
        %v2568 = vpop.f32.mrf.mxu0
        %v2569 = vadd.f32 %v2400, %v2568
        %2570 = vmatmul.bf16.gmra.mxu0 %v2251
        %v2571 = vpop.f32.mrf.mxu0
        %v2572 = vadd.f32 %v2403, %v2571
        %v2573 = vpop.f32.mrf.mxu0
        %v2574 = vadd.f32 %v2405, %v2573
        %2575 = vmatmul.bf16.gmra.mxu0 %v2253
        %v2576 = vpop.f32.mrf.mxu0
        %v2577 = vadd.f32 %v2408, %v2576
        %v2578 = vpop.f32.mrf.mxu0
        %v2579 = vadd.f32 %v2410, %v2578
        %2580 = vmatmul.bf16.gmra.mxu0 %v2255
        %v2581 = vpop.f32.mrf.mxu0
        %v2582 = vadd.f32 %v2413, %v2581
        %v2583 = vpop.f32.mrf.mxu0
        %v2584 = vadd.f32 %v2415, %v2583
        %2585 = vmatmul.bf16.gmra.mxu0 %v2257
        %v2586 = vpop.f32.mrf.mxu0
        %v2587 = vadd.f32 %v2418, %v2586
        %v2588 = vpop.f32.mrf.mxu0
        %v2589 = vadd.f32 %v2420, %v2588
        %2590 = vmatmul.bf16.gmra.mxu0 %v2259
        %v2591 = vpop.f32.mrf.mxu0
        %v2592 = vadd.f32 %v2423, %v2591
        %v2593 = vpop.f32.mrf.mxu0
        %v2594 = vadd.f32 %v2425, %v2593
        %2595 = vmatmul.bf16.gmra.mxu0 %v2261
        %v2596 = vpop.f32.mrf.mxu0
        %v2597 = vadd.f32 %v2428, %v2596
        %v2598 = vpop.f32.mrf.mxu0
        %v2599 = vadd.f32 %v2430, %v2598
        %2600 = vmatmul.bf16.gmra.mxu0 %v2263
        %v2601 = vpop.f32.mrf.mxu0
        %v2602 = vadd.f32 %v2433, %v2601
        %v2603 = vpop.f32.mrf.mxu0
        %v2604 = vadd.f32 %v2435, %v2603
        %2605 = vmatmul.bf16.gmra.mxu0 %v2265
        %v2606 = vpop.f32.mrf.mxu0
        %v2607 = vadd.f32 %v2438, %v2606
        %v2608 = vpop.f32.mrf.mxu0
        %v2609 = vadd.f32 %v2440, %v2608
        %2610 = vmatmul.bf16.gmra.mxu0 %v2267
        %v2611 = vpop.f32.mrf.mxu0
        %v2612 = vadd.f32 %v2443, %v2611
        %v2613 = vpop.f32.mrf.mxu0
        %v2614 = vadd.f32 %v2445, %v2613
        %2615 = vmatmul.bf16.gmra.mxu0 %v2269
        %v2616 = vpop.f32.mrf.mxu0
        %v2617 = vadd.f32 %v2448, %v2616
        %v2618 = vpop.f32.mrf.mxu0
        %v2619 = vadd.f32 %v2450, %v2618
        %2620 = vmatmul.bf16.gmra.mxu0 %v2271
        %v2621 = vpop.f32.mrf.mxu0
        %v2622 = vadd.f32 %v2453, %v2621
        %v2623 = vpop.f32.mrf.mxu0
        %v2624 = vadd.f32 %v2455, %v2623
        %2625 = vmatmul.bf16.gmra.mxu0 %v2273
        %v2626 = vpop.f32.mrf.mxu0
        %v2627 = vadd.f32 %v2458, %v2626
        %v2628 = vpop.f32.mrf.mxu0
        %v2629 = vadd.f32 %v2460, %v2628
        %2630 = vmatmul.bf16.gmra.mxu0 %v2275
        %v2631 = vpop.f32.mrf.mxu0
        %v2632 = vadd.f32 %v2463, %v2631
        %v2633 = vpop.f32.mrf.mxu0
        %v2634 = vadd.f32 %v2465, %v2633
        %2635 = vmatmul.bf16.gmra.mxu0 %v2277
        %v2636 = vpop.f32.mrf.mxu0
        %v2637 = vadd.f32 %v2468, %v2636
        %v2638 = vpop.f32.mrf.mxu0
        %v2639 = vadd.f32 %v2470, %v2638
        %2640 = vmatmul.bf16.gmra.mxu0 %v2279
        %v2641 = vpop.f32.mrf.mxu0
        %v2642 = vadd.f32 %v2473, %v2641
        %v2643 = vpop.f32.mrf.mxu0
        %v2644 = vadd.f32 %v2475, %v2643
        %2645 = vmatmul.bf16.gmra.mxu0 %v2281
        %v2646 = vpop.f32.mrf.mxu0
        %v2647 = vadd.f32 %v2478, %v2646
        %v2648 = vpop.f32.mrf.mxu0
        %v2649 = vadd.f32 %v2480, %v2648
        %2650 = vmatmul.bf16.gmra.mxu0 %v2283
        %v2651 = vpop.f32.mrf.mxu0
        %v2652 = vadd.f32 %v2483, %v2651
        %v2653 = vpop.f32.mrf.mxu0
        %v2654 = vadd.f32 %v2485, %v2653
        %2655 = vmatmul.bf16.gmra.mxu0 %v2285
        %v2656 = vpop.f32.mrf.mxu0
        %v2657 = vadd.f32 %v2488, %v2656
        %v2658 = vpop.f32.mrf.mxu0
        %v2659 = vadd.f32 %v2490, %v2658
        %2660 = vmatmul.bf16.gmra.mxu0 %v2287
        %v2661 = vpop.f32.mrf.mxu0
        %v2662 = vadd.f32 %v2493, %v2661
        %v2663 = vpop.f32.mrf.mxu0
        %v2664 = vadd.f32 %v2495, %v2663
        %2665 = vmatmul.bf16.gmra.mxu0 %v2289
        %v2666 = vpop.f32.mrf.mxu0
        %v2667 = vadd.f32 %v2498, %v2666
        %v2668 = vpop.f32.mrf.mxu0
        %v2669 = vadd.f32 %v2500, %v2668
        %2670 = vmatmul.bf16.gmra.mxu0 %v2291
        %v2671 = vpop.f32.mrf.mxu0
        %v2672 = vadd.f32 %v2503, %v2671
        %v2673 = vpop.f32.mrf.mxu0
        %v2674 = vadd.f32 %v2505, %v2673
        %2675 = vmatmul.bf16.gmra.mxu0 %v2293
        %v2676 = vpop.f32.mrf.mxu0
        %v2677 = vadd.f32 %v2508, %v2676
        %v2678 = vpop.f32.mrf.mxu0
        %v2679 = vadd.f32 %v2510, %v2678
        %2680 = vmatmul.bf16.gmra.mxu0 %v2295
        %v2681 = vpop.f32.mrf.mxu0
        %v2682 = vadd.f32 %v2513, %v2681
        %v2683 = vpop.f32.mrf.mxu0
        %v2684 = vadd.f32 %v2515, %v2683
        %2685 = vmatmul.bf16.gmra.mxu0 %v2297
        %v2686 = vpop.f32.mrf.mxu0
        %v2687 = vadd.f32 %v2518, %v2686
        %v2688 = vpop.f32.mrf.mxu0
        %v2689 = vadd.f32 %v2520, %v2688
        %2690 = vmatmul.bf16.gmra.mxu0 %v2299
        %v2691 = vpop.f32.mrf.mxu0
        %v2692 = vadd.f32 %v2523, %v2691
        %v2693 = vpop.f32.mrf.mxu0
        %v2694 = vadd.f32 %v2525, %v2693
        %2695 = vmatmul.bf16.gmra.mxu0 %v2301
        %v2696 = vpop.f32.mrf.mxu0
        %v2697 = vadd.f32 %v2528, %v2696
        %v2698 = vpop.f32.mrf.mxu0
        %v2699 = vadd.f32 %v2530, %v2698
        %2700 = vmatmul.bf16.gmra.mxu0 %v2303
        %v2701 = vpop.f32.mrf.mxu0
        %v2702 = vadd.f32 %v2533, %v2701
        %v2703 = vpop.f32.mrf.mxu0
        %v2704 = vadd.f32 %v2535, %v2703
        %2705 = vdwg.mxu0
        %v2706 = vpack.c.bf16 %v2547, %v2547
        %v2707 = vpack.c.bf16 %v2549, %v2549
        %v2708 = vpack.c.bf16 %v2552, %v2552
        %v2709 = vpack.c.bf16 %v2554, %v2554
        %v2710 = vpack.c.bf16 %v2557, %v2557
        %v2711 = vpack.c.bf16 %v2559, %v2559
        %v2712 = vpack.c.bf16 %v2562, %v2562
        %v2713 = vpack.c.bf16 %v2564, %v2564
        %v2714 = vpack.c.bf16 %v2567, %v2567
        %v2715 = vpack.c.bf16 %v2569, %v2569
        %v2716 = vpack.c.bf16 %v2572, %v2572
        %v2717 = vpack.c.bf16 %v2574, %v2574
        %v2718 = vpack.c.bf16 %v2577, %v2577
        %v2719 = vpack.c.bf16 %v2579, %v2579
        %v2720 = vpack.c.bf16 %v2582, %v2582
        %v2721 = vpack.c.bf16 %v2584, %v2584
        %v2722 = vpack.c.bf16 %v2587, %v2587
        %v2723 = vpack.c.bf16 %v2589, %v2589
        %v2724 = vpack.c.bf16 %v2592, %v2592
        %v2725 = vpack.c.bf16 %v2594, %v2594
        %v2726 = vpack.c.bf16 %v2597, %v2597
        %v2727 = vpack.c.bf16 %v2599, %v2599
        %v2728 = vpack.c.bf16 %v2602, %v2602
        %v2729 = vpack.c.bf16 %v2604, %v2604
        %v2730 = vpack.c.bf16 %v2607, %v2607
        %v2731 = vpack.c.bf16 %v2609, %v2609
        %v2732 = vpack.c.bf16 %v2612, %v2612
        %v2733 = vpack.c.bf16 %v2614, %v2614
        %v2734 = vpack.c.bf16 %v2617, %v2617
        %v2735 = vpack.c.bf16 %v2619, %v2619
        %v2736 = vpack.c.bf16 %v2622, %v2622
        %v2737 = vpack.c.bf16 %v2624, %v2624
        %v2738 = vpack.c.bf16 %v2627, %v2627
        %v2739 = vpack.c.bf16 %v2629, %v2629
        %v2740 = vpack.c.bf16 %v2632, %v2632
        %v2741 = vpack.c.bf16 %v2634, %v2634
        %v2742 = vpack.c.bf16 %v2637, %v2637
        %v2743 = vpack.c.bf16 %v2639, %v2639
        %v2744 = vpack.c.bf16 %v2642, %v2642
        %v2745 = vpack.c.bf16 %v2644, %v2644
        %v2746 = vpack.c.bf16 %v2647, %v2647
        %v2747 = vpack.c.bf16 %v2649, %v2649
        %v2748 = vpack.c.bf16 %v2652, %v2652
        %v2749 = vpack.c.bf16 %v2654, %v2654
        %v2750 = vpack.c.bf16 %v2657, %v2657
        %v2751 = vpack.c.bf16 %v2659, %v2659
        %v2752 = vpack.c.bf16 %v2662, %v2662
        %v2753 = vpack.c.bf16 %v2664, %v2664
        %v2754 = vpack.c.bf16 %v2667, %v2667
        %v2755 = vpack.c.bf16 %v2669, %v2669
        %v2756 = vpack.c.bf16 %v2672, %v2672
        %v2757 = vpack.c.bf16 %v2674, %v2674
        %v2758 = vpack.c.bf16 %v2677, %v2677
        %v2759 = vpack.c.bf16 %v2679, %v2679
        %v2760 = vpack.c.bf16 %v2682, %v2682
        %v2761 = vpack.c.bf16 %v2684, %v2684
        %v2762 = vpack.c.bf16 %v2687, %v2687
        %v2763 = vpack.c.bf16 %v2689, %v2689
        %v2764 = vpack.c.bf16 %v2692, %v2692
        %v2765 = vpack.c.bf16 %v2694, %v2694
        %v2766 = vpack.c.bf16 %v2697, %v2697
        %v2767 = vpack.c.bf16 %v2699, %v2699
        %v2768 = vpack.c.bf16 %v2702, %v2702
        %v2769 = vpack.c.bf16 %v2704, %v2704
        %2770 = vst [vmem:[%s589] sm:$0xf] %v2706
        %2771 = vst [vmem:[%s589 + $0x4] sm:$0xf] %v2707
        %2772 = vst [vmem:[%s589 + $0x8] sm:$0xf] %v2708
        %2773 = vst [vmem:[%s589 + $0xc] sm:$0xf] %v2709
        %2774 = vst [vmem:[%s589 + $0x10] sm:$0xf] %v2710
        %2775 = vst [vmem:[%s589 + $0x14] sm:$0xf] %v2711
        %2776 = vst [vmem:[%s589 + $0x18] sm:$0xf] %v2712
        %2777 = vst [vmem:[%s589 + $0x1c] sm:$0xf] %v2713
        %2778 = vst [vmem:[%s589 + $0x20] sm:$0xf] %v2714
        %2779 = vst [vmem:[%s589 + $0x24] sm:$0xf] %v2715
        %2780 = vst [vmem:[%s589 + $0x28] sm:$0xf] %v2716
        %2781 = vst [vmem:[%s589 + $0x2c] sm:$0xf] %v2717
        %2782 = vst [vmem:[%s589 + $0x30] sm:$0xf] %v2718
        %2783 = vst [vmem:[%s589 + $0x34] sm:$0xf] %v2719
        %2784 = vst [vmem:[%s589 + $0x38] sm:$0xf] %v2720
        %2785 = vst [vmem:[%s589 + $0x3c] sm:$0xf] %v2721
        %2786 = vst [vmem:[%s589 + $0x40] sm:$0xf] %v2722
        %2787 = vst [vmem:[%s589 + $0x44] sm:$0xf] %v2723
        %2788 = vst [vmem:[%s589 + $0x48] sm:$0xf] %v2724
        %2789 = vst [vmem:[%s589 + $0x4c] sm:$0xf] %v2725
        %2790 = vst [vmem:[%s589 + $0x50] sm:$0xf] %v2726
        %2791 = vst [vmem:[%s589 + $0x54] sm:$0xf] %v2727
        %2792 = vst [vmem:[%s589 + $0x58] sm:$0xf] %v2728
        %2793 = vst [vmem:[%s589 + $0x5c] sm:$0xf] %v2729
        %2794 = vst [vmem:[%s589 + $0x60] sm:$0xf] %v2730
        %2795 = vst [vmem:[%s589 + $0x64] sm:$0xf] %v2731
        %2796 = vst [vmem:[%s589 + $0x68] sm:$0xf] %v2732
        %2797 = vst [vmem:[%s589 + $0x6c] sm:$0xf] %v2733
        %2798 = vst [vmem:[%s589 + $0x70] sm:$0xf] %v2734
        %2799 = vst [vmem:[%s589 + $0x74] sm:$0xf] %v2735
        %2800 = vst [vmem:[%s589 + $0x78] sm:$0xf] %v2736
        %2801 = vst [vmem:[%s589 + $0x7c] sm:$0xf] %v2737
        %2802 = vst [vmem:[%s589 + $0x80] sm:$0xf] %v2738
        %2803 = vst [vmem:[%s589 + $0x84] sm:$0xf] %v2739
        %2804 = vst [vmem:[%s589 + $0x88] sm:$0xf] %v2740
        %2805 = vst [vmem:[%s589 + $0x8c] sm:$0xf] %v2741
        %2806 = vst [vmem:[%s589 + $0x90] sm:$0xf] %v2742
        %2807 = vst [vmem:[%s589 + $0x94] sm:$0xf] %v2743
        %2808 = vst [vmem:[%s589 + $0x98] sm:$0xf] %v2744
        %2809 = vst [vmem:[%s589 + $0x9c] sm:$0xf] %v2745
        %2810 = vst [vmem:[%s589 + $0xa0] sm:$0xf] %v2746
        %2811 = vst [vmem:[%s589 + $0xa4] sm:$0xf] %v2747
        %2812 = vst [vmem:[%s589 + $0xa8] sm:$0xf] %v2748
        %2813 = vst [vmem:[%s589 + $0xac] sm:$0xf] %v2749
        %2814 = vst [vmem:[%s589 + $0xb0] sm:$0xf] %v2750
        %2815 = vst [vmem:[%s589 + $0xb4] sm:$0xf] %v2751
        %2816 = vst [vmem:[%s589 + $0xb8] sm:$0xf] %v2752
        %2817 = vst [vmem:[%s589 + $0xbc] sm:$0xf] %v2753
        %2818 = vst [vmem:[%s589 + $0xc0] sm:$0xf] %v2754
        %2819 = vst [vmem:[%s589 + $0xc4] sm:$0xf] %v2755
        %2820 = vst [vmem:[%s589 + $0xc8] sm:$0xf] %v2756
        %2821 = vst [vmem:[%s589 + $0xcc] sm:$0xf] %v2757
        %2822 = vst [vmem:[%s589 + $0xd0] sm:$0xf] %v2758
        %2823 = vst [vmem:[%s589 + $0xd4] sm:$0xf] %v2759
        %2824 = vst [vmem:[%s589 + $0xd8] sm:$0xf] %v2760
        %2825 = vst [vmem:[%s589 + $0xdc] sm:$0xf] %v2761
        %2826 = vst [vmem:[%s589 + $0xe0] sm:$0xf] %v2762
        %2827 = vst [vmem:[%s589 + $0xe4] sm:$0xf] %v2763
        %2828 = vst [vmem:[%s589 + $0xe8] sm:$0xf] %v2764
        %2829 = vst [vmem:[%s589 + $0xec] sm:$0xf] %v2765
        %2830 = vst [vmem:[%s589 + $0xf0] sm:$0xf] %v2766
        %2831 = vst [vmem:[%s589 + $0xf4] sm:$0xf] %v2767
        %2832 = vst [vmem:[%s589 + $0xf8] sm:$0xf] %v2768
        %2833 = vst [vmem:[%s589 + $0xfc] sm:$0xf] %v2769
        %v2834 = vlaneseq
        %v2835 = vand.u32 %v2834, 127
        %s2836 = smul.u32 %s38, 128
        %v2837 = vstv %s2836
        %v2838 = vadd.s32 %v2837, %v2835
        %vm2839 = vcmp.lt.s32.totalorder %v2838, 16
        %v2840 = vsel %vm2839, 1, 0
        %vm2841 = vcmp.eq.s32.totalorder %v2840, 1
        %v2842 = vsel %vm2841, %v2547, -inf
        %v2843 = vsel %vm2841, %v2549, -inf
        %v2844 = vsel %vm2841, %v2552, -inf
        %v2845 = vsel %vm2841, %v2554, -inf
        %v2846 = vsel %vm2841, %v2557, -inf
        %v2847 = vsel %vm2841, %v2559, -inf
        %v2848 = vsel %vm2841, %v2562, -inf
        %v2849 = vsel %vm2841, %v2564, -inf
        %v2850 = vsel %vm2841, %v2567, -inf
        %v2851 = vsel %vm2841, %v2569, -inf
        %v2852 = vsel %vm2841, %v2572, -inf
        %v2853 = vsel %vm2841, %v2574, -inf
        %v2854 = vsel %vm2841, %v2577, -inf
        %v2855 = vsel %vm2841, %v2579, -inf
        %v2856 = vsel %vm2841, %v2582, -inf
        %v2857 = vsel %vm2841, %v2584, -inf
        %v2858 = vsel %vm2841, %v2587, -inf
        %v2859 = vsel %vm2841, %v2589, -inf
        %v2860 = vsel %vm2841, %v2592, -inf
        %v2861 = vsel %vm2841, %v2594, -inf
        %v2862 = vsel %vm2841, %v2597, -inf
        %v2863 = vsel %vm2841, %v2599, -inf
        %v2864 = vsel %vm2841, %v2602, -inf
        %v2865 = vsel %vm2841, %v2604, -inf
        %v2866 = vsel %vm2841, %v2607, -inf
        %v2867 = vsel %vm2841, %v2609, -inf
        %v2868 = vsel %vm2841, %v2612, -inf
        %v2869 = vsel %vm2841, %v2614, -inf
        %v2870 = vsel %vm2841, %v2617, -inf
        %v2871 = vsel %vm2841, %v2619, -inf
        %v2872 = vsel %vm2841, %v2622, -inf
        %v2873 = vsel %vm2841, %v2624, -inf
        %v2874 = vsel %vm2841, %v2627, -inf
        %v2875 = vsel %vm2841, %v2629, -inf
        %v2876 = vsel %vm2841, %v2632, -inf
        %v2877 = vsel %vm2841, %v2634, -inf
        %v2878 = vsel %vm2841, %v2637, -inf
        %v2879 = vsel %vm2841, %v2639, -inf
        %v2880 = vsel %vm2841, %v2642, -inf
        %v2881 = vsel %vm2841, %v2644, -inf
        %v2882 = vsel %vm2841, %v2647, -inf
        %v2883 = vsel %vm2841, %v2649, -inf
        %v2884 = vsel %vm2841, %v2652, -inf
        %v2885 = vsel %vm2841, %v2654, -inf
        %v2886 = vsel %vm2841, %v2657, -inf
        %v2887 = vsel %vm2841, %v2659, -inf
        %v2888 = vsel %vm2841, %v2662, -inf
        %v2889 = vsel %vm2841, %v2664, -inf
        %v2890 = vsel %vm2841, %v2667, -inf
        %v2891 = vsel %vm2841, %v2669, -inf
        %v2892 = vsel %vm2841, %v2672, -inf
        %v2893 = vsel %vm2841, %v2674, -inf
        %v2894 = vsel %vm2841, %v2677, -inf
        %v2895 = vsel %vm2841, %v2679, -inf
        %v2896 = vsel %vm2841, %v2682, -inf
        %v2897 = vsel %vm2841, %v2684, -inf
        %v2898 = vsel %vm2841, %v2687, -inf
        %v2899 = vsel %vm2841, %v2689, -inf
        %v2900 = vsel %vm2841, %v2692, -inf
        %v2901 = vsel %vm2841, %v2694, -inf
        %v2902 = vsel %vm2841, %v2697, -inf
        %v2903 = vsel %vm2841, %v2699, -inf
        %v2904 = vsel %vm2841, %v2702, -inf
        %v2905 = vsel %vm2841, %v2704, -inf
        %2906 = vmax.xlane.f32.xlu0 %v2842
        %v2907 = vpop.xlane.xlu0 %2906
        %2908 = vmax.xlane.f32.xlu0 %v2843
        %v2909 = vpop.xlane.xlu0 %2908
        %2910 = vmax.xlane.f32.xlu0 %v2844
        %v2911 = vpop.xlane.xlu0 %2910
        %2912 = vmax.xlane.f32.xlu0 %v2845
        %v2913 = vpop.xlane.xlu0 %2912
        %2914 = vmax.xlane.f32.xlu0 %v2846
        %v2915 = vpop.xlane.xlu0 %2914
        %2916 = vmax.xlane.f32.xlu0 %v2847
        %v2917 = vpop.xlane.xlu0 %2916
        %2918 = vmax.xlane.f32.xlu0 %v2848
        %v2919 = vpop.xlane.xlu0 %2918
        %2920 = vmax.xlane.f32.xlu0 %v2849
        %v2921 = vpop.xlane.xlu0 %2920
        %2922 = vmax.xlane.f32.xlu0 %v2850
        %v2923 = vpop.xlane.xlu0 %2922
        %2924 = vmax.xlane.f32.xlu0 %v2851
        %v2925 = vpop.xlane.xlu0 %2924
        %2926 = vmax.xlane.f32.xlu0 %v2852
        %v2927 = vpop.xlane.xlu0 %2926
        %2928 = vmax.xlane.f32.xlu0 %v2853
        %v2929 = vpop.xlane.xlu0 %2928
        %2930 = vmax.xlane.f32.xlu0 %v2854
        %v2931 = vpop.xlane.xlu0 %2930
        %2932 = vmax.xlane.f32.xlu0 %v2855
        %v2933 = vpop.xlane.xlu0 %2932
        %2934 = vmax.xlane.f32.xlu0 %v2856
        %v2935 = vpop.xlane.xlu0 %2934
        %2936 = vmax.xlane.f32.xlu0 %v2857
        %v2937 = vpop.xlane.xlu0 %2936
        %2938 = vmax.xlane.f32.xlu0 %v2858
        %v2939 = vpop.xlane.xlu0 %2938
        %2940 = vmax.xlane.f32.xlu0 %v2859
        %v2941 = vpop.xlane.xlu0 %2940
        %2942 = vmax.xlane.f32.xlu0 %v2860
        %v2943 = vpop.xlane.xlu0 %2942
        %2944 = vmax.xlane.f32.xlu0 %v2861
        %v2945 = vpop.xlane.xlu0 %2944
        %2946 = vmax.xlane.f32.xlu0 %v2862
        %v2947 = vpop.xlane.xlu0 %2946
        %2948 = vmax.xlane.f32.xlu0 %v2863
        %v2949 = vpop.xlane.xlu0 %2948
        %2950 = vmax.xlane.f32.xlu0 %v2864
        %v2951 = vpop.xlane.xlu0 %2950
        %2952 = vmax.xlane.f32.xlu0 %v2865
        %v2953 = vpop.xlane.xlu0 %2952
        %2954 = vmax.xlane.f32.xlu0 %v2866
        %v2955 = vpop.xlane.xlu0 %2954
        %2956 = vmax.xlane.f32.xlu0 %v2867
        %v2957 = vpop.xlane.xlu0 %2956
        %2958 = vmax.xlane.f32.xlu0 %v2868
        %v2959 = vpop.xlane.xlu0 %2958
        %2960 = vmax.xlane.f32.xlu0 %v2869
        %v2961 = vpop.xlane.xlu0 %2960
        %2962 = vmax.xlane.f32.xlu0 %v2870
        %v2963 = vpop.xlane.xlu0 %2962
        %2964 = vmax.xlane.f32.xlu0 %v2871
        %v2965 = vpop.xlane.xlu0 %2964
        %2966 = vmax.xlane.f32.xlu0 %v2872
        %v2967 = vpop.xlane.xlu0 %2966
        %2968 = vmax.xlane.f32.xlu0 %v2873
        %v2969 = vpop.xlane.xlu0 %2968
        %2970 = vmax.xlane.f32.xlu0 %v2874
        %v2971 = vpop.xlane.xlu0 %2970
        %2972 = vmax.xlane.f32.xlu0 %v2875
        %v2973 = vpop.xlane.xlu0 %2972
        %2974 = vmax.xlane.f32.xlu0 %v2876
        %v2975 = vpop.xlane.xlu0 %2974
        %2976 = vmax.xlane.f32.xlu0 %v2877
        %v2977 = vpop.xlane.xlu0 %2976
        %2978 = vmax.xlane.f32.xlu0 %v2878
        %v2979 = vpop.xlane.xlu0 %2978
        %2980 = vmax.xlane.f32.xlu0 %v2879
        %v2981 = vpop.xlane.xlu0 %2980
        %2982 = vmax.xlane.f32.xlu0 %v2880
        %v2983 = vpop.xlane.xlu0 %2982
        %2984 = vmax.xlane.f32.xlu0 %v2881
        %v2985 = vpop.xlane.xlu0 %2984
        %2986 = vmax.xlane.f32.xlu0 %v2882
        %v2987 = vpop.xlane.xlu0 %2986
        %2988 = vmax.xlane.f32.xlu0 %v2883
        %v2989 = vpop.xlane.xlu0 %2988
        %2990 = vmax.xlane.f32.xlu0 %v2884
        %v2991 = vpop.xlane.xlu0 %2990
        %2992 = vmax.xlane.f32.xlu0 %v2885
        %v2993 = vpop.xlane.xlu0 %2992
        %2994 = vmax.xlane.f32.xlu0 %v2886
        %v2995 = vpop.xlane.xlu0 %2994
        %2996 = vmax.xlane.f32.xlu0 %v2887
        %v2997 = vpop.xlane.xlu0 %2996
        %2998 = vmax.xlane.f32.xlu0 %v2888
        %v2999 = vpop.xlane.xlu0 %2998
        %3000 = vmax.xlane.f32.xlu0 %v2889
        %v3001 = vpop.xlane.xlu0 %3000
        %3002 = vmax.xlane.f32.xlu0 %v2890
        %v3003 = vpop.xlane.xlu0 %3002
        %3004 = vmax.xlane.f32.xlu0 %v2891
        %v3005 = vpop.xlane.xlu0 %3004
        %3006 = vmax.xlane.f32.xlu0 %v2892
        %v3007 = vpop.xlane.xlu0 %3006
        %3008 = vmax.xlane.f32.xlu0 %v2893
        %v3009 = vpop.xlane.xlu0 %3008
        %3010 = vmax.xlane.f32.xlu0 %v2894
        %v3011 = vpop.xlane.xlu0 %3010
        %3012 = vmax.xlane.f32.xlu0 %v2895
        %v3013 = vpop.xlane.xlu0 %3012
        %3014 = vmax.xlane.f32.xlu0 %v2896
        %v3015 = vpop.xlane.xlu0 %3014
        %3016 = vmax.xlane.f32.xlu0 %v2897
        %v3017 = vpop.xlane.xlu0 %3016
        %3018 = vmax.xlane.f32.xlu0 %v2898
        %v3019 = vpop.xlane.xlu0 %3018
        %3020 = vmax.xlane.f32.xlu0 %v2899
        %v3021 = vpop.xlane.xlu0 %3020
        %3022 = vmax.xlane.f32.xlu0 %v2900
        %v3023 = vpop.xlane.xlu0 %3022
        %3024 = vmax.xlane.f32.xlu0 %v2901
        %v3025 = vpop.xlane.xlu0 %3024
        %3026 = vmax.xlane.f32.xlu0 %v2902
        %v3027 = vpop.xlane.xlu0 %3026
        %3028 = vmax.xlane.f32.xlu0 %v2903
        %v3029 = vpop.xlane.xlu0 %3028
        %3030 = vmax.xlane.f32.xlu0 %v2904
        %v3031 = vpop.xlane.xlu0 %3030
        %3032 = vmax.xlane.f32.xlu0 %v2905
        %v3033 = vpop.xlane.xlu0 %3032
        %p3034 = scmp.eq.s32.totalorder %s38, 0
        // Predicated region
        $region85: #{tpu_custom_call.1} parent=83 // pred_check
          %p3035 = pneg %p3034
        $region86: #{tpu_custom_call.1} parent=83 // pred_check_branch
          %3037 = sbr.rel (%p3035) target = $region88
        $region87: #{tpu_custom_call.1} parent=83 // pred_region
          %vm3038 = vcmask 7168
          %3039 = vst.msk [vmem:[#allocation2] sm:$0xff] %vm3038, %v2907
          %3040 = vst.msk [vmem:[#allocation2 + $0x8] sm:$0xff] %vm3038, %v2909
          %3041 = vst.msk [vmem:[#allocation2 + $0x10] sm:$0xff] %vm3038, %v2911
          %3042 = vst.msk [vmem:[#allocation2 + $0x18] sm:$0xff] %vm3038, %v2913
          %3043 = vst.msk [vmem:[#allocation2 + $0x20] sm:$0xff] %vm3038, %v2915
          %3044 = vst.msk [vmem:[#allocation2 + $0x28] sm:$0xff] %vm3038, %v2917
          %3045 = vst.msk [vmem:[#allocation2 + $0x30] sm:$0xff] %vm3038, %v2919
          %3046 = vst.msk [vmem:[#allocation2 + $0x38] sm:$0xff] %vm3038, %v2921
          %3047 = vst.msk [vmem:[#allocation2 + $0x40] sm:$0xff] %vm3038, %v2923
          %3048 = vst.msk [vmem:[#allocation2 + $0x48] sm:$0xff] %vm3038, %v2925
          %3049 = vst.msk [vmem:[#allocation2 + $0x50] sm:$0xff] %vm3038, %v2927
          %3050 = vst.msk [vmem:[#allocation2 + $0x58] sm:$0xff] %vm3038, %v2929
          %3051 = vst.msk [vmem:[#allocation2 + $0x60] sm:$0xff] %vm3038, %v2931
          %3052 = vst.msk [vmem:[#allocation2 + $0x68] sm:$0xff] %vm3038, %v2933
          %3053 = vst.msk [vmem:[#allocation2 + $0x70] sm:$0xff] %vm3038, %v2935
          %3054 = vst.msk [vmem:[#allocation2 + $0x78] sm:$0xff] %vm3038, %v2937
          %3055 = vst.msk [vmem:[#allocation2 + $0x80] sm:$0xff] %vm3038, %v2939
          %3056 = vst.msk [vmem:[#allocation2 + $0x88] sm:$0xff] %vm3038, %v2941
          %3057 = vst.msk [vmem:[#allocation2 + $0x90] sm:$0xff] %vm3038, %v2943
          %3058 = vst.msk [vmem:[#allocation2 + $0x98] sm:$0xff] %vm3038, %v2945
          %3059 = vst.msk [vmem:[#allocation2 + $0xa0] sm:$0xff] %vm3038, %v2947
          %3060 = vst.msk [vmem:[#allocation2 + $0xa8] sm:$0xff] %vm3038, %v2949
          %3061 = vst.msk [vmem:[#allocation2 + $0xb0] sm:$0xff] %vm3038, %v2951
          %3062 = vst.msk [vmem:[#allocation2 + $0xb8] sm:$0xff] %vm3038, %v2953
          %3063 = vst.msk [vmem:[#allocation2 + $0xc0] sm:$0xff] %vm3038, %v2955
          %3064 = vst.msk [vmem:[#allocation2 + $0xc8] sm:$0xff] %vm3038, %v2957
          %3065 = vst.msk [vmem:[#allocation2 + $0xd0] sm:$0xff] %vm3038, %v2959
          %3066 = vst.msk [vmem:[#allocation2 + $0xd8] sm:$0xff] %vm3038, %v2961
          %3067 = vst.msk [vmem:[#allocation2 + $0xe0] sm:$0xff] %vm3038, %v2963
          %3068 = vst.msk [vmem:[#allocation2 + $0xe8] sm:$0xff] %vm3038, %v2965
          %3069 = vst.msk [vmem:[#allocation2 + $0xf0] sm:$0xff] %vm3038, %v2967
          %3070 = vst.msk [vmem:[#allocation2 + $0xf8] sm:$0xff] %vm3038, %v2969
          %3071 = vst.msk [vmem:[#allocation2 + $0x100] sm:$0xff] %vm3038, %v2971
          %3072 = vst.msk [vmem:[#allocation2 + $0x108] sm:$0xff] %vm3038, %v2973
          %3073 = vst.msk [vmem:[#allocation2 + $0x110] sm:$0xff] %vm3038, %v2975
          %3074 = vst.msk [vmem:[#allocation2 + $0x118] sm:$0xff] %vm3038, %v2977
          %3075 = vst.msk [vmem:[#allocation2 + $0x120] sm:$0xff] %vm3038, %v2979
          %3076 = vst.msk [vmem:[#allocation2 + $0x128] sm:$0xff] %vm3038, %v2981
          %3077 = vst.msk [vmem:[#allocation2 + $0x130] sm:$0xff] %vm3038, %v2983
          %3078 = vst.msk [vmem:[#allocation2 + $0x138] sm:$0xff] %vm3038, %v2985
          %3079 = vst.msk [vmem:[#allocation2 + $0x140] sm:$0xff] %vm3038, %v2987
          %3080 = vst.msk [vmem:[#allocation2 + $0x148] sm:$0xff] %vm3038, %v2989
          %3081 = vst.msk [vmem:[#allocation2 + $0x150] sm:$0xff] %vm3038, %v2991
          %3082 = vst.msk [vmem:[#allocation2 + $0x158] sm:$0xff] %vm3038, %v2993
          %3083 = vst.msk [vmem:[#allocation2 + $0x160] sm:$0xff] %vm3038, %v2995
          %3084 = vst.msk [vmem:[#allocation2 + $0x168] sm:$0xff] %vm3038, %v2997
          %3085 = vst.msk [vmem:[#allocation2 + $0x170] sm:$0xff] %vm3038, %v2999
          %3086 = vst.msk [vmem:[#allocation2 + $0x178] sm:$0xff] %vm3038, %v3001
          %3087 = vst.msk [vmem:[#allocation2 + $0x180] sm:$0xff] %vm3038, %v3003
          %3088 = vst.msk [vmem:[#allocation2 + $0x188] sm:$0xff] %vm3038, %v3005
          %3089 = vst.msk [vmem:[#allocation2 + $0x190] sm:$0xff] %vm3038, %v3007
          %3090 = vst.msk [vmem:[#allocation2 + $0x198] sm:$0xff] %vm3038, %v3009
          %3091 = vst.msk [vmem:[#allocation2 + $0x1a0] sm:$0xff] %vm3038, %v3011
          %3092 = vst.msk [vmem:[#allocation2 + $0x1a8] sm:$0xff] %vm3038, %v3013
          %3093 = vst.msk [vmem:[#allocation2 + $0x1b0] sm:$0xff] %vm3038, %v3015
          %3094 = vst.msk [vmem:[#allocation2 + $0x1b8] sm:$0xff] %vm3038, %v3017
          %3095 = vst.msk [vmem:[#allocation2 + $0x1c0] sm:$0xff] %vm3038, %v3019
          %3096 = vst.msk [vmem:[#allocation2 + $0x1c8] sm:$0xff] %vm3038, %v3021
          %3097 = vst.msk [vmem:[#allocation2 + $0x1d0] sm:$0xff] %vm3038, %v3023
          %3098 = vst.msk [vmem:[#allocation2 + $0x1d8] sm:$0xff] %vm3038, %v3025
          %3099 = vst.msk [vmem:[#allocation2 + $0x1e0] sm:$0xff] %vm3038, %v3027
          %3100 = vst.msk [vmem:[#allocation2 + $0x1e8] sm:$0xff] %vm3038, %v3029
          %3101 = vst.msk [vmem:[#allocation2 + $0x1f0] sm:$0xff] %vm3038, %v3031
          %3102 = vst.msk [vmem:[#allocation2 + $0x1f8] sm:$0xff] %vm3038, %v3033
        $region88: #{tpu_custom_call.1} parent=83 // pred_fallthru
          _
        %p3103 = scmp.gt.s32.totalorder %s38, 0
        // Predicated region
        $region89: #{tpu_custom_call.1} parent=83 // pred_check
          %p3104 = pneg %p3103
        $region90: #{tpu_custom_call.1} parent=83 // pred_check_branch
          %3106 = sbr.rel (%p3104) target = $region92
        $region91: #{tpu_custom_call.1} parent=83 // pred_region
          %v3107 = vld [vmem:[#allocation2] sm:$0xff]
          %v3108 = vld [vmem:[#allocation2 + $0x8] sm:$0xff]
          %v3109 = vld [vmem:[#allocation2 + $0x10] sm:$0xff]
          %v3110 = vld [vmem:[#allocation2 + $0x18] sm:$0xff]
          %v3111 = vld [vmem:[#allocation2 + $0x20] sm:$0xff]
          %v3112 = vld [vmem:[#allocation2 + $0x28] sm:$0xff]
          %v3113 = vld [vmem:[#allocation2 + $0x30] sm:$0xff]
          %v3114 = vld [vmem:[#allocation2 + $0x38] sm:$0xff]
          %v3115 = vld [vmem:[#allocation2 + $0x40] sm:$0xff]
          %v3116 = vld [vmem:[#allocation2 + $0x48] sm:$0xff]
          %v3117 = vld [vmem:[#allocation2 + $0x50] sm:$0xff]
          %v3118 = vld [vmem:[#allocation2 + $0x58] sm:$0xff]
          %v3119 = vld [vmem:[#allocation2 + $0x60] sm:$0xff]
          %v3120 = vld [vmem:[#allocation2 + $0x68] sm:$0xff]
          %v3121 = vld [vmem:[#allocation2 + $0x70] sm:$0xff]
          %v3122 = vld [vmem:[#allocation2 + $0x78] sm:$0xff]
          %v3123 = vld [vmem:[#allocation2 + $0x80] sm:$0xff]
          %v3124 = vld [vmem:[#allocation2 + $0x88] sm:$0xff]
          %v3125 = vld [vmem:[#allocation2 + $0x90] sm:$0xff]
          %v3126 = vld [vmem:[#allocation2 + $0x98] sm:$0xff]
          %v3127 = vld [vmem:[#allocation2 + $0xa0] sm:$0xff]
          %v3128 = vld [vmem:[#allocation2 + $0xa8] sm:$0xff]
          %v3129 = vld [vmem:[#allocation2 + $0xb0] sm:$0xff]
          %v3130 = vld [vmem:[#allocation2 + $0xb8] sm:$0xff]
          %v3131 = vld [vmem:[#allocation2 + $0xc0] sm:$0xff]
          %v3132 = vld [vmem:[#allocation2 + $0xc8] sm:$0xff]
          %v3133 = vld [vmem:[#allocation2 + $0xd0] sm:$0xff]
          %v3134 = vld [vmem:[#allocation2 + $0xd8] sm:$0xff]
          %v3135 = vld [vmem:[#allocation2 + $0xe0] sm:$0xff]
          %v3136 = vld [vmem:[#allocation2 + $0xe8] sm:$0xff]
          %v3137 = vld [vmem:[#allocation2 + $0xf0] sm:$0xff]
          %v3138 = vld [vmem:[#allocation2 + $0xf8] sm:$0xff]
          %v3139 = vld [vmem:[#allocation2 + $0x100] sm:$0xff]
          %v3140 = vld [vmem:[#allocation2 + $0x108] sm:$0xff]
          %v3141 = vld [vmem:[#allocation2 + $0x110] sm:$0xff]
          %v3142 = vld [vmem:[#allocation2 + $0x118] sm:$0xff]
          %v3143 = vld [vmem:[#allocation2 + $0x120] sm:$0xff]
          %v3144 = vld [vmem:[#allocation2 + $0x128] sm:$0xff]
          %v3145 = vld [vmem:[#allocation2 + $0x130] sm:$0xff]
          %v3146 = vld [vmem:[#allocation2 + $0x138] sm:$0xff]
          %v3147 = vld [vmem:[#allocation2 + $0x140] sm:$0xff]
          %v3148 = vld [vmem:[#allocation2 + $0x148] sm:$0xff]
          %v3149 = vld [vmem:[#allocation2 + $0x150] sm:$0xff]
          %v3150 = vld [vmem:[#allocation2 + $0x158] sm:$0xff]
          %v3151 = vld [vmem:[#allocation2 + $0x160] sm:$0xff]
          %v3152 = vld [vmem:[#allocation2 + $0x168] sm:$0xff]
          %v3153 = vld [vmem:[#allocation2 + $0x170] sm:$0xff]
          %v3154 = vld [vmem:[#allocation2 + $0x178] sm:$0xff]
          %v3155 = vld [vmem:[#allocation2 + $0x180] sm:$0xff]
          %v3156 = vld [vmem:[#allocation2 + $0x188] sm:$0xff]
          %v3157 = vld [vmem:[#allocation2 + $0x190] sm:$0xff]
          %v3158 = vld [vmem:[#allocation2 + $0x198] sm:$0xff]
          %v3159 = vld [vmem:[#allocation2 + $0x1a0] sm:$0xff]
          %v3160 = vld [vmem:[#allocation2 + $0x1a8] sm:$0xff]
          %v3161 = vld [vmem:[#allocation2 + $0x1b0] sm:$0xff]
          %v3162 = vld [vmem:[#allocation2 + $0x1b8] sm:$0xff]
          %v3163 = vld [vmem:[#allocation2 + $0x1c0] sm:$0xff]
          %v3164 = vld [vmem:[#allocation2 + $0x1c8] sm:$0xff]
          %v3165 = vld [vmem:[#allocation2 + $0x1d0] sm:$0xff]
          %v3166 = vld [vmem:[#allocation2 + $0x1d8] sm:$0xff]
          %v3167 = vld [vmem:[#allocation2 + $0x1e0] sm:$0xff]
          %v3168 = vld [vmem:[#allocation2 + $0x1e8] sm:$0xff]
          %v3169 = vld [vmem:[#allocation2 + $0x1f0] sm:$0xff]
          %v3170 = vld [vmem:[#allocation2 + $0x1f8] sm:$0xff]
          %v3171 = vmax.f32 %v3107, %v2907
          %v3172 = vmax.f32 %v3108, %v2909
          %v3173 = vmax.f32 %v3109, %v2911
          %v3174 = vmax.f32 %v3110, %v2913
          %v3175 = vmax.f32 %v3111, %v2915
          %v3176 = vmax.f32 %v3112, %v2917
          %v3177 = vmax.f32 %v3113, %v2919
          %v3178 = vmax.f32 %v3114, %v2921
          %v3179 = vmax.f32 %v3115, %v2923
          %v3180 = vmax.f32 %v3116, %v2925
          %v3181 = vmax.f32 %v3117, %v2927
          %v3182 = vmax.f32 %v3118, %v2929
          %v3183 = vmax.f32 %v3119, %v2931
          %v3184 = vmax.f32 %v3120, %v2933
          %v3185 = vmax.f32 %v3121, %v2935
          %v3186 = vmax.f32 %v3122, %v2937
          %v3187 = vmax.f32 %v3123, %v2939
          %v3188 = vmax.f32 %v3124, %v2941
          %v3189 = vmax.f32 %v3125, %v2943
          %v3190 = vmax.f32 %v3126, %v2945
          %v3191 = vmax.f32 %v3127, %v2947
          %v3192 = vmax.f32 %v3128, %v2949
          %v3193 = vmax.f32 %v3129, %v2951
          %v3194 = vmax.f32 %v3130, %v2953
          %v3195 = vmax.f32 %v3131, %v2955
          %v3196 = vmax.f32 %v3132, %v2957
          %v3197 = vmax.f32 %v3133, %v2959
          %v3198 = vmax.f32 %v3134, %v2961
          %v3199 = vmax.f32 %v3135, %v2963
          %v3200 = vmax.f32 %v3136, %v2965
          %v3201 = vmax.f32 %v3137, %v2967
          %v3202 = vmax.f32 %v3138, %v2969
          %v3203 = vmax.f32 %v3139, %v2971
          %v3204 = vmax.f32 %v3140, %v2973
          %v3205 = vmax.f32 %v3141, %v2975
          %v3206 = vmax.f32 %v3142, %v2977
          %v3207 = vmax.f32 %v3143, %v2979
          %v3208 = vmax.f32 %v3144, %v2981
          %v3209 = vmax.f32 %v3145, %v2983
          %v3210 = vmax.f32 %v3146, %v2985
          %v3211 = vmax.f32 %v3147, %v2987
          %v3212 = vmax.f32 %v3148, %v2989
          %v3213 = vmax.f32 %v3149, %v2991
          %v3214 = vmax.f32 %v3150, %v2993
          %v3215 = vmax.f32 %v3151, %v2995
          %v3216 = vmax.f32 %v3152, %v2997
          %v3217 = vmax.f32 %v3153, %v2999
          %v3218 = vmax.f32 %v3154, %v3001
          %v3219 = vmax.f32 %v3155, %v3003
          %v3220 = vmax.f32 %v3156, %v3005
          %v3221 = vmax.f32 %v3157, %v3007
          %v3222 = vmax.f32 %v3158, %v3009
          %v3223 = vmax.f32 %v3159, %v3011
          %v3224 = vmax.f32 %v3160, %v3013
          %v3225 = vmax.f32 %v3161, %v3015
          %v3226 = vmax.f32 %v3162, %v3017
          %v3227 = vmax.f32 %v3163, %v3019
          %v3228 = vmax.f32 %v3164, %v3021
          %v3229 = vmax.f32 %v3165, %v3023
          %v3230 = vmax.f32 %v3166, %v3025
          %v3231 = vmax.f32 %v3167, %v3027
          %v3232 = vmax.f32 %v3168, %v3029
          %v3233 = vmax.f32 %v3169, %v3031
          %v3234 = vmax.f32 %v3170, %v3033
          %vm3235 = vcmask 7168
          %3236 = vst.msk [vmem:[#allocation2] sm:$0xff] %vm3235, %v3171
          %3237 = vst.msk [vmem:[#allocation2 + $0x8] sm:$0xff] %vm3235, %v3172
          %3238 = vst.msk [vmem:[#allocation2 + $0x10] sm:$0xff] %vm3235, %v3173
          %3239 = vst.msk [vmem:[#allocation2 + $0x18] sm:$0xff] %vm3235, %v3174
          %3240 = vst.msk [vmem:[#allocation2 + $0x20] sm:$0xff] %vm3235, %v3175
          %3241 = vst.msk [vmem:[#allocation2 + $0x28] sm:$0xff] %vm3235, %v3176
          %3242 = vst.msk [vmem:[#allocation2 + $0x30] sm:$0xff] %vm3235, %v3177
          %3243 = vst.msk [vmem:[#allocation2 + $0x38] sm:$0xff] %vm3235, %v3178
          %3244 = vst.msk [vmem:[#allocation2 + $0x40] sm:$0xff] %vm3235, %v3179
          %3245 = vst.msk [vmem:[#allocation2 + $0x48] sm:$0xff] %vm3235, %v3180
          %3246 = vst.msk [vmem:[#allocation2 + $0x50] sm:$0xff] %vm3235, %v3181
          %3247 = vst.msk [vmem:[#allocation2 + $0x58] sm:$0xff] %vm3235, %v3182
          %3248 = vst.msk [vmem:[#allocation2 + $0x60] sm:$0xff] %vm3235, %v3183
          %3249 = vst.msk [vmem:[#allocation2 + $0x68] sm:$0xff] %vm3235, %v3184
          %3250 = vst.msk [vmem:[#allocation2 + $0x70] sm:$0xff] %vm3235, %v3185
          %3251 = vst.msk [vmem:[#allocation2 + $0x78] sm:$0xff] %vm3235, %v3186
          %3252 = vst.msk [vmem:[#allocation2 + $0x80] sm:$0xff] %vm3235, %v3187
          %3253 = vst.msk [vmem:[#allocation2 + $0x88] sm:$0xff] %vm3235, %v3188
          %3254 = vst.msk [vmem:[#allocation2 + $0x90] sm:$0xff] %vm3235, %v3189
          %3255 = vst.msk [vmem:[#allocation2 + $0x98] sm:$0xff] %vm3235, %v3190
          %3256 = vst.msk [vmem:[#allocation2 + $0xa0] sm:$0xff] %vm3235, %v3191
          %3257 = vst.msk [vmem:[#allocation2 + $0xa8] sm:$0xff] %vm3235, %v3192
          %3258 = vst.msk [vmem:[#allocation2 + $0xb0] sm:$0xff] %vm3235, %v3193
          %3259 = vst.msk [vmem:[#allocation2 + $0xb8] sm:$0xff] %vm3235, %v3194
          %3260 = vst.msk [vmem:[#allocation2 + $0xc0] sm:$0xff] %vm3235, %v3195
          %3261 = vst.msk [vmem:[#allocation2 + $0xc8] sm:$0xff] %vm3235, %v3196
          %3262 = vst.msk [vmem:[#allocation2 + $0xd0] sm:$0xff] %vm3235, %v3197
          %3263 = vst.msk [vmem:[#allocation2 + $0xd8] sm:$0xff] %vm3235, %v3198
          %3264 = vst.msk [vmem:[#allocation2 + $0xe0] sm:$0xff] %vm3235, %v3199
          %3265 = vst.msk [vmem:[#allocation2 + $0xe8] sm:$0xff] %vm3235, %v3200
          %3266 = vst.msk [vmem:[#allocation2 + $0xf0] sm:$0xff] %vm3235, %v3201
          %3267 = vst.msk [vmem:[#allocation2 + $0xf8] sm:$0xff] %vm3235, %v3202
          %3268 = vst.msk [vmem:[#allocation2 + $0x100] sm:$0xff] %vm3235, %v3203
          %3269 = vst.msk [vmem:[#allocation2 + $0x108] sm:$0xff] %vm3235, %v3204
          %3270 = vst.msk [vmem:[#allocation2 + $0x110] sm:$0xff] %vm3235, %v3205
          %3271 = vst.msk [vmem:[#allocation2 + $0x118] sm:$0xff] %vm3235, %v3206
          %3272 = vst.msk [vmem:[#allocation2 + $0x120] sm:$0xff] %vm3235, %v3207
          %3273 = vst.msk [vmem:[#allocation2 + $0x128] sm:$0xff] %vm3235, %v3208
          %3274 = vst.msk [vmem:[#allocation2 + $0x130] sm:$0xff] %vm3235, %v3209
          %3275 = vst.msk [vmem:[#allocation2 + $0x138] sm:$0xff] %vm3235, %v3210
          %3276 = vst.msk [vmem:[#allocation2 + $0x140] sm:$0xff] %vm3235, %v3211
          %3277 = vst.msk [vmem:[#allocation2 + $0x148] sm:$0xff] %vm3235, %v3212
          %3278 = vst.msk [vmem:[#allocation2 + $0x150] sm:$0xff] %vm3235, %v3213
          %3279 = vst.msk [vmem:[#allocation2 + $0x158] sm:$0xff] %vm3235, %v3214
          %3280 = vst.msk [vmem:[#allocation2 + $0x160] sm:$0xff] %vm3235, %v3215
          %3281 = vst.msk [vmem:[#allocation2 + $0x168] sm:$0xff] %vm3235, %v3216
          %3282 = vst.msk [vmem:[#allocation2 + $0x170] sm:$0xff] %vm3235, %v3217
          %3283 = vst.msk [vmem:[#allocation2 + $0x178] sm:$0xff] %vm3235, %v3218
          %3284 = vst.msk [vmem:[#allocation2 + $0x180] sm:$0xff] %vm3235, %v3219
          %3285 = vst.msk [vmem:[#allocation2 + $0x188] sm:$0xff] %vm3235, %v3220
          %3286 = vst.msk [vmem:[#allocation2 + $0x190] sm:$0xff] %vm3235, %v3221
          %3287 = vst.msk [vmem:[#allocation2 + $0x198] sm:$0xff] %vm3235, %v3222
          %3288 = vst.msk [vmem:[#allocation2 + $0x1a0] sm:$0xff] %vm3235, %v3223
          %3289 = vst.msk [vmem:[#allocation2 + $0x1a8] sm:$0xff] %vm3235, %v3224
          %3290 = vst.msk [vmem:[#allocation2 + $0x1b0] sm:$0xff] %vm3235, %v3225
          %3291 = vst.msk [vmem:[#allocation2 + $0x1b8] sm:$0xff] %vm3235, %v3226
          %3292 = vst.msk [vmem:[#allocation2 + $0x1c0] sm:$0xff] %vm3235, %v3227
          %3293 = vst.msk [vmem:[#allocation2 + $0x1c8] sm:$0xff] %vm3235, %v3228
          %3294 = vst.msk [vmem:[#allocation2 + $0x1d0] sm:$0xff] %vm3235, %v3229
          %3295 = vst.msk [vmem:[#allocation2 + $0x1d8] sm:$0xff] %vm3235, %v3230
          %3296 = vst.msk [vmem:[#allocation2 + $0x1e0] sm:$0xff] %vm3235, %v3231
          %3297 = vst.msk [vmem:[#allocation2 + $0x1e8] sm:$0xff] %vm3235, %v3232
          %3298 = vst.msk [vmem:[#allocation2 + $0x1f0] sm:$0xff] %vm3235, %v3233
          %3299 = vst.msk [vmem:[#allocation2 + $0x1f8] sm:$0xff] %vm3235, %v3234
        $region92: #{tpu_custom_call.1} parent=83 // pred_fallthru
          _
        // Predicated region
        $region93: #{tpu_custom_call.1} parent=83 // pred_check
          %p3300 = pneg %p3034
        $region94: #{tpu_custom_call.1} parent=83 // pred_check_branch
          %3302 = sbr.rel (%p3300) target = $region96
        $region95: #{tpu_custom_call.1} parent=83 // pred_region
          %v3303 = vld [vmem:[#allocation2] sm:$0xff]
          %v3304 = vld [vmem:[#allocation2 + $0x8] sm:$0xff]
          %v3305 = vld [vmem:[#allocation2 + $0x10] sm:$0xff]
          %v3306 = vld [vmem:[#allocation2 + $0x18] sm:$0xff]
          %v3307 = vld [vmem:[#allocation2 + $0x20] sm:$0xff]
          %v3308 = vld [vmem:[#allocation2 + $0x28] sm:$0xff]
          %v3309 = vld [vmem:[#allocation2 + $0x30] sm:$0xff]
          %v3310 = vld [vmem:[#allocation2 + $0x38] sm:$0xff]
          %v3311 = vld [vmem:[#allocation2 + $0x40] sm:$0xff]
          %v3312 = vld [vmem:[#allocation2 + $0x48] sm:$0xff]
          %v3313 = vld [vmem:[#allocation2 + $0x50] sm:$0xff]
          %v3314 = vld [vmem:[#allocation2 + $0x58] sm:$0xff]
          %v3315 = vld [vmem:[#allocation2 + $0x60] sm:$0xff]
          %v3316 = vld [vmem:[#allocation2 + $0x68] sm:$0xff]
          %v3317 = vld [vmem:[#allocation2 + $0x70] sm:$0xff]
          %v3318 = vld [vmem:[#allocation2 + $0x78] sm:$0xff]
          %v3319 = vld [vmem:[#allocation2 + $0x80] sm:$0xff]
          %v3320 = vld [vmem:[#allocation2 + $0x88] sm:$0xff]
          %v3321 = vld [vmem:[#allocation2 + $0x90] sm:$0xff]
          %v3322 = vld [vmem:[#allocation2 + $0x98] sm:$0xff]
          %v3323 = vld [vmem:[#allocation2 + $0xa0] sm:$0xff]
          %v3324 = vld [vmem:[#allocation2 + $0xa8] sm:$0xff]
          %v3325 = vld [vmem:[#allocation2 + $0xb0] sm:$0xff]
          %v3326 = vld [vmem:[#allocation2 + $0xb8] sm:$0xff]
          %v3327 = vld [vmem:[#allocation2 + $0xc0] sm:$0xff]
          %v3328 = vld [vmem:[#allocation2 + $0xc8] sm:$0xff]
          %v3329 = vld [vmem:[#allocation2 + $0xd0] sm:$0xff]
          %v3330 = vld [vmem:[#allocation2 + $0xd8] sm:$0xff]
          %v3331 = vld [vmem:[#allocation2 + $0xe0] sm:$0xff]
          %v3332 = vld [vmem:[#allocation2 + $0xe8] sm:$0xff]
          %v3333 = vld [vmem:[#allocation2 + $0xf0] sm:$0xff]
          %v3334 = vld [vmem:[#allocation2 + $0xf8] sm:$0xff]
          %v3335 = vld [vmem:[#allocation2 + $0x100] sm:$0xff]
          %v3336 = vld [vmem:[#allocation2 + $0x108] sm:$0xff]
          %v3337 = vld [vmem:[#allocation2 + $0x110] sm:$0xff]
          %v3338 = vld [vmem:[#allocation2 + $0x118] sm:$0xff]
          %v3339 = vld [vmem:[#allocation2 + $0x120] sm:$0xff]
          %v3340 = vld [vmem:[#allocation2 + $0x128] sm:$0xff]
          %v3341 = vld [vmem:[#allocation2 + $0x130] sm:$0xff]
          %v3342 = vld [vmem:[#allocation2 + $0x138] sm:$0xff]
          %v3343 = vld [vmem:[#allocation2 + $0x140] sm:$0xff]
          %v3344 = vld [vmem:[#allocation2 + $0x148] sm:$0xff]
          %v3345 = vld [vmem:[#allocation2 + $0x150] sm:$0xff]
          %v3346 = vld [vmem:[#allocation2 + $0x158] sm:$0xff]
          %v3347 = vld [vmem:[#allocation2 + $0x160] sm:$0xff]
          %v3348 = vld [vmem:[#allocation2 + $0x168] sm:$0xff]
          %v3349 = vld [vmem:[#allocation2 + $0x170] sm:$0xff]
          %v3350 = vld [vmem:[#allocation2 + $0x178] sm:$0xff]
          %v3351 = vld [vmem:[#allocation2 + $0x180] sm:$0xff]
          %v3352 = vld [vmem:[#allocation2 + $0x188] sm:$0xff]
          %v3353 = vld [vmem:[#allocation2 + $0x190] sm:$0xff]
          %v3354 = vld [vmem:[#allocation2 + $0x198] sm:$0xff]
          %v3355 = vld [vmem:[#allocation2 + $0x1a0] sm:$0xff]
          %v3356 = vld [vmem:[#allocation2 + $0x1a8] sm:$0xff]
          %v3357 = vld [vmem:[#allocation2 + $0x1b0] sm:$0xff]
          %v3358 = vld [vmem:[#allocation2 + $0x1b8] sm:$0xff]
          %v3359 = vld [vmem:[#allocation2 + $0x1c0] sm:$0xff]
          %v3360 = vld [vmem:[#allocation2 + $0x1c8] sm:$0xff]
          %v3361 = vld [vmem:[#allocation2 + $0x1d0] sm:$0xff]
          %v3362 = vld [vmem:[#allocation2 + $0x1d8] sm:$0xff]
          %v3363 = vld [vmem:[#allocation2 + $0x1e0] sm:$0xff]
          %v3364 = vld [vmem:[#allocation2 + $0x1e8] sm:$0xff]
          %v3365 = vld [vmem:[#allocation2 + $0x1f0] sm:$0xff]
          %v3366 = vld [vmem:[#allocation2 + $0x1f8] sm:$0xff]
          %v3367 = vld [vmem:[%s9] sm:$0xff]
          %v3368 = vld [vmem:[%s9 + $0x8] sm:$0xff]
          %v3369 = vld [vmem:[%s9 + $0x10] sm:$0xff]
          %v3370 = vld [vmem:[%s9 + $0x18] sm:$0xff]
          %v3371 = vld [vmem:[%s9 + $0x20] sm:$0xff]
          %v3372 = vld [vmem:[%s9 + $0x28] sm:$0xff]
          %v3373 = vld [vmem:[%s9 + $0x30] sm:$0xff]
          %v3374 = vld [vmem:[%s9 + $0x38] sm:$0xff]
          %v3375 = vld [vmem:[%s9 + $0x40] sm:$0xff]
          %v3376 = vld [vmem:[%s9 + $0x48] sm:$0xff]
          %v3377 = vld [vmem:[%s9 + $0x50] sm:$0xff]
          %v3378 = vld [vmem:[%s9 + $0x58] sm:$0xff]
          %v3379 = vld [vmem:[%s9 + $0x60] sm:$0xff]
          %v3380 = vld [vmem:[%s9 + $0x68] sm:$0xff]
          %v3381 = vld [vmem:[%s9 + $0x70] sm:$0xff]
          %v3382 = vld [vmem:[%s9 + $0x78] sm:$0xff]
          %v3383 = vld [vmem:[%s9 + $0x80] sm:$0xff]
          %v3384 = vld [vmem:[%s9 + $0x88] sm:$0xff]
          %v3385 = vld [vmem:[%s9 + $0x90] sm:$0xff]
          %v3386 = vld [vmem:[%s9 + $0x98] sm:$0xff]
          %v3387 = vld [vmem:[%s9 + $0xa0] sm:$0xff]
          %v3388 = vld [vmem:[%s9 + $0xa8] sm:$0xff]
          %v3389 = vld [vmem:[%s9 + $0xb0] sm:$0xff]
          %v3390 = vld [vmem:[%s9 + $0xb8] sm:$0xff]
          %v3391 = vld [vmem:[%s9 + $0xc0] sm:$0xff]
          %v3392 = vld [vmem:[%s9 + $0xc8] sm:$0xff]
          %v3393 = vld [vmem:[%s9 + $0xd0] sm:$0xff]
          %v3394 = vld [vmem:[%s9 + $0xd8] sm:$0xff]
          %v3395 = vld [vmem:[%s9 + $0xe0] sm:$0xff]
          %v3396 = vld [vmem:[%s9 + $0xe8] sm:$0xff]
          %v3397 = vld [vmem:[%s9 + $0xf0] sm:$0xff]
          %v3398 = vld [vmem:[%s9 + $0xf8] sm:$0xff]
          %v3399 = vld [vmem:[%s9 + $0x100] sm:$0xff]
          %v3400 = vld [vmem:[%s9 + $0x108] sm:$0xff]
          %v3401 = vld [vmem:[%s9 + $0x110] sm:$0xff]
          %v3402 = vld [vmem:[%s9 + $0x118] sm:$0xff]
          %v3403 = vld [vmem:[%s9 + $0x120] sm:$0xff]
          %v3404 = vld [vmem:[%s9 + $0x128] sm:$0xff]
          %v3405 = vld [vmem:[%s9 + $0x130] sm:$0xff]
          %v3406 = vld [vmem:[%s9 + $0x138] sm:$0xff]
          %v3407 = vld [vmem:[%s9 + $0x140] sm:$0xff]
          %v3408 = vld [vmem:[%s9 + $0x148] sm:$0xff]
          %v3409 = vld [vmem:[%s9 + $0x150] sm:$0xff]
          %v3410 = vld [vmem:[%s9 + $0x158] sm:$0xff]
          %v3411 = vld [vmem:[%s9 + $0x160] sm:$0xff]
          %v3412 = vld [vmem:[%s9 + $0x168] sm:$0xff]
          %v3413 = vld [vmem:[%s9 + $0x170] sm:$0xff]
          %v3414 = vld [vmem:[%s9 + $0x178] sm:$0xff]
          %v3415 = vld [vmem:[%s9 + $0x180] sm:$0xff]
          %v3416 = vld [vmem:[%s9 + $0x188] sm:$0xff]
          %v3417 = vld [vmem:[%s9 + $0x190] sm:$0xff]
          %v3418 = vld [vmem:[%s9 + $0x198] sm:$0xff]
          %v3419 = vld [vmem:[%s9 + $0x1a0] sm:$0xff]
          %v3420 = vld [vmem:[%s9 + $0x1a8] sm:$0xff]
          %v3421 = vld [vmem:[%s9 + $0x1b0] sm:$0xff]
          %v3422 = vld [vmem:[%s9 + $0x1b8] sm:$0xff]
          %v3423 = vld [vmem:[%s9 + $0x1c0] sm:$0xff]
          %v3424 = vld [vmem:[%s9 + $0x1c8] sm:$0xff]
          %v3425 = vld [vmem:[%s9 + $0x1d0] sm:$0xff]
          %v3426 = vld [vmem:[%s9 + $0x1d8] sm:$0xff]
          %v3427 = vld [vmem:[%s9 + $0x1e0] sm:$0xff]
          %v3428 = vld [vmem:[%s9 + $0x1e8] sm:$0xff]
          %v3429 = vld [vmem:[%s9 + $0x1f0] sm:$0xff]
          %v3430 = vld [vmem:[%s9 + $0x1f8] sm:$0xff]
          %v3431 = vld [vmem:[%s9 + $0x200] sm:$0xff]
          %v3432 = vld [vmem:[%s9 + $0x208] sm:$0xff]
          %v3433 = vld [vmem:[%s9 + $0x210] sm:$0xff]
          %v3434 = vld [vmem:[%s9 + $0x218] sm:$0xff]
          %v3435 = vld [vmem:[%s9 + $0x220] sm:$0xff]
          %v3436 = vld [vmem:[%s9 + $0x228] sm:$0xff]
          %v3437 = vld [vmem:[%s9 + $0x230] sm:$0xff]
          %v3438 = vld [vmem:[%s9 + $0x238] sm:$0xff]
          %v3439 = vld [vmem:[%s9 + $0x240] sm:$0xff]
          %v3440 = vld [vmem:[%s9 + $0x248] sm:$0xff]
          %v3441 = vld [vmem:[%s9 + $0x250] sm:$0xff]
          %v3442 = vld [vmem:[%s9 + $0x258] sm:$0xff]
          %v3443 = vld [vmem:[%s9 + $0x260] sm:$0xff]
          %v3444 = vld [vmem:[%s9 + $0x268] sm:$0xff]
          %v3445 = vld [vmem:[%s9 + $0x270] sm:$0xff]
          %v3446 = vld [vmem:[%s9 + $0x278] sm:$0xff]
          %v3447 = vld [vmem:[%s9 + $0x280] sm:$0xff]
          %v3448 = vld [vmem:[%s9 + $0x288] sm:$0xff]
          %v3449 = vld [vmem:[%s9 + $0x290] sm:$0xff]
          %v3450 = vld [vmem:[%s9 + $0x298] sm:$0xff]
          %v3451 = vld [vmem:[%s9 + $0x2a0] sm:$0xff]
          %v3452 = vld [vmem:[%s9 + $0x2a8] sm:$0xff]
          %v3453 = vld [vmem:[%s9 + $0x2b0] sm:$0xff]
          %v3454 = vld [vmem:[%s9 + $0x2b8] sm:$0xff]
          %v3455 = vld [vmem:[%s9 + $0x2c0] sm:$0xff]
          %v3456 = vld [vmem:[%s9 + $0x2c8] sm:$0xff]
          %v3457 = vld [vmem:[%s9 + $0x2d0] sm:$0xff]
          %v3458 = vld [vmem:[%s9 + $0x2d8] sm:$0xff]
          %v3459 = vld [vmem:[%s9 + $0x2e0] sm:$0xff]
          %v3460 = vld [vmem:[%s9 + $0x2e8] sm:$0xff]
          %v3461 = vld [vmem:[%s9 + $0x2f0] sm:$0xff]
          %v3462 = vld [vmem:[%s9 + $0x2f8] sm:$0xff]
          %v3463 = vld [vmem:[%s9 + $0x300] sm:$0xff]
          %v3464 = vld [vmem:[%s9 + $0x308] sm:$0xff]
          %v3465 = vld [vmem:[%s9 + $0x310] sm:$0xff]
          %v3466 = vld [vmem:[%s9 + $0x318] sm:$0xff]
          %v3467 = vld [vmem:[%s9 + $0x320] sm:$0xff]
          %v3468 = vld [vmem:[%s9 + $0x328] sm:$0xff]
          %v3469 = vld [vmem:[%s9 + $0x330] sm:$0xff]
          %v3470 = vld [vmem:[%s9 + $0x338] sm:$0xff]
          %v3471 = vld [vmem:[%s9 + $0x340] sm:$0xff]
          %v3472 = vld [vmem:[%s9 + $0x348] sm:$0xff]
          %v3473 = vld [vmem:[%s9 + $0x350] sm:$0xff]
          %v3474 = vld [vmem:[%s9 + $0x358] sm:$0xff]
          %v3475 = vld [vmem:[%s9 + $0x360] sm:$0xff]
          %v3476 = vld [vmem:[%s9 + $0x368] sm:$0xff]
          %v3477 = vld [vmem:[%s9 + $0x370] sm:$0xff]
          %v3478 = vld [vmem:[%s9 + $0x378] sm:$0xff]
          %v3479 = vld [vmem:[%s9 + $0x380] sm:$0xff]
          %v3480 = vld [vmem:[%s9 + $0x388] sm:$0xff]
          %v3481 = vld [vmem:[%s9 + $0x390] sm:$0xff]
          %v3482 = vld [vmem:[%s9 + $0x398] sm:$0xff]
          %v3483 = vld [vmem:[%s9 + $0x3a0] sm:$0xff]
          %v3484 = vld [vmem:[%s9 + $0x3a8] sm:$0xff]
          %v3485 = vld [vmem:[%s9 + $0x3b0] sm:$0xff]
          %v3486 = vld [vmem:[%s9 + $0x3b8] sm:$0xff]
          %v3487 = vld [vmem:[%s9 + $0x3c0] sm:$0xff]
          %v3488 = vld [vmem:[%s9 + $0x3c8] sm:$0xff]
          %v3489 = vld [vmem:[%s9 + $0x3d0] sm:$0xff]
          %v3490 = vld [vmem:[%s9 + $0x3d8] sm:$0xff]
          %v3491 = vld [vmem:[%s9 + $0x3e0] sm:$0xff]
          %v3492 = vld [vmem:[%s9 + $0x3e8] sm:$0xff]
          %v3493 = vld [vmem:[%s9 + $0x3f0] sm:$0xff]
          %v3494 = vld [vmem:[%s9 + $0x3f8] sm:$0xff]
          %v3495 = vld [vmem:[%s10] sm:$0xff]
          %v3496 = vld [vmem:[%s10 + $0x8] sm:$0xff]
          %v3497 = vld [vmem:[%s10 + $0x10] sm:$0xff]
          %v3498 = vld [vmem:[%s10 + $0x18] sm:$0xff]
          %v3499 = vld [vmem:[%s10 + $0x20] sm:$0xff]
          %v3500 = vld [vmem:[%s10 + $0x28] sm:$0xff]
          %v3501 = vld [vmem:[%s10 + $0x30] sm:$0xff]
          %v3502 = vld [vmem:[%s10 + $0x38] sm:$0xff]
          %v3503 = vld [vmem:[%s10 + $0x40] sm:$0xff]
          %v3504 = vld [vmem:[%s10 + $0x48] sm:$0xff]
          %v3505 = vld [vmem:[%s10 + $0x50] sm:$0xff]
          %v3506 = vld [vmem:[%s10 + $0x58] sm:$0xff]
          %v3507 = vld [vmem:[%s10 + $0x60] sm:$0xff]
          %v3508 = vld [vmem:[%s10 + $0x68] sm:$0xff]
          %v3509 = vld [vmem:[%s10 + $0x70] sm:$0xff]
          %v3510 = vld [vmem:[%s10 + $0x78] sm:$0xff]
          %v3511 = vld [vmem:[%s10 + $0x80] sm:$0xff]
          %v3512 = vld [vmem:[%s10 + $0x88] sm:$0xff]
          %v3513 = vld [vmem:[%s10 + $0x90] sm:$0xff]
          %v3514 = vld [vmem:[%s10 + $0x98] sm:$0xff]
          %v3515 = vld [vmem:[%s10 + $0xa0] sm:$0xff]
          %v3516 = vld [vmem:[%s10 + $0xa8] sm:$0xff]
          %v3517 = vld [vmem:[%s10 + $0xb0] sm:$0xff]
          %v3518 = vld [vmem:[%s10 + $0xb8] sm:$0xff]
          %v3519 = vld [vmem:[%s10 + $0xc0] sm:$0xff]
          %v3520 = vld [vmem:[%s10 + $0xc8] sm:$0xff]
          %v3521 = vld [vmem:[%s10 + $0xd0] sm:$0xff]
          %v3522 = vld [vmem:[%s10 + $0xd8] sm:$0xff]
          %v3523 = vld [vmem:[%s10 + $0xe0] sm:$0xff]
          %v3524 = vld [vmem:[%s10 + $0xe8] sm:$0xff]
          %v3525 = vld [vmem:[%s10 + $0xf0] sm:$0xff]
          %v3526 = vld [vmem:[%s10 + $0xf8] sm:$0xff]
          %3527 = vmatpush.msra.mxu0 %v3318
          %3528 = vmatpush.msra.mxu0 %v3317
          %3529 = vmatpush.msra.mxu0 %v3316
          %3530 = vmatpush.msra.mxu0 %v3315
          %3531 = vmatpush.msra.mxu0 %v3314
          %3532 = vmatpush.msra.mxu0 %v3313
          %3533 = vmatpush.msra.mxu0 %v3312
          %3534 = vmatpush.msra.mxu0 %v3311
          %3535 = vmatpush.msra.mxu0 %v3310
          %3536 = vmatpush.msra.mxu0 %v3309
          %3537 = vmatpush.msra.mxu0 %v3308
          %3538 = vmatpush.msra.mxu0 %v3307
          %3539 = vmatpush.msra.mxu0 %v3306
          %3540 = vmatpush.msra.mxu0 %v3305
          %3541 = vmatpush.msra.mxu0 %v3304
          %3542 = vmatpush.msra.mxu0 %v3303
          %3543 = vmatmul.f32.gmra.mxu0 %v3367
          %v3544 = vpop.f32.mrf.mxu0
          %v3545 = vadd.f32 %v3495, %v3544
          %3546 = vmatmul.f32.gmra.mxu0 %v3371
          %v3547 = vpop.f32.mrf.mxu0
          %v3548 = vadd.f32 %v3496, %v3547
          %3549 = vmatmul.f32.gmra.mxu0 %v3375
          %v3550 = vpop.f32.mrf.mxu0
          %v3551 = vadd.f32 %v3497, %v3550
          %3552 = vmatmul.f32.gmra.mxu0 %v3379
          %v3553 = vpop.f32.mrf.mxu0
          %v3554 = vadd.f32 %v3498, %v3553
          %3555 = vmatmul.f32.gmra.mxu0 %v3383
          %v3556 = vpop.f32.mrf.mxu0
          %v3557 = vadd.f32 %v3499, %v3556
          %3558 = vmatmul.f32.gmra.mxu0 %v3387
          %v3559 = vpop.f32.mrf.mxu0
          %v3560 = vadd.f32 %v3500, %v3559
          %3561 = vmatmul.f32.gmra.mxu0 %v3391
          %v3562 = vpop.f32.mrf.mxu0
          %v3563 = vadd.f32 %v3501, %v3562
          %3564 = vmatmul.f32.gmra.mxu0 %v3395
          %v3565 = vpop.f32.mrf.mxu0
          %v3566 = vadd.f32 %v3502, %v3565
          %3567 = vmatmul.f32.gmra.mxu0 %v3399
          %v3568 = vpop.f32.mrf.mxu0
          %v3569 = vadd.f32 %v3503, %v3568
          %3570 = vmatmul.f32.gmra.mxu0 %v3403
          %v3571 = vpop.f32.mrf.mxu0
          %v3572 = vadd.f32 %v3504, %v3571
          %3573 = vmatmul.f32.gmra.mxu0 %v3407
          %v3574 = vpop.f32.mrf.mxu0
          %v3575 = vadd.f32 %v3505, %v3574
          %3576 = vmatmul.f32.gmra.mxu0 %v3411
          %v3577 = vpop.f32.mrf.mxu0
          %v3578 = vadd.f32 %v3506, %v3577
          %3579 = vmatmul.f32.gmra.mxu0 %v3415
          %v3580 = vpop.f32.mrf.mxu0
          %v3581 = vadd.f32 %v3507, %v3580
          %3582 = vmatmul.f32.gmra.mxu0 %v3419
          %v3583 = vpop.f32.mrf.mxu0
          %v3584 = vadd.f32 %v3508, %v3583
          %3585 = vmatmul.f32.gmra.mxu0 %v3423
          %v3586 = vpop.f32.mrf.mxu0
          %v3587 = vadd.f32 %v3509, %v3586
          %3588 = vmatmul.f32.gmra.mxu0 %v3427
          %v3589 = vpop.f32.mrf.mxu0
          %v3590 = vadd.f32 %v3510, %v3589
          %3591 = vmatmul.f32.gmra.mxu0 %v3431
          %v3592 = vpop.f32.mrf.mxu0
          %v3593 = vadd.f32 %v3511, %v3592
          %3594 = vmatmul.f32.gmra.mxu0 %v3435
          %v3595 = vpop.f32.mrf.mxu0
          %v3596 = vadd.f32 %v3512, %v3595
          %3597 = vmatmul.f32.gmra.mxu0 %v3439
          %v3598 = vpop.f32.mrf.mxu0
          %v3599 = vadd.f32 %v3513, %v3598
          %3600 = vmatmul.f32.gmra.mxu0 %v3443
          %v3601 = vpop.f32.mrf.mxu0
          %v3602 = vadd.f32 %v3514, %v3601
          %3603 = vmatmul.f32.gmra.mxu0 %v3447
          %v3604 = vpop.f32.mrf.mxu0
          %v3605 = vadd.f32 %v3515, %v3604
          %3606 = vmatmul.f32.gmra.mxu0 %v3451
          %v3607 = vpop.f32.mrf.mxu0
          %v3608 = vadd.f32 %v3516, %v3607
          %3609 = vmatmul.f32.gmra.mxu0 %v3455
          %v3610 = vpop.f32.mrf.mxu0
          %v3611 = vadd.f32 %v3517, %v3610
          %3612 = vmatmul.f32.gmra.mxu0 %v3459
          %v3613 = vpop.f32.mrf.mxu0
          %v3614 = vadd.f32 %v3518, %v3613
          %3615 = vmatmul.f32.gmra.mxu0 %v3463
          %v3616 = vpop.f32.mrf.mxu0
          %v3617 = vadd.f32 %v3519, %v3616
          %3618 = vmatmul.f32.gmra.mxu0 %v3467
          %v3619 = vpop.f32.mrf.mxu0
          %v3620 = vadd.f32 %v3520, %v3619
          %3621 = vmatmul.f32.gmra.mxu0 %v3471
          %v3622 = vpop.f32.mrf.mxu0
          %v3623 = vadd.f32 %v3521, %v3622
          %3624 = vmatmul.f32.gmra.mxu0 %v3475
          %v3625 = vpop.f32.mrf.mxu0
          %v3626 = vadd.f32 %v3522, %v3625
          %3627 = vmatmul.f32.gmra.mxu0 %v3479
          %v3628 = vpop.f32.mrf.mxu0
          %v3629 = vadd.f32 %v3523, %v3628
          %3630 = vmatmul.f32.gmra.mxu0 %v3483
          %v3631 = vpop.f32.mrf.mxu0
          %v3632 = vadd.f32 %v3524, %v3631
          %3633 = vmatmul.f32.gmra.mxu0 %v3487
          %v3634 = vpop.f32.mrf.mxu0
          %v3635 = vadd.f32 %v3525, %v3634
          %3636 = vmatmul.f32.gmra.mxu0 %v3491
          %v3637 = vpop.f32.mrf.mxu0
          %v3638 = vadd.f32 %v3526, %v3637
          %3639 = vdwg.mxu0
          %3640 = vmatpush.msra.mxu0 %v3334
          %3641 = vmatpush.msra.mxu0 %v3333
          %3642 = vmatpush.msra.mxu0 %v3332
          %3643 = vmatpush.msra.mxu0 %v3331
          %3644 = vmatpush.msra.mxu0 %v3330
          %3645 = vmatpush.msra.mxu0 %v3329
          %3646 = vmatpush.msra.mxu0 %v3328
          %3647 = vmatpush.msra.mxu0 %v3327
          %3648 = vmatpush.msra.mxu0 %v3326
          %3649 = vmatpush.msra.mxu0 %v3325
          %3650 = vmatpush.msra.mxu0 %v3324
          %3651 = vmatpush.msra.mxu0 %v3323
          %3652 = vmatpush.msra.mxu0 %v3322
          %3653 = vmatpush.msra.mxu0 %v3321
          %3654 = vmatpush.msra.mxu0 %v3320
          %3655 = vmatpush.msra.mxu0 %v3319
          %3656 = vmatmul.f32.gmra.mxu0 %v3368
          %v3657 = vpop.f32.mrf.mxu0
          %v3658 = vadd.f32 %v3545, %v3657
          %3659 = vmatmul.f32.gmra.mxu0 %v3372
          %v3660 = vpop.f32.mrf.mxu0
          %v3661 = vadd.f32 %v3548, %v3660
          %3662 = vmatmul.f32.gmra.mxu0 %v3376
          %v3663 = vpop.f32.mrf.mxu0
          %v3664 = vadd.f32 %v3551, %v3663
          %3665 = vmatmul.f32.gmra.mxu0 %v3380
          %v3666 = vpop.f32.mrf.mxu0
          %v3667 = vadd.f32 %v3554, %v3666
          %3668 = vmatmul.f32.gmra.mxu0 %v3384
          %v3669 = vpop.f32.mrf.mxu0
          %v3670 = vadd.f32 %v3557, %v3669
          %3671 = vmatmul.f32.gmra.mxu0 %v3388
          %v3672 = vpop.f32.mrf.mxu0
          %v3673 = vadd.f32 %v3560, %v3672
          %3674 = vmatmul.f32.gmra.mxu0 %v3392
          %v3675 = vpop.f32.mrf.mxu0
          %v3676 = vadd.f32 %v3563, %v3675
          %3677 = vmatmul.f32.gmra.mxu0 %v3396
          %v3678 = vpop.f32.mrf.mxu0
          %v3679 = vadd.f32 %v3566, %v3678
          %3680 = vmatmul.f32.gmra.mxu0 %v3400
          %v3681 = vpop.f32.mrf.mxu0
          %v3682 = vadd.f32 %v3569, %v3681
          %3683 = vmatmul.f32.gmra.mxu0 %v3404
          %v3684 = vpop.f32.mrf.mxu0
          %v3685 = vadd.f32 %v3572, %v3684
          %3686 = vmatmul.f32.gmra.mxu0 %v3408
          %v3687 = vpop.f32.mrf.mxu0
          %v3688 = vadd.f32 %v3575, %v3687
          %3689 = vmatmul.f32.gmra.mxu0 %v3412
          %v3690 = vpop.f32.mrf.mxu0
          %v3691 = vadd.f32 %v3578, %v3690
          %3692 = vmatmul.f32.gmra.mxu0 %v3416
          %v3693 = vpop.f32.mrf.mxu0
          %v3694 = vadd.f32 %v3581, %v3693
          %3695 = vmatmul.f32.gmra.mxu0 %v3420
          %v3696 = vpop.f32.mrf.mxu0
          %v3697 = vadd.f32 %v3584, %v3696
          %3698 = vmatmul.f32.gmra.mxu0 %v3424
          %v3699 = vpop.f32.mrf.mxu0
          %v3700 = vadd.f32 %v3587, %v3699
          %3701 = vmatmul.f32.gmra.mxu0 %v3428
          %v3702 = vpop.f32.mrf.mxu0
          %v3703 = vadd.f32 %v3590, %v3702
          %3704 = vmatmul.f32.gmra.mxu0 %v3432
          %v3705 = vpop.f32.mrf.mxu0
          %v3706 = vadd.f32 %v3593, %v3705
          %3707 = vmatmul.f32.gmra.mxu0 %v3436
          %v3708 = vpop.f32.mrf.mxu0
          %v3709 = vadd.f32 %v3596, %v3708
          %3710 = vmatmul.f32.gmra.mxu0 %v3440
          %v3711 = vpop.f32.mrf.mxu0
          %v3712 = vadd.f32 %v3599, %v3711
          %3713 = vmatmul.f32.gmra.mxu0 %v3444
          %v3714 = vpop.f32.mrf.mxu0
          %v3715 = vadd.f32 %v3602, %v3714
          %3716 = vmatmul.f32.gmra.mxu0 %v3448
          %v3717 = vpop.f32.mrf.mxu0
          %v3718 = vadd.f32 %v3605, %v3717
          %3719 = vmatmul.f32.gmra.mxu0 %v3452
          %v3720 = vpop.f32.mrf.mxu0
          %v3721 = vadd.f32 %v3608, %v3720
          %3722 = vmatmul.f32.gmra.mxu0 %v3456
          %v3723 = vpop.f32.mrf.mxu0
          %v3724 = vadd.f32 %v3611, %v3723
          %3725 = vmatmul.f32.gmra.mxu0 %v3460
          %v3726 = vpop.f32.mrf.mxu0
          %v3727 = vadd.f32 %v3614, %v3726
          %3728 = vmatmul.f32.gmra.mxu0 %v3464
          %v3729 = vpop.f32.mrf.mxu0
          %v3730 = vadd.f32 %v3617, %v3729
          %3731 = vmatmul.f32.gmra.mxu0 %v3468
          %v3732 = vpop.f32.mrf.mxu0
          %v3733 = vadd.f32 %v3620, %v3732
          %3734 = vmatmul.f32.gmra.mxu0 %v3472
          %v3735 = vpop.f32.mrf.mxu0
          %v3736 = vadd.f32 %v3623, %v3735
          %3737 = vmatmul.f32.gmra.mxu0 %v3476
          %v3738 = vpop.f32.mrf.mxu0
          %v3739 = vadd.f32 %v3626, %v3738
          %3740 = vmatmul.f32.gmra.mxu0 %v3480
          %v3741 = vpop.f32.mrf.mxu0
          %v3742 = vadd.f32 %v3629, %v3741
          %3743 = vmatmul.f32.gmra.mxu0 %v3484
          %v3744 = vpop.f32.mrf.mxu0
          %v3745 = vadd.f32 %v3632, %v3744
          %3746 = vmatmul.f32.gmra.mxu0 %v3488
          %v3747 = vpop.f32.mrf.mxu0
          %v3748 = vadd.f32 %v3635, %v3747
          %3749 = vmatmul.f32.gmra.mxu0 %v3492
          %v3750 = vpop.f32.mrf.mxu0
          %v3751 = vadd.f32 %v3638, %v3750
          %3752 = vdwg.mxu0
          %3753 = vmatpush.msra.mxu0 %v3350
          %3754 = vmatpush.msra.mxu0 %v3349
          %3755 = vmatpush.msra.mxu0 %v3348
          %3756 = vmatpush.msra.mxu0 %v3347
          %3757 = vmatpush.msra.mxu0 %v3346
          %3758 = vmatpush.msra.mxu0 %v3345
          %3759 = vmatpush.msra.mxu0 %v3344
          %3760 = vmatpush.msra.mxu0 %v3343
          %3761 = vmatpush.msra.mxu0 %v3342
          %3762 = vmatpush.msra.mxu0 %v3341
          %3763 = vmatpush.msra.mxu0 %v3340
          %3764 = vmatpush.msra.mxu0 %v3339
          %3765 = vmatpush.msra.mxu0 %v3338
          %3766 = vmatpush.msra.mxu0 %v3337
          %3767 = vmatpush.msra.mxu0 %v3336
          %3768 = vmatpush.msra.mxu0 %v3335
          %3769 = vmatmul.f32.gmra.mxu0 %v3369
          %v3770 = vpop.f32.mrf.mxu0
          %v3771 = vadd.f32 %v3658, %v3770
          %3772 = vmatmul.f32.gmra.mxu0 %v3373
          %v3773 = vpop.f32.mrf.mxu0
          %v3774 = vadd.f32 %v3661, %v3773
          %3775 = vmatmul.f32.gmra.mxu0 %v3377
          %v3776 = vpop.f32.mrf.mxu0
          %v3777 = vadd.f32 %v3664, %v3776
          %3778 = vmatmul.f32.gmra.mxu0 %v3381
          %v3779 = vpop.f32.mrf.mxu0
          %v3780 = vadd.f32 %v3667, %v3779
          %3781 = vmatmul.f32.gmra.mxu0 %v3385
          %v3782 = vpop.f32.mrf.mxu0
          %v3783 = vadd.f32 %v3670, %v3782
          %3784 = vmatmul.f32.gmra.mxu0 %v3389
          %v3785 = vpop.f32.mrf.mxu0
          %v3786 = vadd.f32 %v3673, %v3785
          %3787 = vmatmul.f32.gmra.mxu0 %v3393
          %v3788 = vpop.f32.mrf.mxu0
          %v3789 = vadd.f32 %v3676, %v3788
          %3790 = vmatmul.f32.gmra.mxu0 %v3397
          %v3791 = vpop.f32.mrf.mxu0
          %v3792 = vadd.f32 %v3679, %v3791
          %3793 = vmatmul.f32.gmra.mxu0 %v3401
          %v3794 = vpop.f32.mrf.mxu0
          %v3795 = vadd.f32 %v3682, %v3794
          %3796 = vmatmul.f32.gmra.mxu0 %v3405
          %v3797 = vpop.f32.mrf.mxu0
          %v3798 = vadd.f32 %v3685, %v3797
          %3799 = vmatmul.f32.gmra.mxu0 %v3409
          %v3800 = vpop.f32.mrf.mxu0
          %v3801 = vadd.f32 %v3688, %v3800
          %3802 = vmatmul.f32.gmra.mxu0 %v3413
          %v3803 = vpop.f32.mrf.mxu0
          %v3804 = vadd.f32 %v3691, %v3803
          %3805 = vmatmul.f32.gmra.mxu0 %v3417
          %v3806 = vpop.f32.mrf.mxu0
          %v3807 = vadd.f32 %v3694, %v3806
          %3808 = vmatmul.f32.gmra.mxu0 %v3421
          %v3809 = vpop.f32.mrf.mxu0
          %v3810 = vadd.f32 %v3697, %v3809
          %3811 = vmatmul.f32.gmra.mxu0 %v3425
          %v3812 = vpop.f32.mrf.mxu0
          %v3813 = vadd.f32 %v3700, %v3812
          %3814 = vmatmul.f32.gmra.mxu0 %v3429
          %v3815 = vpop.f32.mrf.mxu0
          %v3816 = vadd.f32 %v3703, %v3815
          %3817 = vmatmul.f32.gmra.mxu0 %v3433
          %v3818 = vpop.f32.mrf.mxu0
          %v3819 = vadd.f32 %v3706, %v3818
          %3820 = vmatmul.f32.gmra.mxu0 %v3437
          %v3821 = vpop.f32.mrf.mxu0
          %v3822 = vadd.f32 %v3709, %v3821
          %3823 = vmatmul.f32.gmra.mxu0 %v3441
          %v3824 = vpop.f32.mrf.mxu0
          %v3825 = vadd.f32 %v3712, %v3824
          %3826 = vmatmul.f32.gmra.mxu0 %v3445
          %v3827 = vpop.f32.mrf.mxu0
          %v3828 = vadd.f32 %v3715, %v3827
          %3829 = vmatmul.f32.gmra.mxu0 %v3449
          %v3830 = vpop.f32.mrf.mxu0
          %v3831 = vadd.f32 %v3718, %v3830
          %3832 = vmatmul.f32.gmra.mxu0 %v3453
          %v3833 = vpop.f32.mrf.mxu0
          %v3834 = vadd.f32 %v3721, %v3833
          %3835 = vmatmul.f32.gmra.mxu0 %v3457
          %v3836 = vpop.f32.mrf.mxu0
          %v3837 = vadd.f32 %v3724, %v3836
          %3838 = vmatmul.f32.gmra.mxu0 %v3461
          %v3839 = vpop.f32.mrf.mxu0
          %v3840 = vadd.f32 %v3727, %v3839
          %3841 = vmatmul.f32.gmra.mxu0 %v3465
          %v3842 = vpop.f32.mrf.mxu0
          %v3843 = vadd.f32 %v3730, %v3842
          %3844 = vmatmul.f32.gmra.mxu0 %v3469
          %v3845 = vpop.f32.mrf.mxu0
          %v3846 = vadd.f32 %v3733, %v3845
          %3847 = vmatmul.f32.gmra.mxu0 %v3473
          %v3848 = vpop.f32.mrf.mxu0
          %v3849 = vadd.f32 %v3736, %v3848
          %3850 = vmatmul.f32.gmra.mxu0 %v3477
          %v3851 = vpop.f32.mrf.mxu0
          %v3852 = vadd.f32 %v3739, %v3851
          %3853 = vmatmul.f32.gmra.mxu0 %v3481
          %v3854 = vpop.f32.mrf.mxu0
          %v3855 = vadd.f32 %v3742, %v3854
          %3856 = vmatmul.f32.gmra.mxu0 %v3485
          %v3857 = vpop.f32.mrf.mxu0
          %v3858 = vadd.f32 %v3745, %v3857
          %3859 = vmatmul.f32.gmra.mxu0 %v3489
          %v3860 = vpop.f32.mrf.mxu0
          %v3861 = vadd.f32 %v3748, %v3860
          %3862 = vmatmul.f32.gmra.mxu0 %v3493
          %v3863 = vpop.f32.mrf.mxu0
          %v3864 = vadd.f32 %v3751, %v3863
          %3865 = vdwg.mxu0
          %3866 = vmatpush.msra.mxu0 %v3366
          %3867 = vmatpush.msra.mxu0 %v3365
          %3868 = vmatpush.msra.mxu0 %v3364
          %3869 = vmatpush.msra.mxu0 %v3363
          %3870 = vmatpush.msra.mxu0 %v3362
          %3871 = vmatpush.msra.mxu0 %v3361
          %3872 = vmatpush.msra.mxu0 %v3360
          %3873 = vmatpush.msra.mxu0 %v3359
          %3874 = vmatpush.msra.mxu0 %v3358
          %3875 = vmatpush.msra.mxu0 %v3357
          %3876 = vmatpush.msra.mxu0 %v3356
          %3877 = vmatpush.msra.mxu0 %v3355
          %3878 = vmatpush.msra.mxu0 %v3354
          %3879 = vmatpush.msra.mxu0 %v3353
          %3880 = vmatpush.msra.mxu0 %v3352
          %3881 = vmatpush.msra.mxu0 %v3351
          %3882 = vmatmul.f32.gmra.mxu0 %v3370
          %v3883 = vpop.f32.mrf.mxu0
          %v3884 = vadd.f32 %v3771, %v3883
          %3885 = vmatmul.f32.gmra.mxu0 %v3374
          %v3886 = vpop.f32.mrf.mxu0
          %v3887 = vadd.f32 %v3774, %v3886
          %3888 = vmatmul.f32.gmra.mxu0 %v3378
          %v3889 = vpop.f32.mrf.mxu0
          %v3890 = vadd.f32 %v3777, %v3889
          %3891 = vmatmul.f32.gmra.mxu0 %v3382
          %v3892 = vpop.f32.mrf.mxu0
          %v3893 = vadd.f32 %v3780, %v3892
          %3894 = vmatmul.f32.gmra.mxu0 %v3386
          %v3895 = vpop.f32.mrf.mxu0
          %v3896 = vadd.f32 %v3783, %v3895
          %3897 = vmatmul.f32.gmra.mxu0 %v3390
          %v3898 = vpop.f32.mrf.mxu0
          %v3899 = vadd.f32 %v3786, %v3898
          %3900 = vmatmul.f32.gmra.mxu0 %v3394
          %v3901 = vpop.f32.mrf.mxu0
          %v3902 = vadd.f32 %v3789, %v3901
          %3903 = vmatmul.f32.gmra.mxu0 %v3398
          %v3904 = vpop.f32.mrf.mxu0
          %v3905 = vadd.f32 %v3792, %v3904
          %3906 = vmatmul.f32.gmra.mxu0 %v3402
          %v3907 = vpop.f32.mrf.mxu0
          %v3908 = vadd.f32 %v3795, %v3907
          %3909 = vmatmul.f32.gmra.mxu0 %v3406
          %v3910 = vpop.f32.mrf.mxu0
          %v3911 = vadd.f32 %v3798, %v3910
          %3912 = vmatmul.f32.gmra.mxu0 %v3410
          %v3913 = vpop.f32.mrf.mxu0
          %v3914 = vadd.f32 %v3801, %v3913
          %3915 = vmatmul.f32.gmra.mxu0 %v3414
          %v3916 = vpop.f32.mrf.mxu0
          %v3917 = vadd.f32 %v3804, %v3916
          %3918 = vmatmul.f32.gmra.mxu0 %v3418
          %v3919 = vpop.f32.mrf.mxu0
          %v3920 = vadd.f32 %v3807, %v3919
          %3921 = vmatmul.f32.gmra.mxu0 %v3422
          %v3922 = vpop.f32.mrf.mxu0
          %v3923 = vadd.f32 %v3810, %v3922
          %3924 = vmatmul.f32.gmra.mxu0 %v3426
          %v3925 = vpop.f32.mrf.mxu0
          %v3926 = vadd.f32 %v3813, %v3925
          %3927 = vmatmul.f32.gmra.mxu0 %v3430
          %v3928 = vpop.f32.mrf.mxu0
          %v3929 = vadd.f32 %v3816, %v3928
          %3930 = vmatmul.f32.gmra.mxu0 %v3434
          %v3931 = vpop.f32.mrf.mxu0
          %v3932 = vadd.f32 %v3819, %v3931
          %3933 = vmatmul.f32.gmra.mxu0 %v3438
          %v3934 = vpop.f32.mrf.mxu0
          %v3935 = vadd.f32 %v3822, %v3934
          %3936 = vmatmul.f32.gmra.mxu0 %v3442
          %v3937 = vpop.f32.mrf.mxu0
          %v3938 = vadd.f32 %v3825, %v3937
          %3939 = vmatmul.f32.gmra.mxu0 %v3446
          %v3940 = vpop.f32.mrf.mxu0
          %v3941 = vadd.f32 %v3828, %v3940
          %3942 = vmatmul.f32.gmra.mxu0 %v3450
          %v3943 = vpop.f32.mrf.mxu0
          %v3944 = vadd.f32 %v3831, %v3943
          %3945 = vmatmul.f32.gmra.mxu0 %v3454
          %v3946 = vpop.f32.mrf.mxu0
          %v3947 = vadd.f32 %v3834, %v3946
          %3948 = vmatmul.f32.gmra.mxu0 %v3458
          %v3949 = vpop.f32.mrf.mxu0
          %v3950 = vadd.f32 %v3837, %v3949
          %3951 = vmatmul.f32.gmra.mxu0 %v3462
          %v3952 = vpop.f32.mrf.mxu0
          %v3953 = vadd.f32 %v3840, %v3952
          %3954 = vmatmul.f32.gmra.mxu0 %v3466
          %v3955 = vpop.f32.mrf.mxu0
          %v3956 = vadd.f32 %v3843, %v3955
          %3957 = vmatmul.f32.gmra.mxu0 %v3470
          %v3958 = vpop.f32.mrf.mxu0
          %v3959 = vadd.f32 %v3846, %v3958
          %3960 = vmatmul.f32.gmra.mxu0 %v3474
          %v3961 = vpop.f32.mrf.mxu0
          %v3962 = vadd.f32 %v3849, %v3961
          %3963 = vmatmul.f32.gmra.mxu0 %v3478
          %v3964 = vpop.f32.mrf.mxu0
          %v3965 = vadd.f32 %v3852, %v3964
          %3966 = vmatmul.f32.gmra.mxu0 %v3482
          %v3967 = vpop.f32.mrf.mxu0
          %v3968 = vadd.f32 %v3855, %v3967
          %3969 = vmatmul.f32.gmra.mxu0 %v3486
          %v3970 = vpop.f32.mrf.mxu0
          %v3971 = vadd.f32 %v3858, %v3970
          %3972 = vmatmul.f32.gmra.mxu0 %v3490
          %v3973 = vpop.f32.mrf.mxu0
          %v3974 = vadd.f32 %v3861, %v3973
          %3975 = vmatmul.f32.gmra.mxu0 %v3494
          %v3976 = vpop.f32.mrf.mxu0
          %v3977 = vadd.f32 %v3864, %v3976
          %3978 = vdwg.mxu0
          %v3979 = vmax.f32 %v3884, 0.0
          %v3980 = vmax.f32 %v3887, 0.0
          %v3981 = vmax.f32 %v3890, 0.0
          %v3982 = vmax.f32 %v3893, 0.0
          %v3983 = vmax.f32 %v3896, 0.0
          %v3984 = vmax.f32 %v3899, 0.0
          %v3985 = vmax.f32 %v3902, 0.0
          %v3986 = vmax.f32 %v3905, 0.0
          %v3987 = vmax.f32 %v3908, 0.0
          %v3988 = vmax.f32 %v3911, 0.0
          %v3989 = vmax.f32 %v3914, 0.0
          %v3990 = vmax.f32 %v3917, 0.0
          %v3991 = vmax.f32 %v3920, 0.0
          %v3992 = vmax.f32 %v3923, 0.0
          %v3993 = vmax.f32 %v3926, 0.0
          %v3994 = vmax.f32 %v3929, 0.0
          %v3995 = vmax.f32 %v3932, 0.0
          %v3996 = vmax.f32 %v3935, 0.0
          %v3997 = vmax.f32 %v3938, 0.0
          %v3998 = vmax.f32 %v3941, 0.0
          %v3999 = vmax.f32 %v3944, 0.0
          %v4000 = vmax.f32 %v3947, 0.0
          %v4001 = vmax.f32 %v3950, 0.0
          %v4002 = vmax.f32 %v3953, 0.0
          %v4003 = vmax.f32 %v3956, 0.0
          %v4004 = vmax.f32 %v3959, 0.0
          %v4005 = vmax.f32 %v3962, 0.0
          %v4006 = vmax.f32 %v3965, 0.0
          %v4007 = vmax.f32 %v3968, 0.0
          %v4008 = vmax.f32 %v3971, 0.0
          %v4009 = vmax.f32 %v3974, 0.0
          %v4010 = vmax.f32 %v3977, 0.0
          %v4011 = vld [vmem:[%s11] sm:$0xff]
          %v4012 = vld [vmem:[%s11 + $0x8] sm:$0xff]
          %v4013 = vld [vmem:[%s11 + $0x10] sm:$0xff]
          %v4014 = vld [vmem:[%s11 + $0x18] sm:$0xff]
          %v4015 = vld [vmem:[%s11 + $0x20] sm:$0xff]
          %v4016 = vld [vmem:[%s11 + $0x28] sm:$0xff]
          %v4017 = vld [vmem:[%s11 + $0x30] sm:$0xff]
          %v4018 = vld [vmem:[%s11 + $0x38] sm:$0xff]
          %v4019 = vld [vmem:[%s12] sm:$0xff]
          %v4020 = vld [vmem:[%s12 + $0x8] sm:$0xff]
          %v4021 = vld [vmem:[%s12 + $0x10] sm:$0xff]
          %v4022 = vld [vmem:[%s12 + $0x18] sm:$0xff]
          %4023 = vmatpush.msra.mxu0 %v3994
          %4024 = vmatpush.msra.mxu0 %v3993
          %4025 = vmatpush.msra.mxu0 %v3992
          %4026 = vmatpush.msra.mxu0 %v3991
          %4027 = vmatpush.msra.mxu0 %v3990
          %4028 = vmatpush.msra.mxu0 %v3989
          %4029 = vmatpush.msra.mxu0 %v3988
          %4030 = vmatpush.msra.mxu0 %v3987
          %4031 = vmatpush.msra.mxu0 %v3986
          %4032 = vmatpush.msra.mxu0 %v3985
          %4033 = vmatpush.msra.mxu0 %v3984
          %4034 = vmatpush.msra.mxu0 %v3983
          %4035 = vmatpush.msra.mxu0 %v3982
          %4036 = vmatpush.msra.mxu0 %v3981
          %4037 = vmatpush.msra.mxu0 %v3980
          %4038 = vmatpush.msra.mxu0 %v3979
          %4039 = vmatmul.f32.gmra.mxu0 %v4011
          %v4040 = vpop.f32.mrf.mxu0
          %v4041 = vadd.f32 %v4019, %v4040
          %4042 = vmatmul.f32.gmra.mxu0 %v4013
          %v4043 = vpop.f32.mrf.mxu0
          %v4044 = vadd.f32 %v4020, %v4043
          %4045 = vmatmul.f32.gmra.mxu0 %v4015
          %v4046 = vpop.f32.mrf.mxu0
          %v4047 = vadd.f32 %v4021, %v4046
          %4048 = vmatmul.f32.gmra.mxu0 %v4017
          %v4049 = vpop.f32.mrf.mxu0
          %v4050 = vadd.f32 %v4022, %v4049
          %4051 = vdwg.mxu0
          %4052 = vmatpush.msra.mxu0 %v4010
          %4053 = vmatpush.msra.mxu0 %v4009
          %4054 = vmatpush.msra.mxu0 %v4008
          %4055 = vmatpush.msra.mxu0 %v4007
          %4056 = vmatpush.msra.mxu0 %v4006
          %4057 = vmatpush.msra.mxu0 %v4005
          %4058 = vmatpush.msra.mxu0 %v4004
          %4059 = vmatpush.msra.mxu0 %v4003
          %4060 = vmatpush.msra.mxu0 %v4002
          %4061 = vmatpush.msra.mxu0 %v4001
          %4062 = vmatpush.msra.mxu0 %v4000
          %4063 = vmatpush.msra.mxu0 %v3999
          %4064 = vmatpush.msra.mxu0 %v3998
          %4065 = vmatpush.msra.mxu0 %v3997
          %4066 = vmatpush.msra.mxu0 %v3996
          %4067 = vmatpush.msra.mxu0 %v3995
          %4068 = vmatmul.f32.gmra.mxu0 %v4012
          %v4069 = vpop.f32.mrf.mxu0
          %v4070 = vadd.f32 %v4041, %v4069
          %4071 = vmatmul.f32.gmra.mxu0 %v4014
          %v4072 = vpop.f32.mrf.mxu0
          %v4073 = vadd.f32 %v4044, %v4072
          %4074 = vmatmul.f32.gmra.mxu0 %v4016
          %v4075 = vpop.f32.mrf.mxu0
          %v4076 = vadd.f32 %v4047, %v4075
          %4077 = vmatmul.f32.gmra.mxu0 %v4018
          %v4078 = vpop.f32.mrf.mxu0
          %v4079 = vadd.f32 %v4050, %v4078
          %4080 = vdwg.mxu0
          %v4081 = vmax.f32 %v4070, 0.0
          %v4082 = vmax.f32 %v4073, 0.0
          %v4083 = vmax.f32 %v4076, 0.0
          %v4084 = vmax.f32 %v4079, 0.0
          %vm4085 = vcmask 7168
          %4086 = vst.msk [vmem:[%s618] sm:$0xff] %vm4085, %v4081
          %4087 = vst.msk [vmem:[%s618 + $0x8] sm:$0xff] %vm4085, %v4082
          %4088 = vst.msk [vmem:[%s618 + $0x10] sm:$0xff] %vm4085, %v4083
          %4089 = vst.msk [vmem:[%s618 + $0x18] sm:$0xff] %vm4085, %v4084
          %v4090 = vld [vmem:[%s13] sm:$0xff]
          %v4091 = vld [vmem:[%s13 + $0x8] sm:$0xff]
          %v4092 = vld [vmem:[%s13 + $0x10] sm:$0xff]
          %v4093 = vld [vmem:[%s13 + $0x18] sm:$0xff]
          %v4094 = vld [vmem:[%s13 + $0x20] sm:$0xff]
          %v4095 = vld [vmem:[%s13 + $0x28] sm:$0xff]
          %v4096 = vld [vmem:[%s13 + $0x30] sm:$0xff]
          %v4097 = vld [vmem:[%s13 + $0x38] sm:$0xff]
          %v4098 = vld [vmem:[%s13 + $0x40] sm:$0xff]
          %v4099 = vld [vmem:[%s13 + $0x48] sm:$0xff]
          %v4100 = vld [vmem:[%s13 + $0x50] sm:$0xff]
          %v4101 = vld [vmem:[%s13 + $0x58] sm:$0xff]
          %v4102 = vld [vmem:[%s13 + $0x60] sm:$0xff]
          %v4103 = vld [vmem:[%s13 + $0x68] sm:$0xff]
          %v4104 = vld [vmem:[%s13 + $0x70] sm:$0xff]
          %v4105 = vld [vmem:[%s13 + $0x78] sm:$0xff]
          %v4106 = vld [vmem:[%s13 + $0x80] sm:$0xff]
          %v4107 = vld [vmem:[%s13 + $0x88] sm:$0xff]
          %v4108 = vld [vmem:[%s13 + $0x90] sm:$0xff]
          %v4109 = vld [vmem:[%s13 + $0x98] sm:$0xff]
          %v4110 = vld [vmem:[%s13 + $0xa0] sm:$0xff]
          %v4111 = vld [vmem:[%s13 + $0xa8] sm:$0xff]
          %v4112 = vld [vmem:[%s13 + $0xb0] sm:$0xff]
          %v4113 = vld [vmem:[%s13 + $0xb8] sm:$0xff]
          %v4114 = vld [vmem:[%s13 + $0xc0] sm:$0xff]
          %v4115 = vld [vmem:[%s13 + $0xc8] sm:$0xff]
          %v4116 = vld [vmem:[%s13 + $0xd0] sm:$0xff]
          %v4117 = vld [vmem:[%s13 + $0xd8] sm:$0xff]
          %v4118 = vld [vmem:[%s13 + $0xe0] sm:$0xff]
          %v4119 = vld [vmem:[%s13 + $0xe8] sm:$0xff]
          %v4120 = vld [vmem:[%s13 + $0xf0] sm:$0xff]
          %v4121 = vld [vmem:[%s13 + $0xf8] sm:$0xff]
          %v4122 = vld [vmem:[%s13 + $0x100] sm:$0xff]
          %v4123 = vld [vmem:[%s13 + $0x108] sm:$0xff]
          %v4124 = vld [vmem:[%s13 + $0x110] sm:$0xff]
          %v4125 = vld [vmem:[%s13 + $0x118] sm:$0xff]
          %v4126 = vld [vmem:[%s13 + $0x120] sm:$0xff]
          %v4127 = vld [vmem:[%s13 + $0x128] sm:$0xff]
          %v4128 = vld [vmem:[%s13 + $0x130] sm:$0xff]
          %v4129 = vld [vmem:[%s13 + $0x138] sm:$0xff]
          %v4130 = vld [vmem:[%s13 + $0x140] sm:$0xff]
          %v4131 = vld [vmem:[%s13 + $0x148] sm:$0xff]
          %v4132 = vld [vmem:[%s13 + $0x150] sm:$0xff]
          %v4133 = vld [vmem:[%s13 + $0x158] sm:$0xff]
          %v4134 = vld [vmem:[%s13 + $0x160] sm:$0xff]
          %v4135 = vld [vmem:[%s13 + $0x168] sm:$0xff]
          %v4136 = vld [vmem:[%s13 + $0x170] sm:$0xff]
          %v4137 = vld [vmem:[%s13 + $0x178] sm:$0xff]
          %v4138 = vld [vmem:[%s13 + $0x180] sm:$0xff]
          %v4139 = vld [vmem:[%s13 + $0x188] sm:$0xff]
          %v4140 = vld [vmem:[%s13 + $0x190] sm:$0xff]
          %v4141 = vld [vmem:[%s13 + $0x198] sm:$0xff]
          %v4142 = vld [vmem:[%s13 + $0x1a0] sm:$0xff]
          %v4143 = vld [vmem:[%s13 + $0x1a8] sm:$0xff]
          %v4144 = vld [vmem:[%s13 + $0x1b0] sm:$0xff]
          %v4145 = vld [vmem:[%s13 + $0x1b8] sm:$0xff]
          %v4146 = vld [vmem:[%s13 + $0x1c0] sm:$0xff]
          %v4147 = vld [vmem:[%s13 + $0x1c8] sm:$0xff]
          %v4148 = vld [vmem:[%s13 + $0x1d0] sm:$0xff]
          %v4149 = vld [vmem:[%s13 + $0x1d8] sm:$0xff]
          %v4150 = vld [vmem:[%s13 + $0x1e0] sm:$0xff]
          %v4151 = vld [vmem:[%s13 + $0x1e8] sm:$0xff]
          %v4152 = vld [vmem:[%s13 + $0x1f0] sm:$0xff]
          %v4153 = vld [vmem:[%s13 + $0x1f8] sm:$0xff]
          %v4154 = vld [vmem:[%s13 + $0x200] sm:$0xff]
          %v4155 = vld [vmem:[%s13 + $0x208] sm:$0xff]
          %v4156 = vld [vmem:[%s13 + $0x210] sm:$0xff]
          %v4157 = vld [vmem:[%s13 + $0x218] sm:$0xff]
          %v4158 = vld [vmem:[%s13 + $0x220] sm:$0xff]
          %v4159 = vld [vmem:[%s13 + $0x228] sm:$0xff]
          %v4160 = vld [vmem:[%s13 + $0x230] sm:$0xff]
          %v4161 = vld [vmem:[%s13 + $0x238] sm:$0xff]
          %v4162 = vld [vmem:[%s13 + $0x240] sm:$0xff]
          %v4163 = vld [vmem:[%s13 + $0x248] sm:$0xff]
          %v4164 = vld [vmem:[%s13 + $0x250] sm:$0xff]
          %v4165 = vld [vmem:[%s13 + $0x258] sm:$0xff]
          %v4166 = vld [vmem:[%s13 + $0x260] sm:$0xff]
          %v4167 = vld [vmem:[%s13 + $0x268] sm:$0xff]
          %v4168 = vld [vmem:[%s13 + $0x270] sm:$0xff]
          %v4169 = vld [vmem:[%s13 + $0x278] sm:$0xff]
          %v4170 = vld [vmem:[%s13 + $0x280] sm:$0xff]
          %v4171 = vld [vmem:[%s13 + $0x288] sm:$0xff]
          %v4172 = vld [vmem:[%s13 + $0x290] sm:$0xff]
          %v4173 = vld [vmem:[%s13 + $0x298] sm:$0xff]
          %v4174 = vld [vmem:[%s13 + $0x2a0] sm:$0xff]
          %v4175 = vld [vmem:[%s13 + $0x2a8] sm:$0xff]
          %v4176 = vld [vmem:[%s13 + $0x2b0] sm:$0xff]
          %v4177 = vld [vmem:[%s13 + $0x2b8] sm:$0xff]
          %v4178 = vld [vmem:[%s13 + $0x2c0] sm:$0xff]
          %v4179 = vld [vmem:[%s13 + $0x2c8] sm:$0xff]
          %v4180 = vld [vmem:[%s13 + $0x2d0] sm:$0xff]
          %v4181 = vld [vmem:[%s13 + $0x2d8] sm:$0xff]
          %v4182 = vld [vmem:[%s13 + $0x2e0] sm:$0xff]
          %v4183 = vld [vmem:[%s13 + $0x2e8] sm:$0xff]
          %v4184 = vld [vmem:[%s13 + $0x2f0] sm:$0xff]
          %v4185 = vld [vmem:[%s13 + $0x2f8] sm:$0xff]
          %v4186 = vld [vmem:[%s14] sm:$0xff]
          %v4187 = vld [vmem:[%s14 + $0x8] sm:$0xff]
          %v4188 = vld [vmem:[%s14 + $0x10] sm:$0xff]
          %v4189 = vld [vmem:[%s14 + $0x18] sm:$0xff]
          %v4190 = vld [vmem:[%s14 + $0x20] sm:$0xff]
          %v4191 = vld [vmem:[%s14 + $0x28] sm:$0xff]
          %v4192 = vld [vmem:[%s14 + $0x30] sm:$0xff]
          %v4193 = vld [vmem:[%s14 + $0x38] sm:$0xff]
          %v4194 = vld [vmem:[%s14 + $0x40] sm:$0xff]
          %v4195 = vld [vmem:[%s14 + $0x48] sm:$0xff]
          %v4196 = vld [vmem:[%s14 + $0x50] sm:$0xff]
          %v4197 = vld [vmem:[%s14 + $0x58] sm:$0xff]
          %v4198 = vld [vmem:[%s14 + $0x60] sm:$0xff]
          %v4199 = vld [vmem:[%s14 + $0x68] sm:$0xff]
          %v4200 = vld [vmem:[%s14 + $0x70] sm:$0xff]
          %v4201 = vld [vmem:[%s14 + $0x78] sm:$0xff]
          %v4202 = vld [vmem:[%s14 + $0x80] sm:$0xff]
          %v4203 = vld [vmem:[%s14 + $0x88] sm:$0xff]
          %v4204 = vld [vmem:[%s14 + $0x90] sm:$0xff]
          %v4205 = vld [vmem:[%s14 + $0x98] sm:$0xff]
          %v4206 = vld [vmem:[%s14 + $0xa0] sm:$0xff]
          %v4207 = vld [vmem:[%s14 + $0xa8] sm:$0xff]
          %v4208 = vld [vmem:[%s14 + $0xb0] sm:$0xff]
          %v4209 = vld [vmem:[%s14 + $0xb8] sm:$0xff]
          %v4210 = vld [vmem:[%s14 + $0xc0] sm:$0xff]
          %v4211 = vld [vmem:[%s14 + $0xc8] sm:$0xff]
          %v4212 = vld [vmem:[%s14 + $0xd0] sm:$0xff]
          %v4213 = vld [vmem:[%s14 + $0xd8] sm:$0xff]
          %v4214 = vld [vmem:[%s14 + $0xe0] sm:$0xff]
          %v4215 = vld [vmem:[%s14 + $0xe8] sm:$0xff]
          %v4216 = vld [vmem:[%s14 + $0xf0] sm:$0xff]
          %v4217 = vld [vmem:[%s14 + $0xf8] sm:$0xff]
          %v4218 = vld [vmem:[%s14 + $0x100] sm:$0xff]
          %v4219 = vld [vmem:[%s14 + $0x108] sm:$0xff]
          %v4220 = vld [vmem:[%s14 + $0x110] sm:$0xff]
          %v4221 = vld [vmem:[%s14 + $0x118] sm:$0xff]
          %v4222 = vld [vmem:[%s14 + $0x120] sm:$0xff]
          %v4223 = vld [vmem:[%s14 + $0x128] sm:$0xff]
          %v4224 = vld [vmem:[%s14 + $0x130] sm:$0xff]
          %v4225 = vld [vmem:[%s14 + $0x138] sm:$0xff]
          %v4226 = vld [vmem:[%s14 + $0x140] sm:$0xff]
          %v4227 = vld [vmem:[%s14 + $0x148] sm:$0xff]
          %v4228 = vld [vmem:[%s14 + $0x150] sm:$0xff]
          %v4229 = vld [vmem:[%s14 + $0x158] sm:$0xff]
          %v4230 = vld [vmem:[%s14 + $0x160] sm:$0xff]
          %v4231 = vld [vmem:[%s14 + $0x168] sm:$0xff]
          %v4232 = vld [vmem:[%s14 + $0x170] sm:$0xff]
          %v4233 = vld [vmem:[%s14 + $0x178] sm:$0xff]
          %v4234 = vld [vmem:[%s14 + $0x180] sm:$0xff]
          %v4235 = vld [vmem:[%s14 + $0x188] sm:$0xff]
          %v4236 = vld [vmem:[%s14 + $0x190] sm:$0xff]
          %v4237 = vld [vmem:[%s14 + $0x198] sm:$0xff]
          %v4238 = vld [vmem:[%s14 + $0x1a0] sm:$0xff]
          %v4239 = vld [vmem:[%s14 + $0x1a8] sm:$0xff]
          %v4240 = vld [vmem:[%s14 + $0x1b0] sm:$0xff]
          %v4241 = vld [vmem:[%s14 + $0x1b8] sm:$0xff]
          %v4242 = vld [vmem:[%s14 + $0x1c0] sm:$0xff]
          %v4243 = vld [vmem:[%s14 + $0x1c8] sm:$0xff]
          %v4244 = vld [vmem:[%s14 + $0x1d0] sm:$0xff]
          %v4245 = vld [vmem:[%s14 + $0x1d8] sm:$0xff]
          %v4246 = vld [vmem:[%s14 + $0x1e0] sm:$0xff]
          %v4247 = vld [vmem:[%s14 + $0x1e8] sm:$0xff]
          %v4248 = vld [vmem:[%s14 + $0x1f0] sm:$0xff]
          %v4249 = vld [vmem:[%s14 + $0x1f8] sm:$0xff]
          %v4250 = vld [vmem:[%s14 + $0x200] sm:$0xff]
          %v4251 = vld [vmem:[%s14 + $0x208] sm:$0xff]
          %v4252 = vld [vmem:[%s14 + $0x210] sm:$0xff]
          %v4253 = vld [vmem:[%s14 + $0x218] sm:$0xff]
          %v4254 = vld [vmem:[%s14 + $0x220] sm:$0xff]
          %v4255 = vld [vmem:[%s14 + $0x228] sm:$0xff]
          %v4256 = vld [vmem:[%s14 + $0x230] sm:$0xff]
          %v4257 = vld [vmem:[%s14 + $0x238] sm:$0xff]
          %v4258 = vld [vmem:[%s14 + $0x240] sm:$0xff]
          %v4259 = vld [vmem:[%s14 + $0x248] sm:$0xff]
          %v4260 = vld [vmem:[%s14 + $0x250] sm:$0xff]
          %v4261 = vld [vmem:[%s14 + $0x258] sm:$0xff]
          %v4262 = vld [vmem:[%s14 + $0x260] sm:$0xff]
          %v4263 = vld [vmem:[%s14 + $0x268] sm:$0xff]
          %v4264 = vld [vmem:[%s14 + $0x270] sm:$0xff]
          %v4265 = vld [vmem:[%s14 + $0x278] sm:$0xff]
          %v4266 = vld [vmem:[%s14 + $0x280] sm:$0xff]
          %v4267 = vld [vmem:[%s14 + $0x288] sm:$0xff]
          %v4268 = vld [vmem:[%s14 + $0x290] sm:$0xff]
          %v4269 = vld [vmem:[%s14 + $0x298] sm:$0xff]
          %v4270 = vld [vmem:[%s14 + $0x2a0] sm:$0xff]
          %v4271 = vld [vmem:[%s14 + $0x2a8] sm:$0xff]
          %v4272 = vld [vmem:[%s14 + $0x2b0] sm:$0xff]
          %v4273 = vld [vmem:[%s14 + $0x2b8] sm:$0xff]
          %v4274 = vld [vmem:[%s14 + $0x2c0] sm:$0xff]
          %v4275 = vld [vmem:[%s14 + $0x2c8] sm:$0xff]
          %v4276 = vld [vmem:[%s14 + $0x2d0] sm:$0xff]
          %v4277 = vld [vmem:[%s14 + $0x2d8] sm:$0xff]
          %v4278 = vld [vmem:[%s14 + $0x2e0] sm:$0xff]
          %v4279 = vld [vmem:[%s14 + $0x2e8] sm:$0xff]
          %v4280 = vld [vmem:[%s14 + $0x2f0] sm:$0xff]
          %v4281 = vld [vmem:[%s14 + $0x2f8] sm:$0xff]
          %vm4282 = vcmask 261120
          %v4284 = vsel %vm4282, %v4090, 0
          %v4287 = vsel %vm4282, %v4091, 0
          %v4290 = vsel %vm4282, %v4092, 0
          %v4293 = vsel %vm4282, %v4093, 0
          %v4296 = vsel %vm4282, %v4094, 0
          %v4299 = vsel %vm4282, %v4095, 0
          %v4302 = vsel %vm4282, %v4096, 0
          %v4305 = vsel %vm4282, %v4097, 0
          %v4308 = vsel %vm4282, %v4098, 0
          %v4311 = vsel %vm4282, %v4099, 0
          %v4314 = vsel %vm4282, %v4100, 0
          %v4317 = vsel %vm4282, %v4101, 0
          %v4320 = vsel %vm4282, %v4102, 0
          %v4323 = vsel %vm4282, %v4103, 0
          %v4326 = vsel %vm4282, %v4104, 0
          %v4329 = vsel %vm4282, %v4105, 0
          %v4332 = vsel %vm4282, %v4106, 0
          %v4335 = vsel %vm4282, %v4107, 0
          %v4338 = vsel %vm4282, %v4108, 0
          %v4341 = vsel %vm4282, %v4109, 0
          %v4344 = vsel %vm4282, %v4110, 0
          %v4347 = vsel %vm4282, %v4111, 0
          %v4350 = vsel %vm4282, %v4112, 0
          %v4353 = vsel %vm4282, %v4113, 0
          %v4356 = vsel %vm4282, %v4114, 0
          %v4359 = vsel %vm4282, %v4115, 0
          %v4362 = vsel %vm4282, %v4116, 0
          %v4365 = vsel %vm4282, %v4117, 0
          %v4368 = vsel %vm4282, %v4118, 0
          %v4371 = vsel %vm4282, %v4119, 0
          %v4374 = vsel %vm4282, %v4120, 0
          %v4377 = vsel %vm4282, %v4121, 0
          %v4380 = vsel %vm4282, %v4122, 0
          %v4383 = vsel %vm4282, %v4123, 0
          %v4386 = vsel %vm4282, %v4124, 0
          %v4389 = vsel %vm4282, %v4125, 0
          %v4392 = vsel %vm4282, %v4126, 0
          %v4395 = vsel %vm4282, %v4127, 0
          %v4398 = vsel %vm4282, %v4128, 0
          %v4401 = vsel %vm4282, %v4129, 0
          %v4404 = vsel %vm4282, %v4130, 0
          %v4407 = vsel %vm4282, %v4131, 0
          %v4410 = vsel %vm4282, %v4132, 0
          %v4413 = vsel %vm4282, %v4133, 0
          %v4416 = vsel %vm4282, %v4134, 0
          %v4419 = vsel %vm4282, %v4135, 0
          %v4422 = vsel %vm4282, %v4136, 0
          %v4425 = vsel %vm4282, %v4137, 0
          %v4428 = vsel %vm4282, %v4138, 0
          %v4431 = vsel %vm4282, %v4139, 0
          %v4434 = vsel %vm4282, %v4140, 0
          %v4437 = vsel %vm4282, %v4141, 0
          %v4440 = vsel %vm4282, %v4142, 0
          %v4443 = vsel %vm4282, %v4143, 0
          %v4446 = vsel %vm4282, %v4144, 0
          %v4449 = vsel %vm4282, %v4145, 0
          %v4452 = vsel %vm4282, %v4146, 0
          %v4455 = vsel %vm4282, %v4147, 0
          %v4458 = vsel %vm4282, %v4148, 0
          %v4461 = vsel %vm4282, %v4149, 0
          %v4464 = vsel %vm4282, %v4150, 0
          %v4467 = vsel %vm4282, %v4151, 0
          %v4470 = vsel %vm4282, %v4152, 0
          %v4473 = vsel %vm4282, %v4153, 0
          %v4476 = vsel %vm4282, %v4154, 0
          %v4479 = vsel %vm4282, %v4155, 0
          %v4482 = vsel %vm4282, %v4156, 0
          %v4485 = vsel %vm4282, %v4157, 0
          %v4488 = vsel %vm4282, %v4158, 0
          %v4491 = vsel %vm4282, %v4159, 0
          %v4494 = vsel %vm4282, %v4160, 0
          %v4497 = vsel %vm4282, %v4161, 0
          %v4500 = vsel %vm4282, %v4162, 0
          %v4503 = vsel %vm4282, %v4163, 0
          %v4506 = vsel %vm4282, %v4164, 0
          %v4509 = vsel %vm4282, %v4165, 0
          %v4512 = vsel %vm4282, %v4166, 0
          %v4515 = vsel %vm4282, %v4167, 0
          %v4518 = vsel %vm4282, %v4168, 0
          %v4521 = vsel %vm4282, %v4169, 0
          %v4524 = vsel %vm4282, %v4170, 0
          %v4527 = vsel %vm4282, %v4171, 0
          %v4530 = vsel %vm4282, %v4172, 0
          %v4533 = vsel %vm4282, %v4173, 0
          %v4536 = vsel %vm4282, %v4174, 0
          %v4539 = vsel %vm4282, %v4175, 0
          %v4542 = vsel %vm4282, %v4176, 0
          %v4545 = vsel %vm4282, %v4177, 0
          %v4548 = vsel %vm4282, %v4178, 0
          %v4551 = vsel %vm4282, %v4179, 0
          %v4554 = vsel %vm4282, %v4180, 0
          %v4557 = vsel %vm4282, %v4181, 0
          %v4560 = vsel %vm4282, %v4182, 0
          %v4563 = vsel %vm4282, %v4183, 0
          %v4566 = vsel %vm4282, %v4184, 0
          %v4569 = vsel %vm4282, %v4185, 0
          %4571 = vmatpush.msra.mxu0 0.0
          %4572 = vmatpush.msra.mxu0 0.0
          %4573 = vmatpush.msra.mxu0 0.0
          %4574 = vmatpush.msra.mxu0 0.0
          %4575 = vmatpush.msra.mxu0 0.0
          %4576 = vmatpush.msra.mxu0 0.0
          %4577 = vmatpush.msra.mxu0 0.0
          %4578 = vmatpush.msra.mxu0 0.0
          %4579 = vmatpush.msra.mxu0 0.0
          %4580 = vmatpush.msra.mxu0 0.0
          %4581 = vmatpush.msra.mxu0 0.0
          %4582 = vmatpush.msra.mxu0 0.0
          %4583 = vmatpush.msra.mxu0 %v4084
          %4584 = vmatpush.msra.mxu0 %v4083
          %4585 = vmatpush.msra.mxu0 %v4082
          %4586 = vmatpush.msra.mxu0 %v4081
          %4587 = vmatmul.f32.gmra.mxu0 %v4284
          %v4588 = vpop.f32.mrf.mxu0
          %v4589 = vadd.f32 %v4186, %v4588
          %4590 = vmatmul.f32.gmra.mxu0 %v4287
          %v4591 = vpop.f32.mrf.mxu0
          %v4592 = vadd.f32 %v4187, %v4591
          %4593 = vmatmul.f32.gmra.mxu0 %v4290
          %v4594 = vpop.f32.mrf.mxu0
          %v4595 = vadd.f32 %v4188, %v4594
          %4596 = vmatmul.f32.gmra.mxu0 %v4293
          %v4597 = vpop.f32.mrf.mxu0
          %v4598 = vadd.f32 %v4189, %v4597
          %4599 = vmatmul.f32.gmra.mxu0 %v4296
          %v4600 = vpop.f32.mrf.mxu0
          %v4601 = vadd.f32 %v4190, %v4600
          %4602 = vmatmul.f32.gmra.mxu0 %v4299
          %v4603 = vpop.f32.mrf.mxu0
          %v4604 = vadd.f32 %v4191, %v4603
          %4605 = vmatmul.f32.gmra.mxu0 %v4302
          %v4606 = vpop.f32.mrf.mxu0
          %v4607 = vadd.f32 %v4192, %v4606
          %4608 = vmatmul.f32.gmra.mxu0 %v4305
          %v4609 = vpop.f32.mrf.mxu0
          %v4610 = vadd.f32 %v4193, %v4609
          %4611 = vmatmul.f32.gmra.mxu0 %v4308
          %v4612 = vpop.f32.mrf.mxu0
          %v4613 = vadd.f32 %v4194, %v4612
          %4614 = vmatmul.f32.gmra.mxu0 %v4311
          %v4615 = vpop.f32.mrf.mxu0
          %v4616 = vadd.f32 %v4195, %v4615
          %4617 = vmatmul.f32.gmra.mxu0 %v4314
          %v4618 = vpop.f32.mrf.mxu0
          %v4619 = vadd.f32 %v4196, %v4618
          %4620 = vmatmul.f32.gmra.mxu0 %v4317
          %v4621 = vpop.f32.mrf.mxu0
          %v4622 = vadd.f32 %v4197, %v4621
          %4623 = vmatmul.f32.gmra.mxu0 %v4320
          %v4624 = vpop.f32.mrf.mxu0
          %v4625 = vadd.f32 %v4198, %v4624
          %4626 = vmatmul.f32.gmra.mxu0 %v4323
          %v4627 = vpop.f32.mrf.mxu0
          %v4628 = vadd.f32 %v4199, %v4627
          %4629 = vmatmul.f32.gmra.mxu0 %v4326
          %v4630 = vpop.f32.mrf.mxu0
          %v4631 = vadd.f32 %v4200, %v4630
          %4632 = vmatmul.f32.gmra.mxu0 %v4329
          %v4633 = vpop.f32.mrf.mxu0
          %v4634 = vadd.f32 %v4201, %v4633
          %4635 = vmatmul.f32.gmra.mxu0 %v4332
          %v4636 = vpop.f32.mrf.mxu0
          %v4637 = vadd.f32 %v4202, %v4636
          %4638 = vmatmul.f32.gmra.mxu0 %v4335
          %v4639 = vpop.f32.mrf.mxu0
          %v4640 = vadd.f32 %v4203, %v4639
          %4641 = vmatmul.f32.gmra.mxu0 %v4338
          %v4642 = vpop.f32.mrf.mxu0
          %v4643 = vadd.f32 %v4204, %v4642
          %4644 = vmatmul.f32.gmra.mxu0 %v4341
          %v4645 = vpop.f32.mrf.mxu0
          %v4646 = vadd.f32 %v4205, %v4645
          %4647 = vmatmul.f32.gmra.mxu0 %v4344
          %v4648 = vpop.f32.mrf.mxu0
          %v4649 = vadd.f32 %v4206, %v4648
          %4650 = vmatmul.f32.gmra.mxu0 %v4347
          %v4651 = vpop.f32.mrf.mxu0
          %v4652 = vadd.f32 %v4207, %v4651
          %4653 = vmatmul.f32.gmra.mxu0 %v4350
          %v4654 = vpop.f32.mrf.mxu0
          %v4655 = vadd.f32 %v4208, %v4654
          %4656 = vmatmul.f32.gmra.mxu0 %v4353
          %v4657 = vpop.f32.mrf.mxu0
          %v4658 = vadd.f32 %v4209, %v4657
          %4659 = vmatmul.f32.gmra.mxu0 %v4356
          %v4660 = vpop.f32.mrf.mxu0
          %v4661 = vadd.f32 %v4210, %v4660
          %4662 = vmatmul.f32.gmra.mxu0 %v4359
          %v4663 = vpop.f32.mrf.mxu0
          %v4664 = vadd.f32 %v4211, %v4663
          %4665 = vmatmul.f32.gmra.mxu0 %v4362
          %v4666 = vpop.f32.mrf.mxu0
          %v4667 = vadd.f32 %v4212, %v4666
          %4668 = vmatmul.f32.gmra.mxu0 %v4365
          %v4669 = vpop.f32.mrf.mxu0
          %v4670 = vadd.f32 %v4213, %v4669
          %4671 = vmatmul.f32.gmra.mxu0 %v4368
          %v4672 = vpop.f32.mrf.mxu0
          %v4673 = vadd.f32 %v4214, %v4672
          %4674 = vmatmul.f32.gmra.mxu0 %v4371
          %v4675 = vpop.f32.mrf.mxu0
          %v4676 = vadd.f32 %v4215, %v4675
          %4677 = vmatmul.f32.gmra.mxu0 %v4374
          %v4678 = vpop.f32.mrf.mxu0
          %v4679 = vadd.f32 %v4216, %v4678
          %4680 = vmatmul.f32.gmra.mxu0 %v4377
          %v4681 = vpop.f32.mrf.mxu0
          %v4682 = vadd.f32 %v4217, %v4681
          %4683 = vmatmul.f32.gmra.mxu0 %v4380
          %v4684 = vpop.f32.mrf.mxu0
          %v4685 = vadd.f32 %v4218, %v4684
          %4686 = vmatmul.f32.gmra.mxu0 %v4383
          %v4687 = vpop.f32.mrf.mxu0
          %v4688 = vadd.f32 %v4219, %v4687
          %4689 = vmatmul.f32.gmra.mxu0 %v4386
          %v4690 = vpop.f32.mrf.mxu0
          %v4691 = vadd.f32 %v4220, %v4690
          %4692 = vmatmul.f32.gmra.mxu0 %v4389
          %v4693 = vpop.f32.mrf.mxu0
          %v4694 = vadd.f32 %v4221, %v4693
          %4695 = vmatmul.f32.gmra.mxu0 %v4392
          %v4696 = vpop.f32.mrf.mxu0
          %v4697 = vadd.f32 %v4222, %v4696
          %4698 = vmatmul.f32.gmra.mxu0 %v4395
          %v4699 = vpop.f32.mrf.mxu0
          %v4700 = vadd.f32 %v4223, %v4699
          %4701 = vmatmul.f32.gmra.mxu0 %v4398
          %v4702 = vpop.f32.mrf.mxu0
          %v4703 = vadd.f32 %v4224, %v4702
          %4704 = vmatmul.f32.gmra.mxu0 %v4401
          %v4705 = vpop.f32.mrf.mxu0
          %v4706 = vadd.f32 %v4225, %v4705
          %4707 = vmatmul.f32.gmra.mxu0 %v4404
          %v4708 = vpop.f32.mrf.mxu0
          %v4709 = vadd.f32 %v4226, %v4708
          %4710 = vmatmul.f32.gmra.mxu0 %v4407
          %v4711 = vpop.f32.mrf.mxu0
          %v4712 = vadd.f32 %v4227, %v4711
          %4713 = vmatmul.f32.gmra.mxu0 %v4410
          %v4714 = vpop.f32.mrf.mxu0
          %v4715 = vadd.f32 %v4228, %v4714
          %4716 = vmatmul.f32.gmra.mxu0 %v4413
          %v4717 = vpop.f32.mrf.mxu0
          %v4718 = vadd.f32 %v4229, %v4717
          %4719 = vmatmul.f32.gmra.mxu0 %v4416
          %v4720 = vpop.f32.mrf.mxu0
          %v4721 = vadd.f32 %v4230, %v4720
          %4722 = vmatmul.f32.gmra.mxu0 %v4419
          %v4723 = vpop.f32.mrf.mxu0
          %v4724 = vadd.f32 %v4231, %v4723
          %4725 = vmatmul.f32.gmra.mxu0 %v4422
          %v4726 = vpop.f32.mrf.mxu0
          %v4727 = vadd.f32 %v4232, %v4726
          %4728 = vmatmul.f32.gmra.mxu0 %v4425
          %v4729 = vpop.f32.mrf.mxu0
          %v4730 = vadd.f32 %v4233, %v4729
          %4731 = vmatmul.f32.gmra.mxu0 %v4428
          %v4732 = vpop.f32.mrf.mxu0
          %v4733 = vadd.f32 %v4234, %v4732
          %4734 = vmatmul.f32.gmra.mxu0 %v4431
          %v4735 = vpop.f32.mrf.mxu0
          %v4736 = vadd.f32 %v4235, %v4735
          %4737 = vmatmul.f32.gmra.mxu0 %v4434
          %v4738 = vpop.f32.mrf.mxu0
          %v4739 = vadd.f32 %v4236, %v4738
          %4740 = vmatmul.f32.gmra.mxu0 %v4437
          %v4741 = vpop.f32.mrf.mxu0
          %v4742 = vadd.f32 %v4237, %v4741
          %4743 = vmatmul.f32.gmra.mxu0 %v4440
          %v4744 = vpop.f32.mrf.mxu0
          %v4745 = vadd.f32 %v4238, %v4744
          %4746 = vmatmul.f32.gmra.mxu0 %v4443
          %v4747 = vpop.f32.mrf.mxu0
          %v4748 = vadd.f32 %v4239, %v4747
          %4749 = vmatmul.f32.gmra.mxu0 %v4446
          %v4750 = vpop.f32.mrf.mxu0
          %v4751 = vadd.f32 %v4240, %v4750
          %4752 = vmatmul.f32.gmra.mxu0 %v4449
          %v4753 = vpop.f32.mrf.mxu0
          %v4754 = vadd.f32 %v4241, %v4753
          %4755 = vmatmul.f32.gmra.mxu0 %v4452
          %v4756 = vpop.f32.mrf.mxu0
          %v4757 = vadd.f32 %v4242, %v4756
          %4758 = vmatmul.f32.gmra.mxu0 %v4455
          %v4759 = vpop.f32.mrf.mxu0
          %v4760 = vadd.f32 %v4243, %v4759
          %4761 = vmatmul.f32.gmra.mxu0 %v4458
          %v4762 = vpop.f32.mrf.mxu0
          %v4763 = vadd.f32 %v4244, %v4762
          %4764 = vmatmul.f32.gmra.mxu0 %v4461
          %v4765 = vpop.f32.mrf.mxu0
          %v4766 = vadd.f32 %v4245, %v4765
          %4767 = vmatmul.f32.gmra.mxu0 %v4464
          %v4768 = vpop.f32.mrf.mxu0
          %v4769 = vadd.f32 %v4246, %v4768
          %4770 = vmatmul.f32.gmra.mxu0 %v4467
          %v4771 = vpop.f32.mrf.mxu0
          %v4772 = vadd.f32 %v4247, %v4771
          %4773 = vmatmul.f32.gmra.mxu0 %v4470
          %v4774 = vpop.f32.mrf.mxu0
          %v4775 = vadd.f32 %v4248, %v4774
          %4776 = vmatmul.f32.gmra.mxu0 %v4473
          %v4777 = vpop.f32.mrf.mxu0
          %v4778 = vadd.f32 %v4249, %v4777
          %4779 = vmatmul.f32.gmra.mxu0 %v4476
          %v4780 = vpop.f32.mrf.mxu0
          %v4781 = vadd.f32 %v4250, %v4780
          %4782 = vmatmul.f32.gmra.mxu0 %v4479
          %v4783 = vpop.f32.mrf.mxu0
          %v4784 = vadd.f32 %v4251, %v4783
          %4785 = vmatmul.f32.gmra.mxu0 %v4482
          %v4786 = vpop.f32.mrf.mxu0
          %v4787 = vadd.f32 %v4252, %v4786
          %4788 = vmatmul.f32.gmra.mxu0 %v4485
          %v4789 = vpop.f32.mrf.mxu0
          %v4790 = vadd.f32 %v4253, %v4789
          %4791 = vmatmul.f32.gmra.mxu0 %v4488
          %v4792 = vpop.f32.mrf.mxu0
          %v4793 = vadd.f32 %v4254, %v4792
          %4794 = vmatmul.f32.gmra.mxu0 %v4491
          %v4795 = vpop.f32.mrf.mxu0
          %v4796 = vadd.f32 %v4255, %v4795
          %4797 = vmatmul.f32.gmra.mxu0 %v4494
          %v4798 = vpop.f32.mrf.mxu0
          %v4799 = vadd.f32 %v4256, %v4798
          %4800 = vmatmul.f32.gmra.mxu0 %v4497
          %v4801 = vpop.f32.mrf.mxu0
          %v4802 = vadd.f32 %v4257, %v4801
          %4803 = vmatmul.f32.gmra.mxu0 %v4500
          %v4804 = vpop.f32.mrf.mxu0
          %v4805 = vadd.f32 %v4258, %v4804
          %4806 = vmatmul.f32.gmra.mxu0 %v4503
          %v4807 = vpop.f32.mrf.mxu0
          %v4808 = vadd.f32 %v4259, %v4807
          %4809 = vmatmul.f32.gmra.mxu0 %v4506
          %v4810 = vpop.f32.mrf.mxu0
          %v4811 = vadd.f32 %v4260, %v4810
          %4812 = vmatmul.f32.gmra.mxu0 %v4509
          %v4813 = vpop.f32.mrf.mxu0
          %v4814 = vadd.f32 %v4261, %v4813
          %4815 = vmatmul.f32.gmra.mxu0 %v4512
          %v4816 = vpop.f32.mrf.mxu0
          %v4817 = vadd.f32 %v4262, %v4816
          %4818 = vmatmul.f32.gmra.mxu0 %v4515
          %v4819 = vpop.f32.mrf.mxu0
          %v4820 = vadd.f32 %v4263, %v4819
          %4821 = vmatmul.f32.gmra.mxu0 %v4518
          %v4822 = vpop.f32.mrf.mxu0
          %v4823 = vadd.f32 %v4264, %v4822
          %4824 = vmatmul.f32.gmra.mxu0 %v4521
          %v4825 = vpop.f32.mrf.mxu0
          %v4826 = vadd.f32 %v4265, %v4825
          %4827 = vmatmul.f32.gmra.mxu0 %v4524
          %v4828 = vpop.f32.mrf.mxu0
          %v4829 = vadd.f32 %v4266, %v4828
          %4830 = vmatmul.f32.gmra.mxu0 %v4527
          %v4831 = vpop.f32.mrf.mxu0
          %v4832 = vadd.f32 %v4267, %v4831
          %4833 = vmatmul.f32.gmra.mxu0 %v4530
          %v4834 = vpop.f32.mrf.mxu0
          %v4835 = vadd.f32 %v4268, %v4834
          %4836 = vmatmul.f32.gmra.mxu0 %v4533
          %v4837 = vpop.f32.mrf.mxu0
          %v4838 = vadd.f32 %v4269, %v4837
          %4839 = vmatmul.f32.gmra.mxu0 %v4536
          %v4840 = vpop.f32.mrf.mxu0
          %v4841 = vadd.f32 %v4270, %v4840
          %4842 = vmatmul.f32.gmra.mxu0 %v4539
          %v4843 = vpop.f32.mrf.mxu0
          %v4844 = vadd.f32 %v4271, %v4843
          %4845 = vmatmul.f32.gmra.mxu0 %v4542
          %v4846 = vpop.f32.mrf.mxu0
          %v4847 = vadd.f32 %v4272, %v4846
          %4848 = vmatmul.f32.gmra.mxu0 %v4545
          %v4849 = vpop.f32.mrf.mxu0
          %v4850 = vadd.f32 %v4273, %v4849
          %4851 = vmatmul.f32.gmra.mxu0 %v4548
          %v4852 = vpop.f32.mrf.mxu0
          %v4853 = vadd.f32 %v4274, %v4852
          %4854 = vmatmul.f32.gmra.mxu0 %v4551
          %v4855 = vpop.f32.mrf.mxu0
          %v4856 = vadd.f32 %v4275, %v4855
          %4857 = vmatmul.f32.gmra.mxu0 %v4554
          %v4858 = vpop.f32.mrf.mxu0
          %v4859 = vadd.f32 %v4276, %v4858
          %4860 = vmatmul.f32.gmra.mxu0 %v4557
          %v4861 = vpop.f32.mrf.mxu0
          %v4862 = vadd.f32 %v4277, %v4861
          %4863 = vmatmul.f32.gmra.mxu0 %v4560
          %v4864 = vpop.f32.mrf.mxu0
          %v4865 = vadd.f32 %v4278, %v4864
          %4866 = vmatmul.f32.gmra.mxu0 %v4563
          %v4867 = vpop.f32.mrf.mxu0
          %v4868 = vadd.f32 %v4279, %v4867
          %4869 = vmatmul.f32.gmra.mxu0 %v4566
          %v4870 = vpop.f32.mrf.mxu0
          %v4871 = vadd.f32 %v4280, %v4870
          %4872 = vmatmul.f32.gmra.mxu0 %v4569
          %v4873 = vpop.f32.mrf.mxu0
          %v4874 = vadd.f32 %v4281, %v4873
          %4875 = vdwg.mxu0
          %v4876 = vmax.f32 %v4589, 0.0
          %v4877 = vmax.f32 %v4592, 0.0
          %v4878 = vmax.f32 %v4595, 0.0
          %v4879 = vmax.f32 %v4598, 0.0
          %v4880 = vmax.f32 %v4601, 0.0
          %v4881 = vmax.f32 %v4604, 0.0
          %v4882 = vmax.f32 %v4607, 0.0
          %v4883 = vmax.f32 %v4610, 0.0
          %v4884 = vmax.f32 %v4613, 0.0
          %v4885 = vmax.f32 %v4616, 0.0
          %v4886 = vmax.f32 %v4619, 0.0
          %v4887 = vmax.f32 %v4622, 0.0
          %v4888 = vmax.f32 %v4625, 0.0
          %v4889 = vmax.f32 %v4628, 0.0
          %v4890 = vmax.f32 %v4631, 0.0
          %v4891 = vmax.f32 %v4634, 0.0
          %v4892 = vmax.f32 %v4637, 0.0
          %v4893 = vmax.f32 %v4640, 0.0
          %v4894 = vmax.f32 %v4643, 0.0
          %v4895 = vmax.f32 %v4646, 0.0
          %v4896 = vmax.f32 %v4649, 0.0
          %v4897 = vmax.f32 %v4652, 0.0
          %v4898 = vmax.f32 %v4655, 0.0
          %v4899 = vmax.f32 %v4658, 0.0
          %v4900 = vmax.f32 %v4661, 0.0
          %v4901 = vmax.f32 %v4664, 0.0
          %v4902 = vmax.f32 %v4667, 0.0
          %v4903 = vmax.f32 %v4670, 0.0
          %v4904 = vmax.f32 %v4673, 0.0
          %v4905 = vmax.f32 %v4676, 0.0
          %v4906 = vmax.f32 %v4679, 0.0
          %v4907 = vmax.f32 %v4682, 0.0
          %v4908 = vmax.f32 %v4685, 0.0
          %v4909 = vmax.f32 %v4688, 0.0
          %v4910 = vmax.f32 %v4691, 0.0
          %v4911 = vmax.f32 %v4694, 0.0
          %v4912 = vmax.f32 %v4697, 0.0
          %v4913 = vmax.f32 %v4700, 0.0
          %v4914 = vmax.f32 %v4703, 0.0
          %v4915 = vmax.f32 %v4706, 0.0
          %v4916 = vmax.f32 %v4709, 0.0
          %v4917 = vmax.f32 %v4712, 0.0
          %v4918 = vmax.f32 %v4715, 0.0
          %v4919 = vmax.f32 %v4718, 0.0
          %v4920 = vmax.f32 %v4721, 0.0
          %v4921 = vmax.f32 %v4724, 0.0
          %v4922 = vmax.f32 %v4727, 0.0
          %v4923 = vmax.f32 %v4730, 0.0
          %v4924 = vmax.f32 %v4733, 0.0
          %v4925 = vmax.f32 %v4736, 0.0
          %v4926 = vmax.f32 %v4739, 0.0
          %v4927 = vmax.f32 %v4742, 0.0
          %v4928 = vmax.f32 %v4745, 0.0
          %v4929 = vmax.f32 %v4748, 0.0
          %v4930 = vmax.f32 %v4751, 0.0
          %v4931 = vmax.f32 %v4754, 0.0
          %v4932 = vmax.f32 %v4757, 0.0
          %v4933 = vmax.f32 %v4760, 0.0
          %v4934 = vmax.f32 %v4763, 0.0
          %v4935 = vmax.f32 %v4766, 0.0
          %v4936 = vmax.f32 %v4769, 0.0
          %v4937 = vmax.f32 %v4772, 0.0
          %v4938 = vmax.f32 %v4775, 0.0
          %v4939 = vmax.f32 %v4778, 0.0
          %v4940 = vmax.f32 %v4781, 0.0
          %v4941 = vmax.f32 %v4784, 0.0
          %v4942 = vmax.f32 %v4787, 0.0
          %v4943 = vmax.f32 %v4790, 0.0
          %v4944 = vmax.f32 %v4793, 0.0
          %v4945 = vmax.f32 %v4796, 0.0
          %v4946 = vmax.f32 %v4799, 0.0
          %v4947 = vmax.f32 %v4802, 0.0
          %v4948 = vmax.f32 %v4805, 0.0
          %v4949 = vmax.f32 %v4808, 0.0
          %v4950 = vmax.f32 %v4811, 0.0
          %v4951 = vmax.f32 %v4814, 0.0
          %v4952 = vmax.f32 %v4817, 0.0
          %v4953 = vmax.f32 %v4820, 0.0
          %v4954 = vmax.f32 %v4823, 0.0
          %v4955 = vmax.f32 %v4826, 0.0
          %v4956 = vmax.f32 %v4829, 0.0
          %v4957 = vmax.f32 %v4832, 0.0
          %v4958 = vmax.f32 %v4835, 0.0
          %v4959 = vmax.f32 %v4838, 0.0
          %v4960 = vmax.f32 %v4841, 0.0
          %v4961 = vmax.f32 %v4844, 0.0
          %v4962 = vmax.f32 %v4847, 0.0
          %v4963 = vmax.f32 %v4850, 0.0
          %v4964 = vmax.f32 %v4853, 0.0
          %v4965 = vmax.f32 %v4856, 0.0
          %v4966 = vmax.f32 %v4859, 0.0
          %v4967 = vmax.f32 %v4862, 0.0
          %v4968 = vmax.f32 %v4865, 0.0
          %v4969 = vmax.f32 %v4868, 0.0
          %v4970 = vmax.f32 %v4871, 0.0
          %v4971 = vmax.f32 %v4874, 0.0
          %v4972 = vld [vmem:[%s15] sm:$0xff]
          %v4973 = vld [vmem:[%s15 + $0x8] sm:$0xff]
          %v4974 = vld [vmem:[%s15 + $0x10] sm:$0xff]
          %v4975 = vld [vmem:[%s15 + $0x18] sm:$0xff]
          %v4976 = vld [vmem:[%s15 + $0x20] sm:$0xff]
          %v4977 = vld [vmem:[%s15 + $0x28] sm:$0xff]
          %4978 = vmatpush.msra.mxu0 %v4891
          %4979 = vmatpush.msra.mxu0 %v4890
          %4980 = vmatpush.msra.mxu0 %v4889
          %4981 = vmatpush.msra.mxu0 %v4888
          %4982 = vmatpush.msra.mxu0 %v4887
          %4983 = vmatpush.msra.mxu0 %v4886
          %4984 = vmatpush.msra.mxu0 %v4885
          %4985 = vmatpush.msra.mxu0 %v4884
          %4986 = vmatpush.msra.mxu0 %v4883
          %4987 = vmatpush.msra.mxu0 %v4882
          %4988 = vmatpush.msra.mxu0 %v4881
          %4989 = vmatpush.msra.mxu0 %v4880
          %4990 = vmatpush.msra.mxu0 %v4879
          %4991 = vmatpush.msra.mxu0 %v4878
          %4992 = vmatpush.msra.mxu0 %v4877
          %4993 = vmatpush.msra.mxu0 %v4876
          %4994 = vmatmul.f32.gmra.mxu0 %v4972
          %v4995 = vpop.f32.mrf.mxu0
          %v4996 = vadd.f32 0.0, %v4995
          %4997 = vdwg.mxu0
          %4998 = vmatpush.msra.mxu0 %v4907
          %4999 = vmatpush.msra.mxu0 %v4906
          %5000 = vmatpush.msra.mxu0 %v4905
          %5001 = vmatpush.msra.mxu0 %v4904
          %5002 = vmatpush.msra.mxu0 %v4903
          %5003 = vmatpush.msra.mxu0 %v4902
          %5004 = vmatpush.msra.mxu0 %v4901
          %5005 = vmatpush.msra.mxu0 %v4900
          %5006 = vmatpush.msra.mxu0 %v4899
          %5007 = vmatpush.msra.mxu0 %v4898
          %5008 = vmatpush.msra.mxu0 %v4897
          %5009 = vmatpush.msra.mxu0 %v4896
          %5010 = vmatpush.msra.mxu0 %v4895
          %5011 = vmatpush.msra.mxu0 %v4894
          %5012 = vmatpush.msra.mxu0 %v4893
          %5013 = vmatpush.msra.mxu0 %v4892
          %5014 = vmatmul.f32.gmra.mxu0 %v4973
          %v5015 = vpop.f32.mrf.mxu0
          %v5016 = vadd.f32 %v4996, %v5015
          %5017 = vdwg.mxu0
          %5018 = vmatpush.msra.mxu0 %v4923
          %5019 = vmatpush.msra.mxu0 %v4922
          %5020 = vmatpush.msra.mxu0 %v4921
          %5021 = vmatpush.msra.mxu0 %v4920
          %5022 = vmatpush.msra.mxu0 %v4919
          %5023 = vmatpush.msra.mxu0 %v4918
          %5024 = vmatpush.msra.mxu0 %v4917
          %5025 = vmatpush.msra.mxu0 %v4916
          %5026 = vmatpush.msra.mxu0 %v4915
          %5027 = vmatpush.msra.mxu0 %v4914
          %5028 = vmatpush.msra.mxu0 %v4913
          %5029 = vmatpush.msra.mxu0 %v4912
          %5030 = vmatpush.msra.mxu0 %v4911
          %5031 = vmatpush.msra.mxu0 %v4910
          %5032 = vmatpush.msra.mxu0 %v4909
          %5033 = vmatpush.msra.mxu0 %v4908
          %5034 = vmatmul.f32.gmra.mxu0 %v4974
          %v5035 = vpop.f32.mrf.mxu0
          %v5036 = vadd.f32 %v5016, %v5035
          %5037 = vdwg.mxu0
          %5038 = vmatpush.msra.mxu0 %v4939
          %5039 = vmatpush.msra.mxu0 %v4938
          %5040 = vmatpush.msra.mxu0 %v4937
          %5041 = vmatpush.msra.mxu0 %v4936
          %5042 = vmatpush.msra.mxu0 %v4935
          %5043 = vmatpush.msra.mxu0 %v4934
          %5044 = vmatpush.msra.mxu0 %v4933
          %5045 = vmatpush.msra.mxu0 %v4932
          %5046 = vmatpush.msra.mxu0 %v4931
          %5047 = vmatpush.msra.mxu0 %v4930
          %5048 = vmatpush.msra.mxu0 %v4929
          %5049 = vmatpush.msra.mxu0 %v4928
          %5050 = vmatpush.msra.mxu0 %v4927
          %5051 = vmatpush.msra.mxu0 %v4926
          %5052 = vmatpush.msra.mxu0 %v4925
          %5053 = vmatpush.msra.mxu0 %v4924
          %5054 = vmatmul.f32.gmra.mxu0 %v4975
          %v5055 = vpop.f32.mrf.mxu0
          %v5056 = vadd.f32 %v5036, %v5055
          %5057 = vdwg.mxu0
          %5058 = vmatpush.msra.mxu0 %v4955
          %5059 = vmatpush.msra.mxu0 %v4954
          %5060 = vmatpush.msra.mxu0 %v4953
          %5061 = vmatpush.msra.mxu0 %v4952
          %5062 = vmatpush.msra.mxu0 %v4951
          %5063 = vmatpush.msra.mxu0 %v4950
          %5064 = vmatpush.msra.mxu0 %v4949
          %5065 = vmatpush.msra.mxu0 %v4948
          %5066 = vmatpush.msra.mxu0 %v4947
          %5067 = vmatpush.msra.mxu0 %v4946
          %5068 = vmatpush.msra.mxu0 %v4945
          %5069 = vmatpush.msra.mxu0 %v4944
          %5070 = vmatpush.msra.mxu0 %v4943
          %5071 = vmatpush.msra.mxu0 %v4942
          %5072 = vmatpush.msra.mxu0 %v4941
          %5073 = vmatpush.msra.mxu0 %v4940
          %5074 = vmatmul.f32.gmra.mxu0 %v4976
          %v5075 = vpop.f32.mrf.mxu0
          %v5076 = vadd.f32 %v5056, %v5075
          %5077 = vdwg.mxu0
          %5078 = vmatpush.msra.mxu0 %v4971
          %5079 = vmatpush.msra.mxu0 %v4970
          %5080 = vmatpush.msra.mxu0 %v4969
          %5081 = vmatpush.msra.mxu0 %v4968
          %5082 = vmatpush.msra.mxu0 %v4967
          %5083 = vmatpush.msra.mxu0 %v4966
          %5084 = vmatpush.msra.mxu0 %v4965
          %5085 = vmatpush.msra.mxu0 %v4964
          %5086 = vmatpush.msra.mxu0 %v4963
          %5087 = vmatpush.msra.mxu0 %v4962
          %5088 = vmatpush.msra.mxu0 %v4961
          %5089 = vmatpush.msra.mxu0 %v4960
          %5090 = vmatpush.msra.mxu0 %v4959
          %5091 = vmatpush.msra.mxu0 %v4958
          %5092 = vmatpush.msra.mxu0 %v4957
          %5093 = vmatpush.msra.mxu0 %v4956
          %5094 = vmatmul.f32.gmra.mxu0 %v4977
          %v5095 = vpop.f32.mrf.mxu0
          %v5096 = vadd.f32 %v5076, %v5095
          %5097 = vdwg.mxu0
          %5098 = vst.msk [vmem:[%s613] sm:$0xff] %vm4085, %v5096
        $region96: #{tpu_custom_call.1} parent=83 // pred_fallthru
          _
        %s5099 = sand.u32 %s398, 1
        %s5100 = scalar_lea.sflag [#allocation4], %s5099
        %s5101 = sand.u32 %s398, 1
        %s5102 = smul.addr %s5101, 256
        %s5103 = scalar_lea.vmem [#allocation3], %s5102
        %p5104 = scmp.lt.s32.totalorder %s37, 1
        %s5105 = scalar_select %p5104, %s37, 1
        %s5106 = smul.addr %s5105, 8
        %s5107 = scalar_lea.vmem %s17, %s5106
        %p5108 = scmp.lt.s32.totalorder %s37, 1
        %s5109 = scalar_select %p5108, %s37, 1
        %s5110 = smul.addr %s5109, 4
        %s5111 = smul.addr %s5110, 8
        %s5112 = scalar_lea.vmem %s18, %s5111
        // Predicated region
        $region97: #{tpu_custom_call.1} parent=83 // pred_check
          %p5113 = pneg %p408
        $region98: #{tpu_custom_call.1} parent=83 // pred_check_branch
          %5115 = sbr.rel (%p5113) target = $region100
        $region99: #{tpu_custom_call.1} parent=83 // pred_region
          %5117 = vsyncadd %s5100, 0
          %s5118 = smul.addr %s37, 64
          %s5119 = sadd.s32 %s38, %s5118
          %s5120 = smul.addr %s5119, 4
          %s5121 = scalar_lea.hbm %s16, %s5120
          %s5122 = sshll.u32 %s5103, 4
          %s5123 = int_to_ptr.vmem [resolvable:$true] %s5122
          %s5124 = sshll.u32 %s5121, 4
          %s5125 = int_to_ptr.hbm [resolvable:$true] %s5124
          %5130 = dma.vmem_to_hbm [thread:$0]  %s5123, 4096, %s5125, %s5100, 64, 64, 4
        $region100: #{tpu_custom_call.1} parent=83 // pred_fallthru
          _
        // Predicated region
        $region101: #{tpu_custom_call.1} parent=83 // pred_check
          %p5131 = pneg %p434
        $region102: #{tpu_custom_call.1} parent=83 // pred_check_branch
          %5133 = sbr.rel (%p5131) target = $region104
        $region103: #{tpu_custom_call.1} parent=83 // pred_region
          _
        $region104: #{tpu_custom_call.1} parent=83 // pred_fallthru
          _
        // Predicated region
        $region105: #{tpu_custom_call.1} parent=83 // pred_check
          %p5134 = pneg %p460
        $region106: #{tpu_custom_call.1} parent=83 // pred_check_branch
          %5136 = sbr.rel (%p5134) target = $region108
        $region107: #{tpu_custom_call.1} parent=83 // pred_region
          _
        $region108: #{tpu_custom_call.1} parent=83 // pred_fallthru
          _
      $region84: #{tpu_custom_call.1} parent=5 // pred_fallthru
        _
      %p5137 = scmp.le.s32.totalorder 2, %s28
      // Predicated region
      $region109: #{tpu_custom_call.1} parent=5 // pred_check
        %p5138 = pneg %p5137
      $region110: #{tpu_custom_call.1} parent=5 // pred_check_branch
        %5140 = sbr.rel (%p5138) target = $region112
      $region111: #{tpu_custom_call.1} parent=5 // pred_region
        %s5141 = ssub.s32 %s28, 2
        // Predicated region
        $region113: #{tpu_custom_call.1} parent=111 // pred_check
          %p5142 = pneg %p414
        $region114: #{tpu_custom_call.1} parent=111 // pred_check_branch
          %5144 = sbr.rel (%p5142) target = $region116
        $region115: #{tpu_custom_call.1} parent=111 // pred_region
          %s5145 = sand.u32 %s399, 1
          %s5146 = scalar_lea.sflag [#allocation4], %s5145
          %s5147 = sand.u32 %s399, 1
          %s5148 = smul.addr %s5147, 256
          %s5149 = scalar_lea.vmem [#allocation3], %s5148
          %5151 = dma.done %s5146, 4096
        $region116: #{tpu_custom_call.1} parent=111 // pred_fallthru
          _
        // Predicated region
        $region117: #{tpu_custom_call.1} parent=111 // pred_check
          %p5152 = pneg %p440
        $region118: #{tpu_custom_call.1} parent=111 // pred_check_branch
          %5154 = sbr.rel (%p5152) target = $region120
        $region119: #{tpu_custom_call.1} parent=111 // pred_region
          %p5155 = scmp.lt.s32.totalorder %s39, 1
          %s5156 = scalar_select %p5155, %s39, 1
          %s5157 = smul.addr %s5156, 8
          %s5158 = scalar_lea.vmem %s17, %s5157
        $region120: #{tpu_custom_call.1} parent=111 // pred_fallthru
          _
        // Predicated region
        $region121: #{tpu_custom_call.1} parent=111 // pred_check
          %p5159 = pneg %p466
        $region122: #{tpu_custom_call.1} parent=111 // pred_check_branch
          %5161 = sbr.rel (%p5159) target = $region124
        $region123: #{tpu_custom_call.1} parent=111 // pred_region
          %p5162 = scmp.lt.s32.totalorder %s39, 1
          %s5163 = scalar_select %p5162, %s39, 1
          %s5164 = smul.addr %s5163, 4
          %s5165 = smul.addr %s5164, 8
          %s5166 = scalar_lea.vmem %s18, %s5165
        $region124: #{tpu_custom_call.1} parent=111 // pred_fallthru
          _
      $region112: #{tpu_custom_call.1} parent=5 // pred_fallthru
        _
    $region6: #{tpu_custom_call.1} parent=1 // loop_footer
      %s32 = sadd.s32 1, %s28
    $region7: #{tpu_custom_call.1} parent=1 // loop_footer_branch
      %27 = sbr.rel target = $region3
    $region8: #{tpu_custom_call.1} parent=1 // loop_exit
      _
    %5167 = vsyncpa [#allocation4], 1
    %s5168 = scalar_lea.sflag [#allocation4], 1
    %5169 = vsyncpa %s5168, 1

</llo_original>
